<compile_context>
chip_gen: v7x
topology: tpu7x:2x2x1
jax: 0.10.0
libtpu: 0.0.40
codegen_flags: <defaults>
</compile_context>

<pallas_src>
import jax
import jax.numpy as jnp
from jax.experimental import pallas as pl
from jax.experimental.pallas import tpu as pltpu

LATENT_DIM = 100
LATENT_PAD = 128          # lane-dense padded latent (zero cols contribute 0)
HIDDEN = (128, 256, 512, 1024)
OUT_DIM = 784             # 1 * 28 * 28
OUT_PAD = 896             # 7 * 128 lane-dense output (padded cols sliced off)
LRELU_SLOPE = 0.2
BN_EPS = 1e-5


def _leaky_relu(x):
    return jnp.where(x > 0, x, LRELU_SLOPE * x)


def generator_kernel(
    z_ref,
    w1_ref, b1_ref,
    w2_ref, b2_ref, g2_ref, be2_ref,
    w3_ref, b3_ref, g3_ref, be3_ref,
    w4_ref, b4_ref, g4_ref, be4_ref,
    w5_hbm_ref, b5_ref,
    out_ref,
    w5_vmem, w5_sem,
):
    """Whole generator forward in one VMEM-resident kernel (small model)."""
    # Start streaming the largest weight (block 5) now; blocks 1-4 hide it.
    w5_copy = pltpu.make_async_copy(w5_hbm_ref, w5_vmem, w5_sem)
    w5_copy.start()

    x = z_ref[...]  # f32, (B, 128) zero-padded latent

    def linear(h, w_ref, b_ref):
        # Single native bf16 x bf16 MXU pass with f32 accumulation.
        return (jnp.dot(h.astype(jnp.bfloat16), w_ref[...],
                        preferred_element_type=jnp.float32)
                + b_ref[...].astype(jnp.float32))

    def lin_bn_lrelu(h, w_ref, b_ref, g_ref, be_ref):
        h = linear(h, w_ref, b_ref)
        # Train-mode BatchNorm1d, one-pass variance, folded into one FMA.
        mean = jnp.mean(h, axis=0, keepdims=True)
        var = jnp.mean(h * h, axis=0, keepdims=True) - mean * mean
        scale = g_ref[...] * jax.lax.rsqrt(var + BN_EPS)
        shift = be_ref[...] - mean * scale
        return _leaky_relu(h * scale + shift)

    # Block 1: Linear(100->128) + LeakyReLU(0.2)
    h = _leaky_relu(linear(x, w1_ref, b1_ref))
    # Block 2: Linear(128->256)  + BN + LeakyReLU
    h = lin_bn_lrelu(h, w2_ref, b2_ref, g2_ref, be2_ref)
    # Block 3: Linear(256->512)  + BN + LeakyReLU
    h = lin_bn_lrelu(h, w3_ref, b3_ref, g3_ref, be3_ref)
    # Block 4: Linear(512->1024) + BN + LeakyReLU
    h = lin_bn_lrelu(h, w4_ref, b4_ref, g4_ref, be4_ref)

    # Block 5: Linear(1024->784 padded to 896) + Tanh
    w5_copy.wait()
    out_ref[...] = jnp.tanh(
        jnp.dot(h.astype(jnp.bfloat16), w5_vmem[...],
                preferred_element_type=jnp.float32)
        + b5_ref[...].astype(jnp.float32))


def init_params(key):
    """PyTorch-default-like init (U(-1/sqrt(fan_in), +)), bf16 storage."""
    dims = (LATENT_DIM,) + HIDDEN + (OUT_DIM,)
    params = []
    for i in range(len(dims) - 1):
        fan_in, fan_out = dims[i], dims[i + 1]
        key, kw, kb = jax.random.split(key, 3)
        bound = 1.0 / (fan_in ** 0.5)
        w = jax.random.uniform(kw, (fan_in, fan_out), jnp.float32, -bound, bound)
        b = jax.random.uniform(kb, (1, fan_out), jnp.float32, -bound, bound)
        params.append([w, b])

    # Zero-pad first layer's K dim 100 -> 128 (aligned contraction; matching
    # z columns are also zero so the result is unchanged).
    w1, b1 = params[0]
    params[0] = [jnp.pad(w1, ((0, LATENT_PAD - LATENT_DIM), (0, 0))), b1]

    # Zero-pad last layer's N dim 784 -> 896 (lane-dense output store; padded
    # columns produce tanh(0)=0 and are sliced off in the wrapper).
    w5, b5 = params[-1]
    params[-1] = [jnp.pad(w5, ((0, 0), (0, OUT_PAD - OUT_DIM))),
                  jnp.pad(b5, ((0, 0), (0, OUT_PAD - OUT_DIM)))]

    # bf16 storage for all Linear weights & biases (halves the weight DMA).
    params = tuple((w.astype(jnp.bfloat16), b.astype(jnp.bfloat16))
                   for w, b in params)

    # BatchNorm affine params for hidden layers 2..4 (gamma=1, beta=0), f32.
    bn_params = tuple((jnp.ones((1, n), jnp.float32),
                       jnp.zeros((1, n), jnp.float32))
                      for n in HIDDEN[1:])
    return params, bn_params


@jax.jit
def generator_forward(z, params, bn_params):
    B = z.shape[0]
    (w1, b1), (w2, b2), (w3, b3), (w4, b4), (w5, b5) = params
    (g2, be2), (g3, be3), (g4, be4) = bn_params

    # Zero-pad latent 100 -> 128 so the first matmul's K dim is lane-aligned.
    z_pad = jnp.pad(z.astype(jnp.float32),
                    ((0, 0), (0, LATENT_PAD - LATENT_DIM)))

    args = (z_pad,
            w1, b1,
            w2, b2, g2, be2,
            w3, b3, g3, be3,
            w4, b4, g4, be4,
            w5, b5)

    vmem = pl.BlockSpec(memory_space=pltpu.MemorySpace.VMEM)
    in_specs = ([vmem] * 15                                 # z .. be4
                + [pl.BlockSpec(memory_space=pl.ANY),       # w5: raw HBM ref
                   vmem])                                    # b5

    flat = pl.pallas_call(
        generator_kernel,
        out_shape=jax.ShapeDtypeStruct((B, OUT_PAD), jnp.float32),
        in_specs=in_specs,
        out_specs=vmem,
        scratch_shapes=[
            pltpu.VMEM((HIDDEN[-1], OUT_PAD), jnp.bfloat16),  # w5 landing buf
            pltpu.SemaphoreType.DMA(()),
        ],
    )(*args)

    # Drop the lane-padding, then img.view(B, 1, 28, 28) -> NCHW.
    return flat[:, :OUT_DIM].reshape(B, 1, 28, 28)


def generator_ref(z, params, bn_params):
    """Pure-JAX reference with the exact same mixed-precision math."""
    (w1, b1), (w2, b2), (w3, b3), (w4, b4), (w5, b5) = params
    (g2, be2), (g3, be3), (g4, be4) = bn_params

    def lrelu(x):
        return jnp.where(x > 0, x, LRELU_SLOPE * x)

    def linear(h, w, b):
        return (jnp.dot(h.astype(jnp.bfloat16), w,
                        preferred_element_type=jnp.float32)
                + b.astype(jnp.float32))

    def bn(h, g, be):
        mean = jnp.mean(h, axis=0, keepdims=True)
        var = jnp.mean(h * h, axis=0, keepdims=True) - mean * mean
        scale = g * jax.lax.rsqrt(var + BN_EPS)
        shift = be - mean * scale
        return h * scale + shift

    z_pad = jnp.pad(z.astype(jnp.float32),
                    ((0, 0), (0, LATENT_PAD - LATENT_DIM)))
    h = lrelu(linear(z_pad, w1, b1))
    h = lrelu(bn(linear(h, w2, b2), g2, be2))
    h = lrelu(bn(linear(h, w3, b3), g3, be3))
    h = lrelu(bn(linear(h, w4, b4), g4, be4))
    h = jnp.tanh(linear(h, w5, b5))
    return h[:, :OUT_DIM].reshape(z.shape[0], 1, 28, 28)


if __name__ == "__main__":
    key = jax.random.PRNGKey(0)
    key, kz, kp = jax.random.split(key, 3)

    B = 8  # small batch (BatchNorm needs B >= 2); sublane-aligned
    z = jax.random.normal(kz, (B, LATENT_DIM), jnp.float32)
    params, bn_params = init_params(kp)

    img = generator_forward(z, params, bn_params)
    img = jax.block_until_ready(img)

    assert img.shape == (B, 1, 28, 28), img.shape
    assert img.dtype == jnp.float32

    ref = generator_ref(z, params, bn_params)
    err = float(jnp.max(jnp.abs(img - ref)))
    assert err < 5e-3, f"max abs err {err}"

    print("KERNEL_OK")
</pallas_src>

<mosaic_0001>
module attributes {stable_mosaic.version = 11 : i64} {
  func.func @generator_kernel(%arg0: memref<8x128xf32, #tpu.memory_space<vmem>>, %arg1: memref<128x128xbf16, #tpu.memory_space<vmem>>, %arg2: memref<1x128xbf16, #tpu.memory_space<vmem>>, %arg3: memref<128x256xbf16, #tpu.memory_space<vmem>>, %arg4: memref<1x256xbf16, #tpu.memory_space<vmem>>, %arg5: memref<1x256xf32, #tpu.memory_space<vmem>>, %arg6: memref<1x256xf32, #tpu.memory_space<vmem>>, %arg7: memref<256x512xbf16, #tpu.memory_space<vmem>>, %arg8: memref<1x512xbf16, #tpu.memory_space<vmem>>, %arg9: memref<1x512xf32, #tpu.memory_space<vmem>>, %arg10: memref<1x512xf32, #tpu.memory_space<vmem>>, %arg11: memref<512x1024xbf16, #tpu.memory_space<vmem>>, %arg12: memref<1x1024xbf16, #tpu.memory_space<vmem>>, %arg13: memref<1x1024xf32, #tpu.memory_space<vmem>>, %arg14: memref<1x1024xf32, #tpu.memory_space<vmem>>, %arg15: memref<1024x896xbf16, #tpu.memory_space<any>>, %arg16: memref<1x896xbf16, #tpu.memory_space<vmem>>, %arg17: memref<8x896xf32, #tpu.memory_space<vmem>>, %arg18: memref<1024x896xbf16, #tpu.memory_space<vmem>>, %arg19: memref<!tpu.dma_semaphore, #tpu.memory_space<semaphore_mem>>) attributes {dimension_semantics = [], scalar_prefetch = 0 : i64, scratch_operands = 2 : i64, tpu.core_type = #tpu.core_type<tc>} {
    tpu.enqueue_dma source(%arg15 : memref<1024x896xbf16, #tpu.memory_space<any>>) target(%arg18 : memref<1024x896xbf16, #tpu.memory_space<vmem>>) target_semaphore(%arg19 : memref<!tpu.dma_semaphore, #tpu.memory_space<semaphore_mem>>)
    %c0 = arith.constant 0 : index
    %c0_0 = arith.constant 0 : index
    %0 = vector.load %arg0[%c0, %c0_0] : memref<8x128xf32, #tpu.memory_space<vmem>>, vector<8x128xf32>
    %1 = arith.truncf %0 : vector<8x128xf32> to vector<8x128xbf16>
    %c0_1 = arith.constant 0 : index
    %c0_2 = arith.constant 0 : index
    %2 = vector.load %arg1[%c0_1, %c0_2] : memref<128x128xbf16, #tpu.memory_space<vmem>>, vector<128x128xbf16>
    %cst = arith.constant dense<0.000000e+00> : vector<8x128xf32>
    %3 = tpu.matmul %1, %2, %cst {dimension_numbers = #tpu.dot_dimension_numbers<[1], [0], [0], [1], [0, 0, 1, 1], [], []>} : vector<8x128xbf16>, vector<128x128xbf16>, vector<8x128xf32> -> vector<8x128xf32>
    %c0_3 = arith.constant 0 : index
    %c0_4 = arith.constant 0 : index
    %4 = vector.load %arg2[%c0_3, %c0_4] : memref<1x128xbf16, #tpu.memory_space<vmem>>, vector<1x128xbf16>
    %5 = arith.extf %4 : vector<1x128xbf16> to vector<1x128xf32>
    %6 = vector.broadcast %5 : vector<1x128xf32> to vector<8x128xf32>
    %7 = arith.addf %3, %6 : vector<8x128xf32>
    %cst_5 = arith.constant 0.000000e+00 : f32
    %8 = vector.broadcast %cst_5 : f32 to vector<8x128xf32>
    %9 = arith.cmpf ogt, %7, %8 : vector<8x128xf32>
    %cst_6 = arith.constant 2.000000e-01 : f32
    %10 = vector.broadcast %cst_6 : f32 to vector<8x128xf32>
    %11 = arith.mulf %10, %7 : vector<8x128xf32>
    %12 = arith.select %9, %7, %11 : vector<8x128xi1>, vector<8x128xf32>
    %13 = arith.truncf %12 : vector<8x128xf32> to vector<8x128xbf16>
    %c0_7 = arith.constant 0 : index
    %c0_8 = arith.constant 0 : index
    %14 = vector.load %arg3[%c0_7, %c0_8] : memref<128x256xbf16, #tpu.memory_space<vmem>>, vector<128x256xbf16>
    %cst_9 = arith.constant dense<0.000000e+00> : vector<8x256xf32>
    %15 = tpu.matmul %13, %14, %cst_9 {dimension_numbers = #tpu.dot_dimension_numbers<[1], [0], [0], [1], [0, 0, 1, 1], [], []>} : vector<8x128xbf16>, vector<128x256xbf16>, vector<8x256xf32> -> vector<8x256xf32>
    %c0_10 = arith.constant 0 : index
    %c0_11 = arith.constant 0 : index
    %16 = vector.load %arg4[%c0_10, %c0_11] : memref<1x256xbf16, #tpu.memory_space<vmem>>, vector<1x256xbf16>
    %17 = arith.extf %16 : vector<1x256xbf16> to vector<1x256xf32>
    %18 = vector.broadcast %17 : vector<1x256xf32> to vector<8x256xf32>
    %19 = arith.addf %15, %18 : vector<8x256xf32>
    %cst_12 = arith.constant dense<0.000000e+00> : vector<256xf32>
    %20 = vector.multi_reduction <add>, %19, %cst_12 [0] : vector<8x256xf32> to vector<256xf32>
    %21 = vector.shape_cast %20 : vector<256xf32> to vector<1x256xf32>
    %cst_13 = arith.constant 8.000000e+00 : f32
    %22 = vector.broadcast %cst_13 : f32 to vector<1x256xf32>
    %23 = arith.divf %21, %22 : vector<1x256xf32>
    %24 = arith.mulf %19, %19 : vector<8x256xf32>
    %cst_14 = arith.constant dense<0.000000e+00> : vector<256xf32>
    %25 = vector.multi_reduction <add>, %24, %cst_14 [0] : vector<8x256xf32> to vector<256xf32>
    %26 = vector.shape_cast %25 : vector<256xf32> to vector<1x256xf32>
    %cst_15 = arith.constant 8.000000e+00 : f32
    %27 = vector.broadcast %cst_15 : f32 to vector<1x256xf32>
    %28 = arith.divf %26, %27 : vector<1x256xf32>
    %29 = arith.mulf %23, %23 : vector<1x256xf32>
    %30 = arith.subf %28, %29 : vector<1x256xf32>
    %c0_16 = arith.constant 0 : index
    %c0_17 = arith.constant 0 : index
    %31 = vector.load %arg5[%c0_16, %c0_17] : memref<1x256xf32, #tpu.memory_space<vmem>>, vector<1x256xf32>
    %cst_18 = arith.constant 9.99999974E-6 : f32
    %32 = vector.broadcast %cst_18 : f32 to vector<1x256xf32>
    %33 = arith.addf %30, %32 : vector<1x256xf32>
    %34 = math.rsqrt %33 : vector<1x256xf32>
    %35 = arith.mulf %31, %34 : vector<1x256xf32>
    %c0_19 = arith.constant 0 : index
    %c0_20 = arith.constant 0 : index
    %36 = vector.load %arg6[%c0_19, %c0_20] : memref<1x256xf32, #tpu.memory_space<vmem>>, vector<1x256xf32>
    %37 = arith.mulf %23, %35 : vector<1x256xf32>
    %38 = arith.subf %36, %37 : vector<1x256xf32>
    %39 = vector.broadcast %35 : vector<1x256xf32> to vector<8x256xf32>
    %40 = arith.mulf %19, %39 : vector<8x256xf32>
    %41 = vector.broadcast %38 : vector<1x256xf32> to vector<8x256xf32>
    %42 = arith.addf %40, %41 : vector<8x256xf32>
    %cst_21 = arith.constant 0.000000e+00 : f32
    %43 = vector.broadcast %cst_21 : f32 to vector<8x256xf32>
    %44 = arith.cmpf ogt, %42, %43 : vector<8x256xf32>
    %cst_22 = arith.constant 2.000000e-01 : f32
    %45 = vector.broadcast %cst_22 : f32 to vector<8x256xf32>
    %46 = arith.mulf %45, %42 : vector<8x256xf32>
    %47 = arith.select %44, %42, %46 : vector<8x256xi1>, vector<8x256xf32>
    %48 = arith.truncf %47 : vector<8x256xf32> to vector<8x256xbf16>
    %c0_23 = arith.constant 0 : index
    %c0_24 = arith.constant 0 : index
    %49 = vector.load %arg7[%c0_23, %c0_24] : memref<256x512xbf16, #tpu.memory_space<vmem>>, vector<256x512xbf16>
    %cst_25 = arith.constant dense<0.000000e+00> : vector<8x512xf32>
    %50 = tpu.matmul %48, %49, %cst_25 {dimension_numbers = #tpu.dot_dimension_numbers<[1], [0], [0], [1], [0, 0, 1, 1], [], []>} : vector<8x256xbf16>, vector<256x512xbf16>, vector<8x512xf32> -> vector<8x512xf32>
    %c0_26 = arith.constant 0 : index
    %c0_27 = arith.constant 0 : index
    %51 = vector.load %arg8[%c0_26, %c0_27] : memref<1x512xbf16, #tpu.memory_space<vmem>>, vector<1x512xbf16>
    %52 = arith.extf %51 : vector<1x512xbf16> to vector<1x512xf32>
    %53 = vector.broadcast %52 : vector<1x512xf32> to vector<8x512xf32>
    %54 = arith.addf %50, %53 : vector<8x512xf32>
    %cst_28 = arith.constant dense<0.000000e+00> : vector<512xf32>
    %55 = vector.multi_reduction <add>, %54, %cst_28 [0] : vector<8x512xf32> to vector<512xf32>
    %56 = vector.shape_cast %55 : vector<512xf32> to vector<1x512xf32>
    %cst_29 = arith.constant 8.000000e+00 : f32
    %57 = vector.broadcast %cst_29 : f32 to vector<1x512xf32>
    %58 = arith.divf %56, %57 : vector<1x512xf32>
    %59 = arith.mulf %54, %54 : vector<8x512xf32>
    %cst_30 = arith.constant dense<0.000000e+00> : vector<512xf32>
    %60 = vector.multi_reduction <add>, %59, %cst_30 [0] : vector<8x512xf32> to vector<512xf32>
    %61 = vector.shape_cast %60 : vector<512xf32> to vector<1x512xf32>
    %cst_31 = arith.constant 8.000000e+00 : f32
    %62 = vector.broadcast %cst_31 : f32 to vector<1x512xf32>
    %63 = arith.divf %61, %62 : vector<1x512xf32>
    %64 = arith.mulf %58, %58 : vector<1x512xf32>
    %65 = arith.subf %63, %64 : vector<1x512xf32>
    %c0_32 = arith.constant 0 : index
    %c0_33 = arith.constant 0 : index
    %66 = vector.load %arg9[%c0_32, %c0_33] : memref<1x512xf32, #tpu.memory_space<vmem>>, vector<1x512xf32>
    %cst_34 = arith.constant 9.99999974E-6 : f32
    %67 = vector.broadcast %cst_34 : f32 to vector<1x512xf32>
    %68 = arith.addf %65, %67 : vector<1x512xf32>
    %69 = math.rsqrt %68 : vector<1x512xf32>
    %70 = arith.mulf %66, %69 : vector<1x512xf32>
    %c0_35 = arith.constant 0 : index
    %c0_36 = arith.constant 0 : index
    %71 = vector.load %arg10[%c0_35, %c0_36] : memref<1x512xf32, #tpu.memory_space<vmem>>, vector<1x512xf32>
    %72 = arith.mulf %58, %70 : vector<1x512xf32>
    %73 = arith.subf %71, %72 : vector<1x512xf32>
    %74 = vector.broadcast %70 : vector<1x512xf32> to vector<8x512xf32>
    %75 = arith.mulf %54, %74 : vector<8x512xf32>
    %76 = vector.broadcast %73 : vector<1x512xf32> to vector<8x512xf32>
    %77 = arith.addf %75, %76 : vector<8x512xf32>
    %cst_37 = arith.constant 0.000000e+00 : f32
    %78 = vector.broadcast %cst_37 : f32 to vector<8x512xf32>
    %79 = arith.cmpf ogt, %77, %78 : vector<8x512xf32>
    %cst_38 = arith.constant 2.000000e-01 : f32
    %80 = vector.broadcast %cst_38 : f32 to vector<8x512xf32>
    %81 = arith.mulf %80, %77 : vector<8x512xf32>
    %82 = arith.select %79, %77, %81 : vector<8x512xi1>, vector<8x512xf32>
    %83 = arith.truncf %82 : vector<8x512xf32> to vector<8x512xbf16>
    %c0_39 = arith.constant 0 : index
    %c0_40 = arith.constant 0 : index
    %84 = vector.load %arg11[%c0_39, %c0_40] : memref<512x1024xbf16, #tpu.memory_space<vmem>>, vector<512x1024xbf16>
    %cst_41 = arith.constant dense<0.000000e+00> : vector<8x1024xf32>
    %85 = tpu.matmul %83, %84, %cst_41 {dimension_numbers = #tpu.dot_dimension_numbers<[1], [0], [0], [1], [0, 0, 1, 1], [], []>} : vector<8x512xbf16>, vector<512x1024xbf16>, vector<8x1024xf32> -> vector<8x1024xf32>
    %c0_42 = arith.constant 0 : index
    %c0_43 = arith.constant 0 : index
    %86 = vector.load %arg12[%c0_42, %c0_43] : memref<1x1024xbf16, #tpu.memory_space<vmem>>, vector<1x1024xbf16>
    %87 = arith.extf %86 : vector<1x1024xbf16> to vector<1x1024xf32>
    %88 = vector.broadcast %87 : vector<1x1024xf32> to vector<8x1024xf32>
    %89 = arith.addf %85, %88 : vector<8x1024xf32>
    %cst_44 = arith.constant dense<0.000000e+00> : vector<1024xf32>
    %90 = vector.multi_reduction <add>, %89, %cst_44 [0] : vector<8x1024xf32> to vector<1024xf32>
    %91 = vector.shape_cast %90 : vector<1024xf32> to vector<1x1024xf32>
    %cst_45 = arith.constant 8.000000e+00 : f32
    %92 = vector.broadcast %cst_45 : f32 to vector<1x1024xf32>
    %93 = arith.divf %91, %92 : vector<1x1024xf32>
    %94 = arith.mulf %89, %89 : vector<8x1024xf32>
    %cst_46 = arith.constant dense<0.000000e+00> : vector<1024xf32>
    %95 = vector.multi_reduction <add>, %94, %cst_46 [0] : vector<8x1024xf32> to vector<1024xf32>
    %96 = vector.shape_cast %95 : vector<1024xf32> to vector<1x1024xf32>
    %cst_47 = arith.constant 8.000000e+00 : f32
    %97 = vector.broadcast %cst_47 : f32 to vector<1x1024xf32>
    %98 = arith.divf %96, %97 : vector<1x1024xf32>
    %99 = arith.mulf %93, %93 : vector<1x1024xf32>
    %100 = arith.subf %98, %99 : vector<1x1024xf32>
    %c0_48 = arith.constant 0 : index
    %c0_49 = arith.constant 0 : index
    %101 = vector.load %arg13[%c0_48, %c0_49] : memref<1x1024xf32, #tpu.memory_space<vmem>>, vector<1x1024xf32>
    %cst_50 = arith.constant 9.99999974E-6 : f32
    %102 = vector.broadcast %cst_50 : f32 to vector<1x1024xf32>
    %103 = arith.addf %100, %102 : vector<1x1024xf32>
    %104 = math.rsqrt %103 : vector<1x1024xf32>
    %105 = arith.mulf %101, %104 : vector<1x1024xf32>
    %c0_51 = arith.constant 0 : index
    %c0_52 = arith.constant 0 : index
    %106 = vector.load %arg14[%c0_51, %c0_52] : memref<1x1024xf32, #tpu.memory_space<vmem>>, vector<1x1024xf32>
    %107 = arith.mulf %93, %105 : vector<1x1024xf32>
    %108 = arith.subf %106, %107 : vector<1x1024xf32>
    %109 = vector.broadcast %105 : vector<1x1024xf32> to vector<8x1024xf32>
    %110 = arith.mulf %89, %109 : vector<8x1024xf32>
    %111 = vector.broadcast %108 : vector<1x1024xf32> to vector<8x1024xf32>
    %112 = arith.addf %110, %111 : vector<8x1024xf32>
    %cst_53 = arith.constant 0.000000e+00 : f32
    %113 = vector.broadcast %cst_53 : f32 to vector<8x1024xf32>
    %114 = arith.cmpf ogt, %112, %113 : vector<8x1024xf32>
    %cst_54 = arith.constant 2.000000e-01 : f32
    %115 = vector.broadcast %cst_54 : f32 to vector<8x1024xf32>
    %116 = arith.mulf %115, %112 : vector<8x1024xf32>
    %117 = arith.select %114, %112, %116 : vector<8x1024xi1>, vector<8x1024xf32>
    tpu.wait_dma2 semaphore(%arg19 : memref<!tpu.dma_semaphore, #tpu.memory_space<semaphore_mem>>) src(%arg15 : memref<1024x896xbf16, #tpu.memory_space<any>>) dst(%arg18 : memref<1024x896xbf16, #tpu.memory_space<vmem>>)
    %118 = arith.truncf %117 : vector<8x1024xf32> to vector<8x1024xbf16>
    %c0_55 = arith.constant 0 : index
    %c0_56 = arith.constant 0 : index
    %119 = vector.load %arg18[%c0_55, %c0_56] : memref<1024x896xbf16, #tpu.memory_space<vmem>>, vector<1024x896xbf16>
    %cst_57 = arith.constant dense<0.000000e+00> : vector<8x896xf32>
    %120 = tpu.matmul %118, %119, %cst_57 {dimension_numbers = #tpu.dot_dimension_numbers<[1], [0], [0], [1], [0, 0, 1, 1], [], []>} : vector<8x1024xbf16>, vector<1024x896xbf16>, vector<8x896xf32> -> vector<8x896xf32>
    %c0_58 = arith.constant 0 : index
    %c0_59 = arith.constant 0 : index
    %121 = vector.load %arg16[%c0_58, %c0_59] : memref<1x896xbf16, #tpu.memory_space<vmem>>, vector<1x896xbf16>
    %122 = arith.extf %121 : vector<1x896xbf16> to vector<1x896xf32>
    %123 = vector.broadcast %122 : vector<1x896xf32> to vector<8x896xf32>
    %124 = arith.addf %120, %123 : vector<8x896xf32>
    %125 = math.tanh %124 : vector<8x896xf32>
    %c0_60 = arith.constant 0 : index
    %c0_61 = arith.constant 0 : index
    %126 = vector.load %arg17[%c0_60, %c0_61] : memref<8x896xf32, #tpu.memory_space<vmem>>, vector<8x896xf32>
    tpu.vector_store %arg17[%c0_60, %c0_61], %125 {strides = array<i32>} : memref<8x896xf32, #tpu.memory_space<vmem>>, vector<8x896xf32>,
    return
  }
}

</mosaic_0001>

<llo_original>
// kernel: generator_forward.1
$region0: #{generator_forward.1}
  #allocation0 [shape = 'u32[]', space=smem, size = 0x4, offset = 0x4, fixed_abs, tag = 'smem constant byte address 0x4 - core index']
  #allocation1 [shape = 'u32[144,128]{1,0:T(1,128)}', space=vmem, size = 0x12000, scoped, tag = 'internal scratch']
  #allocation2 [shape = 'bf16[1024,896]{1,0:T(16,128)(2,1)}', space=vmem, size = 0x1c0000, scoped, tag = 'scratch operand']
  #allocation3 [shape = 's32[1]{0}', space=sflag, size = 0x4, scoped, tag = 'scratch operand']
  #allocation27 [shape = 's32[]', space=sflag, size = 0x4, offset = 0, fixed_abs, tag = 'sflag constant byte address 0x0 - dummy sync flag']
  %s0 = inlined_call_operand.vmem [shape: f32[8,128], index: 0, kind: input, shape index: {}]
  %s1 = inlined_call_operand.hbm [shape: bf16[128,128], index: 1, kind: input, shape index: {}]
  %s2 = inlined_call_operand.hbm [shape: bf16[1,128], index: 2, kind: input, shape index: {}]
  %s3 = inlined_call_operand.hbm [shape: bf16[128,256], index: 3, kind: input, shape index: {}]
  %s4 = inlined_call_operand.hbm [shape: bf16[1,256], index: 4, kind: input, shape index: {}]
  %s5 = inlined_call_operand.hbm [shape: f32[1,256], index: 5, kind: input, shape index: {}]
  %s6 = inlined_call_operand.hbm [shape: f32[1,256], index: 6, kind: input, shape index: {}]
  %s7 = inlined_call_operand.hbm [shape: bf16[256,512], index: 7, kind: input, shape index: {}]
  %s8 = inlined_call_operand.hbm [shape: bf16[1,512], index: 8, kind: input, shape index: {}]
  %s9 = inlined_call_operand.hbm [shape: f32[1,512], index: 9, kind: input, shape index: {}]
  %s10 = inlined_call_operand.hbm [shape: f32[1,512], index: 10, kind: input, shape index: {}]
  %s11 = inlined_call_operand.hbm [shape: bf16[512,1024], index: 11, kind: input, shape index: {}]
  %s12 = inlined_call_operand.hbm [shape: bf16[1,1024], index: 12, kind: input, shape index: {}]
  %s13 = inlined_call_operand.hbm [shape: f32[1,1024], index: 13, kind: input, shape index: {}]
  %s14 = inlined_call_operand.hbm [shape: f32[1,1024], index: 14, kind: input, shape index: {}]
  %s15 = inlined_call_operand.hbm [shape: bf16[1024,896], index: 15, kind: input, shape index: {}]
  %s16 = inlined_call_operand.hbm [shape: bf16[1,896], index: 16, kind: input, shape index: {}]
  %s17 = inlined_call_operand.vmem [shape: f32[8,896], index: 17, kind: output, shape index: {}]
  %s18 = sld [smem:[#allocation0]]
  $region134: #{generator_forward.1} parent=0
    _
  %s20 = ssub.s32 1, %s18
  %s21 = scalar_select 0, %s20, %s18
  $region1: #{generator_forward.1} parent=0
    #allocation4 [shape = 'u8[32768]{0}', space=vmem, size = 0x8000, scoped, tag = 'input window, operand 1, single buffered']
    #allocation5 [shape = 's32[1]{0}', space=sflag, size = 0x4, scoped, tag = 'scoped memory for generator_forward.1']
    #allocation6 [shape = 'u8[512]{0}', space=vmem, size = 0x400, scoped, tag = 'input window, operand 2, single buffered']
    #allocation7 [shape = 's32[1]{0}', space=sflag, size = 0x4, scoped, tag = 'scoped memory for generator_forward.1']
    #allocation8 [shape = 'u8[65536]{0}', space=vmem, size = 0x10000, scoped, tag = 'input window, operand 3, single buffered']
    #allocation9 [shape = 'u8[1024]{0}', space=vmem, size = 0x400, scoped, tag = 'input window, operand 4, single buffered']
    #allocation10 [shape = 's32[1]{0}', space=sflag, size = 0x4, scoped, tag = 'scoped memory for generator_forward.1']
    #allocation11 [shape = 'u8[1024]{0}', space=vmem, size = 0x400, scoped, tag = 'input window, operand 5, single buffered']
    #allocation12 [shape = 'u8[1024]{0}', space=vmem, size = 0x400, scoped, tag = 'input window, operand 6, single buffered']
    #allocation13 [shape = 's32[1]{0}', space=sflag, size = 0x4, scoped, tag = 'scoped memory for generator_forward.1']
    #allocation14 [shape = 'u8[262144]{0}', space=vmem, size = 0x40000, scoped, tag = 'input window, operand 7, single buffered']
    #allocation15 [shape = 'u8[2048]{0}', space=vmem, size = 0x800, scoped, tag = 'input window, operand 8, single buffered']
    #allocation16 [shape = 's32[1]{0}', space=sflag, size = 0x4, scoped, tag = 'scoped memory for generator_forward.1']
    #allocation17 [shape = 'u8[2048]{0}', space=vmem, size = 0x800, scoped, tag = 'input window, operand 9, single buffered']
    #allocation18 [shape = 'u8[2048]{0}', space=vmem, size = 0x800, scoped, tag = 'input window, operand 10, single buffered']
    #allocation19 [shape = 's32[1]{0}', space=sflag, size = 0x4, scoped, tag = 'scoped memory for generator_forward.1']
    #allocation20 [shape = 'u8[1048576]{0}', space=vmem, size = 0x100000, scoped, tag = 'input window, operand 11, single buffered']
    #allocation21 [shape = 'u8[4096]{0}', space=vmem, size = 0x1000, scoped, tag = 'input window, operand 12, single buffered']
    #allocation22 [shape = 's32[1]{0}', space=sflag, size = 0x4, scoped, tag = 'scoped memory for generator_forward.1']
    #allocation23 [shape = 'u8[4096]{0}', space=vmem, size = 0x1000, scoped, tag = 'input window, operand 13, single buffered']
    #allocation24 [shape = 'u8[4096]{0}', space=vmem, size = 0x1000, scoped, tag = 'input window, operand 14, single buffered']
    #allocation25 [shape = 's32[1]{0}', space=sflag, size = 0x4, scoped, tag = 'scoped memory for generator_forward.1']
    #allocation26 [shape = 'u8[3584]{0}', space=vmem, size = 0x1000, scoped, tag = 'input window, operand 16, single buffered']
    #allocation28 [shape = 'u32[9]{0}', space=smem, size = 0x24, scoped, tag = 'DMA stride descriptor']
    %22 = vsyncpa [#allocation5], 0
    %23 = vsyncpa [#allocation7], 0
    %24 = vsyncpa [#allocation10], 0
    %25 = vsyncpa [#allocation13], 0
    %26 = vsyncpa [#allocation16], 0
    %27 = vsyncpa [#allocation19], 0
    %28 = vsyncpa [#allocation22], 0
    %29 = vsyncpa [#allocation25], 0
    // Predicated region
    $region2: #{generator_forward.1} parent=1 // pred_check
      _
    $region3: #{generator_forward.1} parent=1 // pred_check_branch
      %31 = sbr.rel (0) target = $region5
    $region4: #{generator_forward.1} parent=1 // pred_region
      _
    $region5: #{generator_forward.1} parent=1 // pred_fallthru
      _
    // Predicated region
    $region6: #{generator_forward.1} parent=1 // pred_check
      _
    $region7: #{generator_forward.1} parent=1 // pred_check_branch
      %33 = sbr.rel (0) target = $region9
    $region8: #{generator_forward.1} parent=1 // pred_region
      %s35 = ssub.s32 1024, 1024
      %36 = vsyncadd [#allocation5], %s35
      %s37 = sshll.u32 [#allocation4], 4
      %s38 = int_to_ptr.vmem [resolvable:$true] %s37
      %43 = dma.hbm_to_vmem [thread:$0]  %s1, 1024, %s38, [#allocation5], 64, 64, 4
    $region9: #{generator_forward.1} parent=1 // pred_fallthru
      _
    // Predicated region
    $region10: #{generator_forward.1} parent=1 // pred_check
      _
    $region11: #{generator_forward.1} parent=1 // pred_check_branch
      %45 = sbr.rel (0) target = $region13
    $region12: #{generator_forward.1} parent=1 // pred_region
      %s47 = ssub.s32 16, 16
      %48 = vsyncadd [#allocation7], %s47
      %s50 = sshll.u32 [#allocation6], 4
      %s51 = int_to_ptr.vmem [resolvable:$true] %s50
      %53 = dma.hbm_to_vmem [thread:$0]  %s2, 16, %s51, [#allocation7]
    $region13: #{generator_forward.1} parent=1 // pred_fallthru
      _
    // Predicated region
    $region14: #{generator_forward.1} parent=1 // pred_check
      _
    $region15: #{generator_forward.1} parent=1 // pred_check_branch
      %55 = sbr.rel (0) target = $region17
    $region16: #{generator_forward.1} parent=1 // pred_region
      %s57 = ssub.s32 2048, 2048
      %58 = vsyncadd [#allocation7], %s57
      %s59 = sshll.u32 [#allocation8], 4
      %s60 = int_to_ptr.vmem [resolvable:$true] %s59
      %65 = dma.hbm_to_vmem [thread:$0]  %s3, 2048, %s60, [#allocation7], 128, 128, 8
    $region17: #{generator_forward.1} parent=1 // pred_fallthru
      _
    // Predicated region
    $region18: #{generator_forward.1} parent=1 // pred_check
      _
    $region19: #{generator_forward.1} parent=1 // pred_check_branch
      %67 = sbr.rel (0) target = $region21
    $region20: #{generator_forward.1} parent=1 // pred_region
      %s69 = ssub.s32 32, 32
      %70 = vsyncadd [#allocation10], %s69
      %s72 = sshll.u32 [#allocation9], 4
      %s73 = int_to_ptr.vmem [resolvable:$true] %s72
      %75 = dma.hbm_to_vmem [thread:$0]  %s4, 32, %s73, [#allocation10]
    $region21: #{generator_forward.1} parent=1 // pred_fallthru
      _
    // Predicated region
    $region22: #{generator_forward.1} parent=1 // pred_check
      _
    $region23: #{generator_forward.1} parent=1 // pred_check_branch
      %77 = sbr.rel (0) target = $region25
    $region24: #{generator_forward.1} parent=1 // pred_region
      %s79 = ssub.s32 32, 32
      %80 = vsyncadd [#allocation10], %s79
      %s82 = sshll.u32 [#allocation11], 4
      %s83 = int_to_ptr.vmem [resolvable:$true] %s82
      %85 = dma.hbm_to_vmem [thread:$0]  %s5, 32, %s83, [#allocation10]
    $region25: #{generator_forward.1} parent=1 // pred_fallthru
      _
    // Predicated region
    $region26: #{generator_forward.1} parent=1 // pred_check
      _
    $region27: #{generator_forward.1} parent=1 // pred_check_branch
      %87 = sbr.rel (0) target = $region29
    $region28: #{generator_forward.1} parent=1 // pred_region
      %s89 = ssub.s32 32, 32
      %90 = vsyncadd [#allocation13], %s89
      %s92 = sshll.u32 [#allocation12], 4
      %s93 = int_to_ptr.vmem [resolvable:$true] %s92
      %95 = dma.hbm_to_vmem [thread:$0]  %s6, 32, %s93, [#allocation13]
    $region29: #{generator_forward.1} parent=1 // pred_fallthru
      _
    // Predicated region
    $region30: #{generator_forward.1} parent=1 // pred_check
      _
    $region31: #{generator_forward.1} parent=1 // pred_check_branch
      %97 = sbr.rel (0) target = $region33
    $region32: #{generator_forward.1} parent=1 // pred_region
      %s99 = ssub.s32 8192, 8192
      %100 = vsyncadd [#allocation13], %s99
      %s101 = sshll.u32 [#allocation14], 4
      %s102 = int_to_ptr.vmem [resolvable:$true] %s101
      %107 = dma.hbm_to_vmem [thread:$0]  %s7, 8192, %s102, [#allocation13], 256, 256, 16
    $region33: #{generator_forward.1} parent=1 // pred_fallthru
      _
    // Predicated region
    $region34: #{generator_forward.1} parent=1 // pred_check
      _
    $region35: #{generator_forward.1} parent=1 // pred_check_branch
      %109 = sbr.rel (0) target = $region37
    $region36: #{generator_forward.1} parent=1 // pred_region
      %s111 = ssub.s32 64, 64
      %112 = vsyncadd [#allocation16], %s111
      %s114 = sshll.u32 [#allocation15], 4
      %s115 = int_to_ptr.vmem [resolvable:$true] %s114
      %117 = dma.hbm_to_vmem [thread:$0]  %s8, 64, %s115, [#allocation16]
    $region37: #{generator_forward.1} parent=1 // pred_fallthru
      _
    // Predicated region
    $region38: #{generator_forward.1} parent=1 // pred_check
      _
    $region39: #{generator_forward.1} parent=1 // pred_check_branch
      %119 = sbr.rel (0) target = $region41
    $region40: #{generator_forward.1} parent=1 // pred_region
      %s121 = ssub.s32 64, 64
      %122 = vsyncadd [#allocation16], %s121
      %s124 = sshll.u32 [#allocation17], 4
      %s125 = int_to_ptr.vmem [resolvable:$true] %s124
      %127 = dma.hbm_to_vmem [thread:$0]  %s9, 64, %s125, [#allocation16]
    $region41: #{generator_forward.1} parent=1 // pred_fallthru
      _
    // Predicated region
    $region42: #{generator_forward.1} parent=1 // pred_check
      _
    $region43: #{generator_forward.1} parent=1 // pred_check_branch
      %129 = sbr.rel (0) target = $region45
    $region44: #{generator_forward.1} parent=1 // pred_region
      %s131 = ssub.s32 64, 64
      %132 = vsyncadd [#allocation19], %s131
      %s134 = sshll.u32 [#allocation18], 4
      %s135 = int_to_ptr.vmem [resolvable:$true] %s134
      %137 = dma.hbm_to_vmem [thread:$0]  %s10, 64, %s135, [#allocation19]
    $region45: #{generator_forward.1} parent=1 // pred_fallthru
      _
    // Predicated region
    $region46: #{generator_forward.1} parent=1 // pred_check
      _
    $region47: #{generator_forward.1} parent=1 // pred_check_branch
      %139 = sbr.rel (0) target = $region49
    $region48: #{generator_forward.1} parent=1 // pred_region
      %s141 = ssub.s32 32768, 32768
      %142 = vsyncadd [#allocation19], %s141
      %s143 = sshll.u32 [#allocation20], 4
      %s144 = int_to_ptr.vmem [resolvable:$true] %s143
      %149 = dma.hbm_to_vmem [thread:$0]  %s11, 32768, %s144, [#allocation19], 512, 512, 32
    $region49: #{generator_forward.1} parent=1 // pred_fallthru
      _
    // Predicated region
    $region50: #{generator_forward.1} parent=1 // pred_check
      _
    $region51: #{generator_forward.1} parent=1 // pred_check_branch
      %151 = sbr.rel (0) target = $region53
    $region52: #{generator_forward.1} parent=1 // pred_region
      %s153 = ssub.s32 128, 128
      %154 = vsyncadd [#allocation22], %s153
      %s156 = sshll.u32 [#allocation21], 4
      %s157 = int_to_ptr.vmem [resolvable:$true] %s156
      %159 = dma.hbm_to_vmem [thread:$0]  %s12, 128, %s157, [#allocation22]
    $region53: #{generator_forward.1} parent=1 // pred_fallthru
      _
    // Predicated region
    $region54: #{generator_forward.1} parent=1 // pred_check
      _
    $region55: #{generator_forward.1} parent=1 // pred_check_branch
      %161 = sbr.rel (0) target = $region57
    $region56: #{generator_forward.1} parent=1 // pred_region
      %s163 = ssub.s32 128, 128
      %164 = vsyncadd [#allocation22], %s163
      %s166 = sshll.u32 [#allocation23], 4
      %s167 = int_to_ptr.vmem [resolvable:$true] %s166
      %169 = dma.hbm_to_vmem [thread:$0]  %s13, 128, %s167, [#allocation22]
    $region57: #{generator_forward.1} parent=1 // pred_fallthru
      _
    // Predicated region
    $region58: #{generator_forward.1} parent=1 // pred_check
      _
    $region59: #{generator_forward.1} parent=1 // pred_check_branch
      %171 = sbr.rel (0) target = $region61
    $region60: #{generator_forward.1} parent=1 // pred_region
      %s173 = ssub.s32 128, 128
      %174 = vsyncadd [#allocation25], %s173
      %s176 = sshll.u32 [#allocation24], 4
      %s177 = int_to_ptr.vmem [resolvable:$true] %s176
      %179 = dma.hbm_to_vmem [thread:$0]  %s14, 128, %s177, [#allocation25]
    $region61: #{generator_forward.1} parent=1 // pred_fallthru
      _
    // Predicated region
    $region62: #{generator_forward.1} parent=1 // pred_check
      _
    $region63: #{generator_forward.1} parent=1 // pred_check_branch
      %181 = sbr.rel (0) target = $region65
    $region64: #{generator_forward.1} parent=1 // pred_region
      %s183 = ssub.s32 112, 112
      %184 = vsyncadd [#allocation25], %s183
      %s186 = sshll.u32 [#allocation26], 4
      %s187 = int_to_ptr.vmem [resolvable:$true] %s186
      %189 = dma.hbm_to_vmem [thread:$0]  %s16, 112, %s187, [#allocation25]
    $region65: #{generator_forward.1} parent=1 // pred_fallthru
      _
    // Predicated region
    $region66: #{generator_forward.1} parent=1 // pred_check
      _
    $region67: #{generator_forward.1} parent=1 // pred_check_branch
      %191 = sbr.rel (0) target = $region69
    $region68: #{generator_forward.1} parent=1 // pred_region
      %192 = dma.done [#allocation5], 1024
    $region69: #{generator_forward.1} parent=1 // pred_fallthru
      _
    // Predicated region
    $region70: #{generator_forward.1} parent=1 // pred_check
      _
    $region71: #{generator_forward.1} parent=1 // pred_check_branch
      %194 = sbr.rel (0) target = $region73
    $region72: #{generator_forward.1} parent=1 // pred_region
      %195 = dma.done [#allocation7], 16
    $region73: #{generator_forward.1} parent=1 // pred_fallthru
      _
    // Predicated region
    $region74: #{generator_forward.1} parent=1 // pred_check
      _
    $region75: #{generator_forward.1} parent=1 // pred_check_branch
      %197 = sbr.rel (0) target = $region77
    $region76: #{generator_forward.1} parent=1 // pred_region
      %198 = dma.done [#allocation7], 2048
    $region77: #{generator_forward.1} parent=1 // pred_fallthru
      _
    // Predicated region
    $region78: #{generator_forward.1} parent=1 // pred_check
      _
    $region79: #{generator_forward.1} parent=1 // pred_check_branch
      %200 = sbr.rel (0) target = $region81
    $region80: #{generator_forward.1} parent=1 // pred_region
      %201 = dma.done [#allocation10], 32
    $region81: #{generator_forward.1} parent=1 // pred_fallthru
      _
    // Predicated region
    $region82: #{generator_forward.1} parent=1 // pred_check
      _
    $region83: #{generator_forward.1} parent=1 // pred_check_branch
      %203 = sbr.rel (0) target = $region85
    $region84: #{generator_forward.1} parent=1 // pred_region
      %204 = dma.done [#allocation10], 32
    $region85: #{generator_forward.1} parent=1 // pred_fallthru
      _
    // Predicated region
    $region86: #{generator_forward.1} parent=1 // pred_check
      _
    $region87: #{generator_forward.1} parent=1 // pred_check_branch
      %206 = sbr.rel (0) target = $region89
    $region88: #{generator_forward.1} parent=1 // pred_region
      %207 = dma.done [#allocation13], 32
    $region89: #{generator_forward.1} parent=1 // pred_fallthru
      _
    // Predicated region
    $region90: #{generator_forward.1} parent=1 // pred_check
      _
    $region91: #{generator_forward.1} parent=1 // pred_check_branch
      %209 = sbr.rel (0) target = $region93
    $region92: #{generator_forward.1} parent=1 // pred_region
      %210 = dma.done [#allocation13], 8192
    $region93: #{generator_forward.1} parent=1 // pred_fallthru
      _
    // Predicated region
    $region94: #{generator_forward.1} parent=1 // pred_check
      _
    $region95: #{generator_forward.1} parent=1 // pred_check_branch
      %212 = sbr.rel (0) target = $region97
    $region96: #{generator_forward.1} parent=1 // pred_region
      %213 = dma.done [#allocation16], 64
    $region97: #{generator_forward.1} parent=1 // pred_fallthru
      _
    // Predicated region
    $region98: #{generator_forward.1} parent=1 // pred_check
      _
    $region99: #{generator_forward.1} parent=1 // pred_check_branch
      %215 = sbr.rel (0) target = $region101
    $region100: #{generator_forward.1} parent=1 // pred_region
      %216 = dma.done [#allocation16], 64
    $region101: #{generator_forward.1} parent=1 // pred_fallthru
      _
    // Predicated region
    $region102: #{generator_forward.1} parent=1 // pred_check
      _
    $region103: #{generator_forward.1} parent=1 // pred_check_branch
      %218 = sbr.rel (0) target = $region105
    $region104: #{generator_forward.1} parent=1 // pred_region
      %219 = dma.done [#allocation19], 64
    $region105: #{generator_forward.1} parent=1 // pred_fallthru
      _
    // Predicated region
    $region106: #{generator_forward.1} parent=1 // pred_check
      _
    $region107: #{generator_forward.1} parent=1 // pred_check_branch
      %221 = sbr.rel (0) target = $region109
    $region108: #{generator_forward.1} parent=1 // pred_region
      %222 = dma.done [#allocation19], 32768
    $region109: #{generator_forward.1} parent=1 // pred_fallthru
      _
    // Predicated region
    $region110: #{generator_forward.1} parent=1 // pred_check
      _
    $region111: #{generator_forward.1} parent=1 // pred_check_branch
      %224 = sbr.rel (0) target = $region113
    $region112: #{generator_forward.1} parent=1 // pred_region
      %225 = dma.done [#allocation22], 128
    $region113: #{generator_forward.1} parent=1 // pred_fallthru
      _
    // Predicated region
    $region114: #{generator_forward.1} parent=1 // pred_check
      _
    $region115: #{generator_forward.1} parent=1 // pred_check_branch
      %227 = sbr.rel (0) target = $region117
    $region116: #{generator_forward.1} parent=1 // pred_region
      %228 = dma.done [#allocation22], 128
    $region117: #{generator_forward.1} parent=1 // pred_fallthru
      _
    // Predicated region
    $region118: #{generator_forward.1} parent=1 // pred_check
      _
    $region119: #{generator_forward.1} parent=1 // pred_check_branch
      %230 = sbr.rel (0) target = $region121
    $region120: #{generator_forward.1} parent=1 // pred_region
      %231 = dma.done [#allocation25], 128
    $region121: #{generator_forward.1} parent=1 // pred_fallthru
      _
    // Predicated region
    $region122: #{generator_forward.1} parent=1 // pred_check
      _
    $region123: #{generator_forward.1} parent=1 // pred_check_branch
      %233 = sbr.rel (0) target = $region125
    $region124: #{generator_forward.1} parent=1 // pred_region
      %234 = dma.done [#allocation25], 112
    $region125: #{generator_forward.1} parent=1 // pred_fallthru
      _
    %s237 = sshll.u32 1, 14
    %s238 = sxor.u32 4294967295, %s237
    %s240 = sld [smem:[#allocation0]]
    %s241 = sadd.s32 2, %s240
    %s243 = sshll.u32 7, 26
    %s244 = sxor.u32 4294967295, %s243
    %s245 = sand.u32 0, %s244
    %s246 = sshll.u32 %s241, 26
    %s247 = sor.u32 %s245, %s246
    %s248 = sshll.u32 [#allocation2], 4
    %s249 = int_to_ptr.vmem [resolvable:$true] %s248
    %252 = sst [smem:[#allocation28]] 896
    %s253 = scalar_lea.smem [#allocation28], 1
    %254 = sst [smem:[%s253]] 896
    %s255 = scalar_lea.smem [#allocation28], 2
    %256 = sst [smem:[%s255]] 7
    %s257 = scalar_lea.smem [#allocation28], 3
    %258 = sst [smem:[%s257]] 64
    %s259 = scalar_lea.smem [#allocation28], 4
    %260 = sst [smem:[%s259]] 128
    %s261 = scalar_lea.smem [#allocation28], 5
    %262 = sst [smem:[%s261]] 2
    %s263 = scalar_lea.smem [#allocation28], 6
    %264 = sst [smem:[%s263]] 448
    %s265 = scalar_lea.smem [#allocation28], 7
    %266 = sst [smem:[%s265]] 64
    %s267 = scalar_lea.smem [#allocation28], 8
    %268 = sst [smem:[%s267]] 4
    %270 = dma.general %s15, 57344, %s249, [#allocation3], [#allocation27], [#allocation28], %s247, 0
    %v271 = vld [vmem:[%s0] sm:$0xff]
    %v272 = vpack.c.bf16 %v271, %v271
    %v273 = vld [vmem:[#allocation4] sm:$0xf]
    %v274 = vld [vmem:[#allocation4 + $0x4] sm:$0xf]
    %v275 = vld [vmem:[#allocation4 + $0x8] sm:$0xf]
    %v276 = vld [vmem:[#allocation4 + $0xc] sm:$0xf]
    %v277 = vld [vmem:[#allocation4 + $0x10] sm:$0xf]
    %v278 = vld [vmem:[#allocation4 + $0x14] sm:$0xf]
    %v279 = vld [vmem:[#allocation4 + $0x18] sm:$0xf]
    %v280 = vld [vmem:[#allocation4 + $0x1c] sm:$0xf]
    %v281 = vld [vmem:[#allocation4 + $0x20] sm:$0xf]
    %v282 = vld [vmem:[#allocation4 + $0x24] sm:$0xf]
    %v283 = vld [vmem:[#allocation4 + $0x28] sm:$0xf]
    %v284 = vld [vmem:[#allocation4 + $0x2c] sm:$0xf]
    %v285 = vld [vmem:[#allocation4 + $0x30] sm:$0xf]
    %v286 = vld [vmem:[#allocation4 + $0x34] sm:$0xf]
    %v287 = vld [vmem:[#allocation4 + $0x38] sm:$0xf]
    %v288 = vld [vmem:[#allocation4 + $0x3c] sm:$0xf]
    %v289 = vld [vmem:[#allocation6] sm:$0x1]
    %v290 = vunpack.c.l.bf16 %v289
    %v291 = vlaneseq
    %v292 = vshrl.u32 %v291, 7
    %v293 = vsub.s32 0, %v292
    %v294 = vrot.slane %v290, %v293
    %v311 = vunpack.c.l.b16 %v273
    %v312 = vunpack.c.l.b16 %v274
    %v313 = vunpack.c.l.b16 %v275
    %v314 = vunpack.c.l.b16 %v276
    %v315 = vunpack.c.l.b16 %v277
    %v316 = vunpack.c.l.b16 %v278
    %v317 = vunpack.c.l.b16 %v279
    %v318 = vunpack.c.l.b16 %v280
    %v319 = vunpack.c.l.b16 %v281
    %v320 = vunpack.c.l.b16 %v282
    %v321 = vunpack.c.l.b16 %v283
    %v322 = vunpack.c.l.b16 %v284
    %v323 = vunpack.c.l.b16 %v285
    %v324 = vunpack.c.l.b16 %v286
    %v325 = vunpack.c.l.b16 %v287
    %v326 = vunpack.c.l.b16 %v288
    %v327 = vpack.c.b16 %v312, %v311
    %v328 = vpack.c.b16 %v314, %v313
    %v329 = vpack.c.b16 %v316, %v315
    %v330 = vpack.c.b16 %v318, %v317
    %v331 = vpack.c.b16 %v320, %v319
    %v332 = vpack.c.b16 %v322, %v321
    %v333 = vpack.c.b16 %v324, %v323
    %v334 = vpack.c.b16 %v326, %v325
    %343 = vmatprep.subr.bf16.mxu0 0
    %344 = vmatpush1.bf16.msra.mxu0 %v327
    %345 = vmatprep.subr.bf16.mxu0 0
    %346 = vmatpush1.bf16.msra.mxu0 %v328
    %347 = vmatprep.subr.bf16.mxu0 0
    %348 = vmatpush1.bf16.msra.mxu0 %v329
    %349 = vmatprep.subr.bf16.mxu0 0
    %350 = vmatpush1.bf16.msra.mxu0 %v330
    %351 = vmatprep.subr.bf16.mxu0 0
    %352 = vmatpush1.bf16.msra.mxu0 %v331
    %353 = vmatprep.subr.bf16.mxu0 0
    %354 = vmatpush1.bf16.msra.mxu0 %v332
    %355 = vmatprep.subr.bf16.mxu0 0
    %356 = vmatpush1.bf16.msra.mxu0 %v333
    %357 = vmatprep.subr.bf16.mxu0 0
    %358 = vmatpush1.bf16.msra.mxu0 %v334
    %359 = vmatprep.subr.bf16.mxu0 0
    %360 = vmatpush1.bf16.msra.mxu0 0
    %361 = vmatprep.subr.bf16.mxu0 0
    %362 = vmatpush1.bf16.msra.mxu0 0
    %363 = vmatprep.subr.bf16.mxu0 0
    %364 = vmatpush1.bf16.msra.mxu0 0
    %365 = vmatprep.subr.bf16.mxu0 0
    %366 = vmatpush1.bf16.msra.mxu0 0
    %367 = vmatprep.subr.bf16.mxu0 0
    %368 = vmatpush1.bf16.msra.mxu0 0
    %369 = vmatprep.subr.bf16.mxu0 0
    %370 = vmatpush1.bf16.msra.mxu0 0
    %371 = vmatprep.subr.bf16.mxu0 0
    %372 = vmatpush1.bf16.msra.mxu0 0
    %373 = vmatprep.subr.bf16.mxu0 0
    %374 = vmatpush1.bf16.msra.mxu0 0
    %375 = vmatprep.mubr.bf16.mxu0 0
    %376 = vmatmul.mubr.bf16.gmra.mrb[0].mxu0 %v272
    %v377 = vpop.f32.mrb[0].mxu0
    %v378 = vadd.f32 %v294, %v377
    %v379 = vpop.f32.mrb[0].mxu0
    %v380 = vpop.f32.mrb[0].mxu0
    %v381 = vpop.f32.mrb[0].mxu0
    %382 = vdwg.mxu0
    %vm383 = vcmp.gt.f32.partialorder %v378, 0.0
    %v384 = vmul.f32 %v378, 0.2
    %v385 = vsel %vm383, %v378, %v384
    %v386 = vpack.c.bf16 %v385, %v385
    %v387 = vld [vmem:[#allocation8] sm:$0xff]
    %v388 = vld [vmem:[#allocation8 + $0x8] sm:$0xff]
    %v389 = vld [vmem:[#allocation8 + $0x10] sm:$0xff]
    %v390 = vld [vmem:[#allocation8 + $0x18] sm:$0xff]
    %v391 = vld [vmem:[#allocation8 + $0x20] sm:$0xff]
    %v392 = vld [vmem:[#allocation8 + $0x28] sm:$0xff]
    %v393 = vld [vmem:[#allocation8 + $0x30] sm:$0xff]
    %v394 = vld [vmem:[#allocation8 + $0x38] sm:$0xff]
    %v395 = vld [vmem:[#allocation8 + $0x40] sm:$0xff]
    %v396 = vld [vmem:[#allocation8 + $0x48] sm:$0xff]
    %v397 = vld [vmem:[#allocation8 + $0x50] sm:$0xff]
    %v398 = vld [vmem:[#allocation8 + $0x58] sm:$0xff]
    %v399 = vld [vmem:[#allocation8 + $0x60] sm:$0xff]
    %v400 = vld [vmem:[#allocation8 + $0x68] sm:$0xff]
    %v401 = vld [vmem:[#allocation8 + $0x70] sm:$0xff]
    %v402 = vld [vmem:[#allocation8 + $0x78] sm:$0xff]
    %v403 = vld [vmem:[#allocation9] sm:$0x3]
    %v404 = vunpack.c.l.bf16 %v403
    %v406 = vlaneseq
    %v407 = vshrl.u32 %v406, 7
    %v408 = vsub.s32 0, %v407
    %v409 = vrot.slane %v404, %v408
    %v410 = vlaneseq
    %v411 = vshrl.u32 %v410, 7
    %v412 = vsub.s32 2, %v411
    %v413 = vrot.slane %v404, %v412
    %v416 = vlaneseq
    %v417 = vshrl.u32 %v416, 7
    %v418 = vsub.s32 0, %v417
    %v419 = vrot.slane %v409, %v418
    %v420 = vlaneseq
    %v421 = vshrl.u32 %v420, 7
    %v422 = vsub.s32 0, %v421
    %v423 = vrot.slane %v413, %v422
    %v440 = vunpack.c.l.b16 %v387
    %v441 = vunpack.c.h.b16 %v387
    %v442 = vunpack.c.l.b16 %v388
    %v443 = vunpack.c.h.b16 %v388
    %v444 = vunpack.c.l.b16 %v389
    %v445 = vunpack.c.h.b16 %v389
    %v446 = vunpack.c.l.b16 %v390
    %v447 = vunpack.c.h.b16 %v390
    %v448 = vunpack.c.l.b16 %v391
    %v449 = vunpack.c.h.b16 %v391
    %v450 = vunpack.c.l.b16 %v392
    %v451 = vunpack.c.h.b16 %v392
    %v452 = vunpack.c.l.b16 %v393
    %v453 = vunpack.c.h.b16 %v393
    %v454 = vunpack.c.l.b16 %v394
    %v455 = vunpack.c.h.b16 %v394
    %v456 = vunpack.c.l.b16 %v395
    %v457 = vunpack.c.h.b16 %v395
    %v458 = vunpack.c.l.b16 %v396
    %v459 = vunpack.c.h.b16 %v396
    %v460 = vunpack.c.l.b16 %v397
    %v461 = vunpack.c.h.b16 %v397
    %v462 = vunpack.c.l.b16 %v398
    %v463 = vunpack.c.h.b16 %v398
    %v464 = vunpack.c.l.b16 %v399
    %v465 = vunpack.c.h.b16 %v399
    %v466 = vunpack.c.l.b16 %v400
    %v467 = vunpack.c.h.b16 %v400
    %v468 = vunpack.c.l.b16 %v401
    %v469 = vunpack.c.h.b16 %v401
    %v470 = vunpack.c.l.b16 %v402
    %v471 = vunpack.c.h.b16 %v402
    %v472 = vpack.c.b16 %v442, %v440
    %v473 = vpack.c.b16 %v443, %v441
    %v474 = vpack.c.b16 %v446, %v444
    %v475 = vpack.c.b16 %v447, %v445
    %v476 = vpack.c.b16 %v450, %v448
    %v477 = vpack.c.b16 %v451, %v449
    %v478 = vpack.c.b16 %v454, %v452
    %v479 = vpack.c.b16 %v455, %v453
    %v480 = vpack.c.b16 %v458, %v456
    %v481 = vpack.c.b16 %v459, %v457
    %v482 = vpack.c.b16 %v462, %v460
    %v483 = vpack.c.b16 %v463, %v461
    %v484 = vpack.c.b16 %v466, %v464
    %v485 = vpack.c.b16 %v467, %v465
    %v486 = vpack.c.b16 %v470, %v468
    %v487 = vpack.c.b16 %v471, %v469
    %504 = vmatprep.subr.bf16.mxu0 %v473
    %505 = vmatpush1.bf16.msra.mxu0 %v472
    %506 = vmatprep.subr.bf16.mxu0 %v475
    %507 = vmatpush1.bf16.msra.mxu0 %v474
    %508 = vmatprep.subr.bf16.mxu0 %v477
    %509 = vmatpush1.bf16.msra.mxu0 %v476
    %510 = vmatprep.subr.bf16.mxu0 %v479
    %511 = vmatpush1.bf16.msra.mxu0 %v478
    %512 = vmatprep.subr.bf16.mxu0 %v481
    %513 = vmatpush1.bf16.msra.mxu0 %v480
    %514 = vmatprep.subr.bf16.mxu0 %v483
    %515 = vmatpush1.bf16.msra.mxu0 %v482
    %516 = vmatprep.subr.bf16.mxu0 %v485
    %517 = vmatpush1.bf16.msra.mxu0 %v484
    %518 = vmatprep.subr.bf16.mxu0 %v487
    %519 = vmatpush1.bf16.msra.mxu0 %v486
    %520 = vmatprep.subr.bf16.mxu0 0
    %521 = vmatpush1.bf16.msra.mxu0 0
    %522 = vmatprep.subr.bf16.mxu0 0
    %523 = vmatpush1.bf16.msra.mxu0 0
    %524 = vmatprep.subr.bf16.mxu0 0
    %525 = vmatpush1.bf16.msra.mxu0 0
    %526 = vmatprep.subr.bf16.mxu0 0
    %527 = vmatpush1.bf16.msra.mxu0 0
    %528 = vmatprep.subr.bf16.mxu0 0
    %529 = vmatpush1.bf16.msra.mxu0 0
    %530 = vmatprep.subr.bf16.mxu0 0
    %531 = vmatpush1.bf16.msra.mxu0 0
    %532 = vmatprep.subr.bf16.mxu0 0
    %533 = vmatpush1.bf16.msra.mxu0 0
    %534 = vmatprep.subr.bf16.mxu0 0
    %535 = vmatpush1.bf16.msra.mxu0 0
    %536 = vmatprep.mubr.bf16.mxu0 0
    %537 = vmatmul.mubr.bf16.gmra.mrb[0].mxu0 %v386
    %v538 = vpop.f32.mrb[0].mxu0
    %v539 = vadd.f32 %v419, %v538
    %v540 = vpop.f32.mrb[0].mxu0
    %v541 = vadd.f32 %v423, %v540
    %v542 = vpop.f32.mrb[0].mxu0
    %v543 = vpop.f32.mrb[0].mxu0
    %544 = vdwg.mxu0
    %v545 = vrot.slane %v539, 4
    %v546 = vadd.f32 %v539, %v545
    %v547 = vrot.slane %v546, 2
    %v548 = vadd.f32 %v546, %v547
    %v549 = vrot.slane %v548, 1
    %v550 = vadd.f32 %v548, %v549
    %v551 = vrot.slane %v541, 4
    %v552 = vadd.f32 %v541, %v551
    %v553 = vrot.slane %v552, 2
    %v554 = vadd.f32 %v552, %v553
    %v555 = vrot.slane %v554, 1
    %v556 = vadd.f32 %v554, %v555
    %v557 = vrcp.pop 8.0
    %v558 = vmul.f32 %v550, %v557
    %v559 = vmul.f32 %v556, %v557
    %v560 = vmul.f32 %v539, %v539
    %v561 = vmul.f32 %v541, %v541
    %v562 = vrot.slane %v560, 4
    %v563 = vadd.f32 %v560, %v562
    %v564 = vrot.slane %v563, 2
    %v565 = vadd.f32 %v563, %v564
    %v566 = vrot.slane %v565, 1
    %v567 = vadd.f32 %v565, %v566
    %v568 = vrot.slane %v561, 4
    %v569 = vadd.f32 %v561, %v568
    %v570 = vrot.slane %v569, 2
    %v571 = vadd.f32 %v569, %v570
    %v572 = vrot.slane %v571, 1
    %v573 = vadd.f32 %v571, %v572
    %v574 = vmul.f32 %v567, %v557
    %v575 = vmul.f32 %v573, %v557
    %v576 = vmul.f32 %v558, %v558
    %v577 = vmul.f32 %v559, %v559
    %v578 = vsub.f32 %v574, %v576
    %v579 = vsub.f32 %v575, %v577
    %v580 = vld [vmem:[#allocation11] sm:$0x3]
    %v581 = vadd.f32 %v578, 1e-05
    %v582 = vadd.f32 %v579, 1e-05
    %v583 = vrsqrt.pop %v581
    %v584 = vrsqrt.pop %v582
    %v587 = vcombine.low %v583, %v584
    %v589 = vunpack.c.l.s4 1966171168
    %v590 = vunpack.c.0.s8 %v589
    %v591 = vlaneseq
    %v592 = vshrl.u32 %v591, 7
    %v593 = vsub.s32 %v590, %v592
    %v594 = vrot.slane %v587, %v593
    %v596 = vunpack.c.l.s4 1966171168
    %v597 = vunpack.c.0.s8 %v596
    %v598 = vlaneseq
    %v599 = vshrl.u32 %v598, 7
    %v600 = vsub.s32 %v597, %v599
    %v601 = vrot.slane %v594, %v600
    %v603 = vmul.f32 %v580, %v601
    %v604 = vld [vmem:[#allocation12] sm:$0x3]
    %v606 = vlaneseq
    %v607 = vshrl.u32 %v606, 7
    %v608 = vsub.s32 0, %v607
    %v609 = vrot.slane %v603, %v608
    %v610 = vlaneseq
    %v611 = vshrl.u32 %v610, 7
    %v612 = vsub.s32 1, %v611
    %v613 = vrot.slane %v603, %v612
    %v616 = vmul.f32 %v558, %v609
    %v617 = vmul.f32 %v559, %v613
    %v620 = vcombine.low %v616, %v617
    %v622 = vunpack.c.l.s4 1966171168
    %v623 = vunpack.c.0.s8 %v622
    %v624 = vlaneseq
    %v625 = vshrl.u32 %v624, 7
    %v626 = vsub.s32 %v623, %v625
    %v627 = vrot.slane %v620, %v626
    %v629 = vunpack.c.l.s4 1966171168
    %v630 = vunpack.c.0.s8 %v629
    %v631 = vlaneseq
    %v632 = vshrl.u32 %v631, 7
    %v633 = vsub.s32 %v630, %v632
    %v634 = vrot.slane %v627, %v633
    %v636 = vsub.f32 %v604, %v634
    %v637 = vmul.f32 %v539, %v609
    %v638 = vmul.f32 %v541, %v613
    %v640 = vlaneseq
    %v641 = vshrl.u32 %v640, 7
    %v642 = vsub.s32 0, %v641
    %v643 = vrot.slane %v636, %v642
    %v644 = vlaneseq
    %v645 = vshrl.u32 %v644, 7
    %v646 = vsub.s32 1, %v645
    %v647 = vrot.slane %v636, %v646
    %v650 = vadd.f32 %v637, %v643
    %v651 = vadd.f32 %v638, %v647
    %vm652 = vcmp.gt.f32.partialorder %v650, 0.0
    %vm653 = vcmp.gt.f32.partialorder %v651, 0.0
    %v654 = vmul.f32 %v650, 0.2
    %v655 = vmul.f32 %v651, 0.2
    %v656 = vsel %vm652, %v650, %v654
    %v657 = vsel %vm653, %v651, %v655
    %v658 = vpack.c.bf16 %v656, %v656
    %v659 = vpack.c.bf16 %v657, %v657
    %v660 = vld [vmem:[#allocation14] sm:$0xff]
    %v661 = vld [vmem:[#allocation14 + $0x8] sm:$0xff]
    %v662 = vld [vmem:[#allocation14 + $0x10] sm:$0xff]
    %v663 = vld [vmem:[#allocation14 + $0x18] sm:$0xff]
    %v664 = vld [vmem:[#allocation14 + $0x20] sm:$0xff]
    %v665 = vld [vmem:[#allocation14 + $0x28] sm:$0xff]
    %v666 = vld [vmem:[#allocation14 + $0x30] sm:$0xff]
    %v667 = vld [vmem:[#allocation14 + $0x38] sm:$0xff]
    %v668 = vld [vmem:[#allocation14 + $0x40] sm:$0xff]
    %v669 = vld [vmem:[#allocation14 + $0x48] sm:$0xff]
    %v670 = vld [vmem:[#allocation14 + $0x50] sm:$0xff]
    %v671 = vld [vmem:[#allocation14 + $0x58] sm:$0xff]
    %v672 = vld [vmem:[#allocation14 + $0x60] sm:$0xff]
    %v673 = vld [vmem:[#allocation14 + $0x68] sm:$0xff]
    %v674 = vld [vmem:[#allocation14 + $0x70] sm:$0xff]
    %v675 = vld [vmem:[#allocation14 + $0x78] sm:$0xff]
    %v676 = vld [vmem:[#allocation14 + $0x80] sm:$0xff]
    %v677 = vld [vmem:[#allocation14 + $0x88] sm:$0xff]
    %v678 = vld [vmem:[#allocation14 + $0x90] sm:$0xff]
    %v679 = vld [vmem:[#allocation14 + $0x98] sm:$0xff]
    %v680 = vld [vmem:[#allocation14 + $0xa0] sm:$0xff]
    %v681 = vld [vmem:[#allocation14 + $0xa8] sm:$0xff]
    %v682 = vld [vmem:[#allocation14 + $0xb0] sm:$0xff]
    %v683 = vld [vmem:[#allocation14 + $0xb8] sm:$0xff]
    %v684 = vld [vmem:[#allocation14 + $0xc0] sm:$0xff]
    %v685 = vld [vmem:[#allocation14 + $0xc8] sm:$0xff]
    %v686 = vld [vmem:[#allocation14 + $0xd0] sm:$0xff]
    %v687 = vld [vmem:[#allocation14 + $0xd8] sm:$0xff]
    %v688 = vld [vmem:[#allocation14 + $0xe0] sm:$0xff]
    %v689 = vld [vmem:[#allocation14 + $0xe8] sm:$0xff]
    %v690 = vld [vmem:[#allocation14 + $0xf0] sm:$0xff]
    %v691 = vld [vmem:[#allocation14 + $0xf8] sm:$0xff]
    %v692 = vld [vmem:[#allocation14 + $0x100] sm:$0xff]
    %v693 = vld [vmem:[#allocation14 + $0x108] sm:$0xff]
    %v694 = vld [vmem:[#allocation14 + $0x110] sm:$0xff]
    %v695 = vld [vmem:[#allocation14 + $0x118] sm:$0xff]
    %v696 = vld [vmem:[#allocation14 + $0x120] sm:$0xff]
    %v697 = vld [vmem:[#allocation14 + $0x128] sm:$0xff]
    %v698 = vld [vmem:[#allocation14 + $0x130] sm:$0xff]
    %v699 = vld [vmem:[#allocation14 + $0x138] sm:$0xff]
    %v700 = vld [vmem:[#allocation14 + $0x140] sm:$0xff]
    %v701 = vld [vmem:[#allocation14 + $0x148] sm:$0xff]
    %v702 = vld [vmem:[#allocation14 + $0x150] sm:$0xff]
    %v703 = vld [vmem:[#allocation14 + $0x158] sm:$0xff]
    %v704 = vld [vmem:[#allocation14 + $0x160] sm:$0xff]
    %v705 = vld [vmem:[#allocation14 + $0x168] sm:$0xff]
    %v706 = vld [vmem:[#allocation14 + $0x170] sm:$0xff]
    %v707 = vld [vmem:[#allocation14 + $0x178] sm:$0xff]
    %v708 = vld [vmem:[#allocation14 + $0x180] sm:$0xff]
    %v709 = vld [vmem:[#allocation14 + $0x188] sm:$0xff]
    %v710 = vld [vmem:[#allocation14 + $0x190] sm:$0xff]
    %v711 = vld [vmem:[#allocation14 + $0x198] sm:$0xff]
    %v712 = vld [vmem:[#allocation14 + $0x1a0] sm:$0xff]
    %v713 = vld [vmem:[#allocation14 + $0x1a8] sm:$0xff]
    %v714 = vld [vmem:[#allocation14 + $0x1b0] sm:$0xff]
    %v715 = vld [vmem:[#allocation14 + $0x1b8] sm:$0xff]
    %v716 = vld [vmem:[#allocation14 + $0x1c0] sm:$0xff]
    %v717 = vld [vmem:[#allocation14 + $0x1c8] sm:$0xff]
    %v718 = vld [vmem:[#allocation14 + $0x1d0] sm:$0xff]
    %v719 = vld [vmem:[#allocation14 + $0x1d8] sm:$0xff]
    %v720 = vld [vmem:[#allocation14 + $0x1e0] sm:$0xff]
    %v721 = vld [vmem:[#allocation14 + $0x1e8] sm:$0xff]
    %v722 = vld [vmem:[#allocation14 + $0x1f0] sm:$0xff]
    %v723 = vld [vmem:[#allocation14 + $0x1f8] sm:$0xff]
    %v724 = vld [vmem:[#allocation15] sm:$0xf]
    %v725 = vunpack.c.l.bf16 %v724
    %v727 = vlaneseq
    %v728 = vshrl.u32 %v727, 7
    %v729 = vsub.s32 0, %v728
    %v730 = vrot.slane %v725, %v729
    %v731 = vlaneseq
    %v732 = vshrl.u32 %v731, 7
    %v733 = vsub.s32 2, %v732
    %v734 = vrot.slane %v725, %v733
    %v735 = vlaneseq
    %v736 = vshrl.u32 %v735, 7
    %v737 = vsub.s32 4, %v736
    %v738 = vrot.slane %v725, %v737
    %v739 = vlaneseq
    %v740 = vshrl.u32 %v739, 7
    %v741 = vsub.s32 6, %v740
    %v742 = vrot.slane %v725, %v741
    %v747 = vlaneseq
    %v748 = vshrl.u32 %v747, 7
    %v749 = vsub.s32 0, %v748
    %v750 = vrot.slane %v730, %v749
    %v751 = vlaneseq
    %v752 = vshrl.u32 %v751, 7
    %v753 = vsub.s32 0, %v752
    %v754 = vrot.slane %v734, %v753
    %v755 = vlaneseq
    %v756 = vshrl.u32 %v755, 7
    %v757 = vsub.s32 0, %v756
    %v758 = vrot.slane %v738, %v757
    %v759 = vlaneseq
    %v760 = vshrl.u32 %v759, 7
    %v761 = vsub.s32 0, %v760
    %v762 = vrot.slane %v742, %v761
    %v827 = vunpack.c.l.b16 %v660
    %v828 = vunpack.c.h.b16 %v660
    %v829 = vunpack.c.l.b16 %v661
    %v830 = vunpack.c.h.b16 %v661
    %v831 = vunpack.c.l.b16 %v662
    %v832 = vunpack.c.h.b16 %v662
    %v833 = vunpack.c.l.b16 %v663
    %v834 = vunpack.c.h.b16 %v663
    %v835 = vunpack.c.l.b16 %v664
    %v836 = vunpack.c.h.b16 %v664
    %v837 = vunpack.c.l.b16 %v665
    %v838 = vunpack.c.h.b16 %v665
    %v839 = vunpack.c.l.b16 %v666
    %v840 = vunpack.c.h.b16 %v666
    %v841 = vunpack.c.l.b16 %v667
    %v842 = vunpack.c.h.b16 %v667
    %v843 = vunpack.c.l.b16 %v668
    %v844 = vunpack.c.h.b16 %v668
    %v845 = vunpack.c.l.b16 %v669
    %v846 = vunpack.c.h.b16 %v669
    %v847 = vunpack.c.l.b16 %v670
    %v848 = vunpack.c.h.b16 %v670
    %v849 = vunpack.c.l.b16 %v671
    %v850 = vunpack.c.h.b16 %v671
    %v851 = vunpack.c.l.b16 %v672
    %v852 = vunpack.c.h.b16 %v672
    %v853 = vunpack.c.l.b16 %v673
    %v854 = vunpack.c.h.b16 %v673
    %v855 = vunpack.c.l.b16 %v674
    %v856 = vunpack.c.h.b16 %v674
    %v857 = vunpack.c.l.b16 %v675
    %v858 = vunpack.c.h.b16 %v675
    %v859 = vunpack.c.l.b16 %v676
    %v860 = vunpack.c.h.b16 %v676
    %v861 = vunpack.c.l.b16 %v677
    %v862 = vunpack.c.h.b16 %v677
    %v863 = vunpack.c.l.b16 %v678
    %v864 = vunpack.c.h.b16 %v678
    %v865 = vunpack.c.l.b16 %v679
    %v866 = vunpack.c.h.b16 %v679
    %v867 = vunpack.c.l.b16 %v680
    %v868 = vunpack.c.h.b16 %v680
    %v869 = vunpack.c.l.b16 %v681
    %v870 = vunpack.c.h.b16 %v681
    %v871 = vunpack.c.l.b16 %v682
    %v872 = vunpack.c.h.b16 %v682
    %v873 = vunpack.c.l.b16 %v683
    %v874 = vunpack.c.h.b16 %v683
    %v875 = vunpack.c.l.b16 %v684
    %v876 = vunpack.c.h.b16 %v684
    %v877 = vunpack.c.l.b16 %v685
    %v878 = vunpack.c.h.b16 %v685
    %v879 = vunpack.c.l.b16 %v686
    %v880 = vunpack.c.h.b16 %v686
    %v881 = vunpack.c.l.b16 %v687
    %v882 = vunpack.c.h.b16 %v687
    %v883 = vunpack.c.l.b16 %v688
    %v884 = vunpack.c.h.b16 %v688
    %v885 = vunpack.c.l.b16 %v689
    %v886 = vunpack.c.h.b16 %v689
    %v887 = vunpack.c.l.b16 %v690
    %v888 = vunpack.c.h.b16 %v690
    %v889 = vunpack.c.l.b16 %v691
    %v890 = vunpack.c.h.b16 %v691
    %v891 = vunpack.c.l.b16 %v692
    %v892 = vunpack.c.h.b16 %v692
    %v893 = vunpack.c.l.b16 %v693
    %v894 = vunpack.c.h.b16 %v693
    %v895 = vunpack.c.l.b16 %v694
    %v896 = vunpack.c.h.b16 %v694
    %v897 = vunpack.c.l.b16 %v695
    %v898 = vunpack.c.h.b16 %v695
    %v899 = vunpack.c.l.b16 %v696
    %v900 = vunpack.c.h.b16 %v696
    %v901 = vunpack.c.l.b16 %v697
    %v902 = vunpack.c.h.b16 %v697
    %v903 = vunpack.c.l.b16 %v698
    %v904 = vunpack.c.h.b16 %v698
    %v905 = vunpack.c.l.b16 %v699
    %v906 = vunpack.c.h.b16 %v699
    %v907 = vunpack.c.l.b16 %v700
    %v908 = vunpack.c.h.b16 %v700
    %v909 = vunpack.c.l.b16 %v701
    %v910 = vunpack.c.h.b16 %v701
    %v911 = vunpack.c.l.b16 %v702
    %v912 = vunpack.c.h.b16 %v702
    %v913 = vunpack.c.l.b16 %v703
    %v914 = vunpack.c.h.b16 %v703
    %v915 = vunpack.c.l.b16 %v704
    %v916 = vunpack.c.h.b16 %v704
    %v917 = vunpack.c.l.b16 %v705
    %v918 = vunpack.c.h.b16 %v705
    %v919 = vunpack.c.l.b16 %v706
    %v920 = vunpack.c.h.b16 %v706
    %v921 = vunpack.c.l.b16 %v707
    %v922 = vunpack.c.h.b16 %v707
    %v923 = vunpack.c.l.b16 %v708
    %v924 = vunpack.c.h.b16 %v708
    %v925 = vunpack.c.l.b16 %v709
    %v926 = vunpack.c.h.b16 %v709
    %v927 = vunpack.c.l.b16 %v710
    %v928 = vunpack.c.h.b16 %v710
    %v929 = vunpack.c.l.b16 %v711
    %v930 = vunpack.c.h.b16 %v711
    %v931 = vunpack.c.l.b16 %v712
    %v932 = vunpack.c.h.b16 %v712
    %v933 = vunpack.c.l.b16 %v713
    %v934 = vunpack.c.h.b16 %v713
    %v935 = vunpack.c.l.b16 %v714
    %v936 = vunpack.c.h.b16 %v714
    %v937 = vunpack.c.l.b16 %v715
    %v938 = vunpack.c.h.b16 %v715
    %v939 = vunpack.c.l.b16 %v716
    %v940 = vunpack.c.h.b16 %v716
    %v941 = vunpack.c.l.b16 %v717
    %v942 = vunpack.c.h.b16 %v717
    %v943 = vunpack.c.l.b16 %v718
    %v944 = vunpack.c.h.b16 %v718
    %v945 = vunpack.c.l.b16 %v719
    %v946 = vunpack.c.h.b16 %v719
    %v947 = vunpack.c.l.b16 %v720
    %v948 = vunpack.c.h.b16 %v720
    %v949 = vunpack.c.l.b16 %v721
    %v950 = vunpack.c.h.b16 %v721
    %v951 = vunpack.c.l.b16 %v722
    %v952 = vunpack.c.h.b16 %v722
    %v953 = vunpack.c.l.b16 %v723
    %v954 = vunpack.c.h.b16 %v723
    %v955 = vpack.c.b16 %v831, %v827
    %v956 = vpack.c.b16 %v832, %v828
    %v957 = vpack.c.b16 %v833, %v829
    %v958 = vpack.c.b16 %v834, %v830
    %v959 = vpack.c.b16 %v839, %v835
    %v960 = vpack.c.b16 %v840, %v836
    %v961 = vpack.c.b16 %v841, %v837
    %v962 = vpack.c.b16 %v842, %v838
    %v963 = vpack.c.b16 %v847, %v843
    %v964 = vpack.c.b16 %v848, %v844
    %v965 = vpack.c.b16 %v849, %v845
    %v966 = vpack.c.b16 %v850, %v846
    %v967 = vpack.c.b16 %v855, %v851
    %v968 = vpack.c.b16 %v856, %v852
    %v969 = vpack.c.b16 %v857, %v853
    %v970 = vpack.c.b16 %v858, %v854
    %v971 = vpack.c.b16 %v863, %v859
    %v972 = vpack.c.b16 %v864, %v860
    %v973 = vpack.c.b16 %v865, %v861
    %v974 = vpack.c.b16 %v866, %v862
    %v975 = vpack.c.b16 %v871, %v867
    %v976 = vpack.c.b16 %v872, %v868
    %v977 = vpack.c.b16 %v873, %v869
    %v978 = vpack.c.b16 %v874, %v870
    %v979 = vpack.c.b16 %v879, %v875
    %v980 = vpack.c.b16 %v880, %v876
    %v981 = vpack.c.b16 %v881, %v877
    %v982 = vpack.c.b16 %v882, %v878
    %v983 = vpack.c.b16 %v887, %v883
    %v984 = vpack.c.b16 %v888, %v884
    %v985 = vpack.c.b16 %v889, %v885
    %v986 = vpack.c.b16 %v890, %v886
    %v987 = vpack.c.b16 %v895, %v891
    %v988 = vpack.c.b16 %v896, %v892
    %v989 = vpack.c.b16 %v897, %v893
    %v990 = vpack.c.b16 %v898, %v894
    %v991 = vpack.c.b16 %v903, %v899
    %v992 = vpack.c.b16 %v904, %v900
    %v993 = vpack.c.b16 %v905, %v901
    %v994 = vpack.c.b16 %v906, %v902
    %v995 = vpack.c.b16 %v911, %v907
    %v996 = vpack.c.b16 %v912, %v908
    %v997 = vpack.c.b16 %v913, %v909
    %v998 = vpack.c.b16 %v914, %v910
    %v999 = vpack.c.b16 %v919, %v915
    %v1000 = vpack.c.b16 %v920, %v916
    %v1001 = vpack.c.b16 %v921, %v917
    %v1002 = vpack.c.b16 %v922, %v918
    %v1003 = vpack.c.b16 %v927, %v923
    %v1004 = vpack.c.b16 %v928, %v924
    %v1005 = vpack.c.b16 %v929, %v925
    %v1006 = vpack.c.b16 %v930, %v926
    %v1007 = vpack.c.b16 %v935, %v931
    %v1008 = vpack.c.b16 %v936, %v932
    %v1009 = vpack.c.b16 %v937, %v933
    %v1010 = vpack.c.b16 %v938, %v934
    %v1011 = vpack.c.b16 %v943, %v939
    %v1012 = vpack.c.b16 %v944, %v940
    %v1013 = vpack.c.b16 %v945, %v941
    %v1014 = vpack.c.b16 %v946, %v942
    %v1015 = vpack.c.b16 %v951, %v947
    %v1016 = vpack.c.b16 %v952, %v948
    %v1017 = vpack.c.b16 %v953, %v949
    %v1018 = vpack.c.b16 %v954, %v950
    %1083 = vmatprep.subr.bf16.mxu0 %v956
    %1084 = vmatpush1.bf16.msra.mxu0 %v955
    %1085 = vmatprep.subr.bf16.mxu0 %v960
    %1086 = vmatpush1.bf16.msra.mxu0 %v959
    %1087 = vmatprep.subr.bf16.mxu0 %v964
    %1088 = vmatpush1.bf16.msra.mxu0 %v963
    %1089 = vmatprep.subr.bf16.mxu0 %v968
    %1090 = vmatpush1.bf16.msra.mxu0 %v967
    %1091 = vmatprep.subr.bf16.mxu0 %v972
    %1092 = vmatpush1.bf16.msra.mxu0 %v971
    %1093 = vmatprep.subr.bf16.mxu0 %v976
    %1094 = vmatpush1.bf16.msra.mxu0 %v975
    %1095 = vmatprep.subr.bf16.mxu0 %v980
    %1096 = vmatpush1.bf16.msra.mxu0 %v979
    %1097 = vmatprep.subr.bf16.mxu0 %v984
    %1098 = vmatpush1.bf16.msra.mxu0 %v983
    %1099 = vmatprep.subr.bf16.mxu0 %v988
    %1100 = vmatpush1.bf16.msra.mxu0 %v987
    %1101 = vmatprep.subr.bf16.mxu0 %v992
    %1102 = vmatpush1.bf16.msra.mxu0 %v991
    %1103 = vmatprep.subr.bf16.mxu0 %v996
    %1104 = vmatpush1.bf16.msra.mxu0 %v995
    %1105 = vmatprep.subr.bf16.mxu0 %v1000
    %1106 = vmatpush1.bf16.msra.mxu0 %v999
    %1107 = vmatprep.subr.bf16.mxu0 %v1004
    %1108 = vmatpush1.bf16.msra.mxu0 %v1003
    %1109 = vmatprep.subr.bf16.mxu0 %v1008
    %1110 = vmatpush1.bf16.msra.mxu0 %v1007
    %1111 = vmatprep.subr.bf16.mxu0 %v1012
    %1112 = vmatpush1.bf16.msra.mxu0 %v1011
    %1113 = vmatprep.subr.bf16.mxu0 %v1016
    %1114 = vmatpush1.bf16.msra.mxu0 %v1015
    %1115 = vmatprep.mubr.bf16.mxu0 %v659
    %1116 = vmatmul.mubr.bf16.gmra.mrb[0].mxu0 %v658
    %v1117 = vpop.f32.mrb[0].mxu0
    %v1118 = vadd.f32 %v750, %v1117
    %v1119 = vpop.f32.mrb[0].mxu0
    %v1120 = vadd.f32 %v754, %v1119
    %v1121 = vpop.f32.mrb[0].mxu0
    %v1122 = vpop.f32.mrb[0].mxu0
    %1123 = vdwg.mxu0
    %1124 = vmatprep.subr.bf16.mxu0 %v958
    %1125 = vmatpush1.bf16.msra.mxu0 %v957
    %1126 = vmatprep.subr.bf16.mxu0 %v962
    %1127 = vmatpush1.bf16.msra.mxu0 %v961
    %1128 = vmatprep.subr.bf16.mxu0 %v966
    %1129 = vmatpush1.bf16.msra.mxu0 %v965
    %1130 = vmatprep.subr.bf16.mxu0 %v970
    %1131 = vmatpush1.bf16.msra.mxu0 %v969
    %1132 = vmatprep.subr.bf16.mxu0 %v974
    %1133 = vmatpush1.bf16.msra.mxu0 %v973
    %1134 = vmatprep.subr.bf16.mxu0 %v978
    %1135 = vmatpush1.bf16.msra.mxu0 %v977
    %1136 = vmatprep.subr.bf16.mxu0 %v982
    %1137 = vmatpush1.bf16.msra.mxu0 %v981
    %1138 = vmatprep.subr.bf16.mxu0 %v986
    %1139 = vmatpush1.bf16.msra.mxu0 %v985
    %1140 = vmatprep.subr.bf16.mxu0 %v990
    %1141 = vmatpush1.bf16.msra.mxu0 %v989
    %1142 = vmatprep.subr.bf16.mxu0 %v994
    %1143 = vmatpush1.bf16.msra.mxu0 %v993
    %1144 = vmatprep.subr.bf16.mxu0 %v998
    %1145 = vmatpush1.bf16.msra.mxu0 %v997
    %1146 = vmatprep.subr.bf16.mxu0 %v1002
    %1147 = vmatpush1.bf16.msra.mxu0 %v1001
    %1148 = vmatprep.subr.bf16.mxu0 %v1006
    %1149 = vmatpush1.bf16.msra.mxu0 %v1005
    %1150 = vmatprep.subr.bf16.mxu0 %v1010
    %1151 = vmatpush1.bf16.msra.mxu0 %v1009
    %1152 = vmatprep.subr.bf16.mxu0 %v1014
    %1153 = vmatpush1.bf16.msra.mxu0 %v1013
    %1154 = vmatprep.subr.bf16.mxu0 %v1018
    %1155 = vmatpush1.bf16.msra.mxu0 %v1017
    %1156 = vmatprep.mubr.bf16.mxu0 %v659
    %1157 = vmatmul.mubr.bf16.gmra.mrb[0].mxu0 %v658
    %v1158 = vpop.f32.mrb[0].mxu0
    %v1159 = vadd.f32 %v758, %v1158
    %v1160 = vpop.f32.mrb[0].mxu0
    %v1161 = vadd.f32 %v762, %v1160
    %v1162 = vpop.f32.mrb[0].mxu0
    %v1163 = vpop.f32.mrb[0].mxu0
    %1164 = vdwg.mxu0
    %v1165 = vrot.slane %v1118, 4
    %v1166 = vadd.f32 %v1118, %v1165
    %v1167 = vrot.slane %v1166, 2
    %v1168 = vadd.f32 %v1166, %v1167
    %v1169 = vrot.slane %v1168, 1
    %v1170 = vadd.f32 %v1168, %v1169
    %v1171 = vrot.slane %v1120, 4
    %v1172 = vadd.f32 %v1120, %v1171
    %v1173 = vrot.slane %v1172, 2
    %v1174 = vadd.f32 %v1172, %v1173
    %v1175 = vrot.slane %v1174, 1
    %v1176 = vadd.f32 %v1174, %v1175
    %v1177 = vrot.slane %v1159, 4
    %v1178 = vadd.f32 %v1159, %v1177
    %v1179 = vrot.slane %v1178, 2
    %v1180 = vadd.f32 %v1178, %v1179
    %v1181 = vrot.slane %v1180, 1
    %v1182 = vadd.f32 %v1180, %v1181
    %v1183 = vrot.slane %v1161, 4
    %v1184 = vadd.f32 %v1161, %v1183
    %v1185 = vrot.slane %v1184, 2
    %v1186 = vadd.f32 %v1184, %v1185
    %v1187 = vrot.slane %v1186, 1
    %v1188 = vadd.f32 %v1186, %v1187
    %v1189 = vmul.f32 %v1170, %v557
    %v1190 = vmul.f32 %v1176, %v557
    %v1191 = vmul.f32 %v1182, %v557
    %v1192 = vmul.f32 %v1188, %v557
    %v1193 = vmul.f32 %v1118, %v1118
    %v1194 = vmul.f32 %v1120, %v1120
    %v1195 = vmul.f32 %v1159, %v1159
    %v1196 = vmul.f32 %v1161, %v1161
    %v1197 = vrot.slane %v1193, 4
    %v1198 = vadd.f32 %v1193, %v1197
    %v1199 = vrot.slane %v1198, 2
    %v1200 = vadd.f32 %v1198, %v1199
    %v1201 = vrot.slane %v1200, 1
    %v1202 = vadd.f32 %v1200, %v1201
    %v1203 = vrot.slane %v1194, 4
    %v1204 = vadd.f32 %v1194, %v1203
    %v1205 = vrot.slane %v1204, 2
    %v1206 = vadd.f32 %v1204, %v1205
    %v1207 = vrot.slane %v1206, 1
    %v1208 = vadd.f32 %v1206, %v1207
    %v1209 = vrot.slane %v1195, 4
    %v1210 = vadd.f32 %v1195, %v1209
    %v1211 = vrot.slane %v1210, 2
    %v1212 = vadd.f32 %v1210, %v1211
    %v1213 = vrot.slane %v1212, 1
    %v1214 = vadd.f32 %v1212, %v1213
    %v1215 = vrot.slane %v1196, 4
    %v1216 = vadd.f32 %v1196, %v1215
    %v1217 = vrot.slane %v1216, 2
    %v1218 = vadd.f32 %v1216, %v1217
    %v1219 = vrot.slane %v1218, 1
    %v1220 = vadd.f32 %v1218, %v1219
    %v1221 = vmul.f32 %v1202, %v557
    %v1222 = vmul.f32 %v1208, %v557
    %v1223 = vmul.f32 %v1214, %v557
    %v1224 = vmul.f32 %v1220, %v557
    %v1225 = vmul.f32 %v1189, %v1189
    %v1226 = vmul.f32 %v1190, %v1190
    %v1227 = vmul.f32 %v1191, %v1191
    %v1228 = vmul.f32 %v1192, %v1192
    %v1229 = vsub.f32 %v1221, %v1225
    %v1230 = vsub.f32 %v1222, %v1226
    %v1231 = vsub.f32 %v1223, %v1227
    %v1232 = vsub.f32 %v1224, %v1228
    %v1233 = vld [vmem:[#allocation17] sm:$0xf]
    %v1234 = vadd.f32 %v1229, 1e-05
    %v1235 = vadd.f32 %v1230, 1e-05
    %v1236 = vadd.f32 %v1231, 1e-05
    %v1237 = vadd.f32 %v1232, 1e-05
    %v1238 = vrsqrt.pop %v1234
    %v1239 = vrsqrt.pop %v1235
    %v1240 = vrsqrt.pop %v1236
    %v1241 = vrsqrt.pop %v1237
    %v1246 = vcombine.low %v1238, %v1239
    %v1247 = vcombine.low %v1240, %v1241
    %v1249 = vunpack.c.l.s4 1966171168
    %v1250 = vunpack.c.0.s8 %v1249
    %v1251 = vlaneseq
    %v1252 = vshrl.u32 %v1251, 7
    %v1253 = vsub.s32 %v1250, %v1252
    %v1254 = vrot.slane %v1246, %v1253
    %v1256 = vunpack.c.l.s4 1966171168
    %v1257 = vunpack.c.0.s8 %v1256
    %v1258 = vlaneseq
    %v1259 = vshrl.u32 %v1258, 7
    %v1260 = vsub.s32 %v1257, %v1259
    %v1261 = vrot.slane %v1247, %v1260
    %v1262 = vcombine.low %v1254, %v1261
    %v1264 = vunpack.c.l.s4 1966171168
    %v1265 = vunpack.c.0.s8 %v1264
    %v1266 = vlaneseq
    %v1267 = vshrl.u32 %v1266, 7
    %v1268 = vsub.s32 %v1265, %v1267
    %v1269 = vrot.slane %v1262, %v1268
    %v1271 = vmul.f32 %v1233, %v1269
    %v1272 = vld [vmem:[#allocation18] sm:$0xf]
    %v1274 = vlaneseq
    %v1275 = vshrl.u32 %v1274, 7
    %v1276 = vsub.s32 0, %v1275
    %v1277 = vrot.slane %v1271, %v1276
    %v1278 = vlaneseq
    %v1279 = vshrl.u32 %v1278, 7
    %v1280 = vsub.s32 1, %v1279
    %v1281 = vrot.slane %v1271, %v1280
    %v1282 = vlaneseq
    %v1283 = vshrl.u32 %v1282, 7
    %v1284 = vsub.s32 2, %v1283
    %v1285 = vrot.slane %v1271, %v1284
    %v1286 = vlaneseq
    %v1287 = vshrl.u32 %v1286, 7
    %v1288 = vsub.s32 3, %v1287
    %v1289 = vrot.slane %v1271, %v1288
    %v1294 = vmul.f32 %v1189, %v1277
    %v1295 = vmul.f32 %v1190, %v1281
    %v1296 = vmul.f32 %v1191, %v1285
    %v1297 = vmul.f32 %v1192, %v1289
    %v1302 = vcombine.low %v1294, %v1295
    %v1303 = vcombine.low %v1296, %v1297
    %v1305 = vunpack.c.l.s4 1966171168
    %v1306 = vunpack.c.0.s8 %v1305
    %v1307 = vlaneseq
    %v1308 = vshrl.u32 %v1307, 7
    %v1309 = vsub.s32 %v1306, %v1308
    %v1310 = vrot.slane %v1302, %v1309
    %v1312 = vunpack.c.l.s4 1966171168
    %v1313 = vunpack.c.0.s8 %v1312
    %v1314 = vlaneseq
    %v1315 = vshrl.u32 %v1314, 7
    %v1316 = vsub.s32 %v1313, %v1315
    %v1317 = vrot.slane %v1303, %v1316
    %v1318 = vcombine.low %v1310, %v1317
    %v1320 = vunpack.c.l.s4 1966171168
    %v1321 = vunpack.c.0.s8 %v1320
    %v1322 = vlaneseq
    %v1323 = vshrl.u32 %v1322, 7
    %v1324 = vsub.s32 %v1321, %v1323
    %v1325 = vrot.slane %v1318, %v1324
    %v1327 = vsub.f32 %v1272, %v1325
    %v1328 = vmul.f32 %v1118, %v1277
    %v1329 = vmul.f32 %v1120, %v1281
    %v1330 = vmul.f32 %v1159, %v1285
    %v1331 = vmul.f32 %v1161, %v1289
    %v1333 = vlaneseq
    %v1334 = vshrl.u32 %v1333, 7
    %v1335 = vsub.s32 0, %v1334
    %v1336 = vrot.slane %v1327, %v1335
    %v1337 = vlaneseq
    %v1338 = vshrl.u32 %v1337, 7
    %v1339 = vsub.s32 1, %v1338
    %v1340 = vrot.slane %v1327, %v1339
    %v1341 = vlaneseq
    %v1342 = vshrl.u32 %v1341, 7
    %v1343 = vsub.s32 2, %v1342
    %v1344 = vrot.slane %v1327, %v1343
    %v1345 = vlaneseq
    %v1346 = vshrl.u32 %v1345, 7
    %v1347 = vsub.s32 3, %v1346
    %v1348 = vrot.slane %v1327, %v1347
    %v1353 = vadd.f32 %v1328, %v1336
    %v1354 = vadd.f32 %v1329, %v1340
    %v1355 = vadd.f32 %v1330, %v1344
    %v1356 = vadd.f32 %v1331, %v1348
    %vm1357 = vcmp.gt.f32.partialorder %v1353, 0.0
    %vm1358 = vcmp.gt.f32.partialorder %v1354, 0.0
    %vm1359 = vcmp.gt.f32.partialorder %v1355, 0.0
    %vm1360 = vcmp.gt.f32.partialorder %v1356, 0.0
    %v1361 = vmul.f32 %v1353, 0.2
    %v1362 = vmul.f32 %v1354, 0.2
    %v1363 = vmul.f32 %v1355, 0.2
    %v1364 = vmul.f32 %v1356, 0.2
    %v1365 = vsel %vm1357, %v1353, %v1361
    %v1366 = vsel %vm1358, %v1354, %v1362
    %v1367 = vsel %vm1359, %v1355, %v1363
    %v1368 = vsel %vm1360, %v1356, %v1364
    %v1369 = vpack.c.bf16 %v1365, %v1365
    %v1370 = vpack.c.bf16 %v1366, %v1366
    %v1371 = vpack.c.bf16 %v1367, %v1367
    %v1372 = vpack.c.bf16 %v1368, %v1368
    %v1373 = vld [vmem:[#allocation20] sm:$0xff]
    %v1374 = vld [vmem:[#allocation20 + $0x8] sm:$0xff]
    %v1375 = vld [vmem:[#allocation20 + $0x10] sm:$0xff]
    %v1376 = vld [vmem:[#allocation20 + $0x18] sm:$0xff]
    %v1377 = vld [vmem:[#allocation20 + $0x20] sm:$0xff]
    %v1378 = vld [vmem:[#allocation20 + $0x28] sm:$0xff]
    %v1379 = vld [vmem:[#allocation20 + $0x30] sm:$0xff]
    %v1380 = vld [vmem:[#allocation20 + $0x38] sm:$0xff]
    %v1381 = vld [vmem:[#allocation20 + $0x40] sm:$0xff]
    %v1382 = vld [vmem:[#allocation20 + $0x48] sm:$0xff]
    %v1383 = vld [vmem:[#allocation20 + $0x50] sm:$0xff]
    %v1384 = vld [vmem:[#allocation20 + $0x58] sm:$0xff]
    %v1385 = vld [vmem:[#allocation20 + $0x60] sm:$0xff]
    %v1386 = vld [vmem:[#allocation20 + $0x68] sm:$0xff]
    %v1387 = vld [vmem:[#allocation20 + $0x70] sm:$0xff]
    %v1388 = vld [vmem:[#allocation20 + $0x78] sm:$0xff]
    %v1389 = vld [vmem:[#allocation20 + $0x80] sm:$0xff]
    %v1390 = vld [vmem:[#allocation20 + $0x88] sm:$0xff]
    %v1391 = vld [vmem:[#allocation20 + $0x90] sm:$0xff]
    %v1392 = vld [vmem:[#allocation20 + $0x98] sm:$0xff]
    %v1393 = vld [vmem:[#allocation20 + $0xa0] sm:$0xff]
    %v1394 = vld [vmem:[#allocation20 + $0xa8] sm:$0xff]
    %v1395 = vld [vmem:[#allocation20 + $0xb0] sm:$0xff]
    %v1396 = vld [vmem:[#allocation20 + $0xb8] sm:$0xff]
    %v1397 = vld [vmem:[#allocation20 + $0xc0] sm:$0xff]
    %v1398 = vld [vmem:[#allocation20 + $0xc8] sm:$0xff]
    %v1399 = vld [vmem:[#allocation20 + $0xd0] sm:$0xff]
    %v1400 = vld [vmem:[#allocation20 + $0xd8] sm:$0xff]
    %v1401 = vld [vmem:[#allocation20 + $0xe0] sm:$0xff]
    %v1402 = vld [vmem:[#allocation20 + $0xe8] sm:$0xff]
    %v1403 = vld [vmem:[#allocation20 + $0xf0] sm:$0xff]
    %v1404 = vld [vmem:[#allocation20 + $0xf8] sm:$0xff]
    %v1405 = vld [vmem:[#allocation20 + $0x100] sm:$0xff]
    %v1406 = vld [vmem:[#allocation20 + $0x108] sm:$0xff]
    %v1407 = vld [vmem:[#allocation20 + $0x110] sm:$0xff]
    %v1408 = vld [vmem:[#allocation20 + $0x118] sm:$0xff]
    %v1409 = vld [vmem:[#allocation20 + $0x120] sm:$0xff]
    %v1410 = vld [vmem:[#allocation20 + $0x128] sm:$0xff]
    %v1411 = vld [vmem:[#allocation20 + $0x130] sm:$0xff]
    %v1412 = vld [vmem:[#allocation20 + $0x138] sm:$0xff]
    %v1413 = vld [vmem:[#allocation20 + $0x140] sm:$0xff]
    %v1414 = vld [vmem:[#allocation20 + $0x148] sm:$0xff]
    %v1415 = vld [vmem:[#allocation20 + $0x150] sm:$0xff]
    %v1416 = vld [vmem:[#allocation20 + $0x158] sm:$0xff]
    %v1417 = vld [vmem:[#allocation20 + $0x160] sm:$0xff]
    %v1418 = vld [vmem:[#allocation20 + $0x168] sm:$0xff]
    %v1419 = vld [vmem:[#allocation20 + $0x170] sm:$0xff]
    %v1420 = vld [vmem:[#allocation20 + $0x178] sm:$0xff]
    %v1421 = vld [vmem:[#allocation20 + $0x180] sm:$0xff]
    %v1422 = vld [vmem:[#allocation20 + $0x188] sm:$0xff]
    %v1423 = vld [vmem:[#allocation20 + $0x190] sm:$0xff]
    %v1424 = vld [vmem:[#allocation20 + $0x198] sm:$0xff]
    %v1425 = vld [vmem:[#allocation20 + $0x1a0] sm:$0xff]
    %v1426 = vld [vmem:[#allocation20 + $0x1a8] sm:$0xff]
    %v1427 = vld [vmem:[#allocation20 + $0x1b0] sm:$0xff]
    %v1428 = vld [vmem:[#allocation20 + $0x1b8] sm:$0xff]
    %v1429 = vld [vmem:[#allocation20 + $0x1c0] sm:$0xff]
    %v1430 = vld [vmem:[#allocation20 + $0x1c8] sm:$0xff]
    %v1431 = vld [vmem:[#allocation20 + $0x1d0] sm:$0xff]
    %v1432 = vld [vmem:[#allocation20 + $0x1d8] sm:$0xff]
    %v1433 = vld [vmem:[#allocation20 + $0x1e0] sm:$0xff]
    %v1434 = vld [vmem:[#allocation20 + $0x1e8] sm:$0xff]
    %v1435 = vld [vmem:[#allocation20 + $0x1f0] sm:$0xff]
    %v1436 = vld [vmem:[#allocation20 + $0x1f8] sm:$0xff]
    %v1437 = vld [vmem:[#allocation20 + $0x200] sm:$0xff]
    %v1438 = vld [vmem:[#allocation20 + $0x208] sm:$0xff]
    %v1439 = vld [vmem:[#allocation20 + $0x210] sm:$0xff]
    %v1440 = vld [vmem:[#allocation20 + $0x218] sm:$0xff]
    %v1441 = vld [vmem:[#allocation20 + $0x220] sm:$0xff]
    %v1442 = vld [vmem:[#allocation20 + $0x228] sm:$0xff]
    %v1443 = vld [vmem:[#allocation20 + $0x230] sm:$0xff]
    %v1444 = vld [vmem:[#allocation20 + $0x238] sm:$0xff]
    %v1445 = vld [vmem:[#allocation20 + $0x240] sm:$0xff]
    %v1446 = vld [vmem:[#allocation20 + $0x248] sm:$0xff]
    %v1447 = vld [vmem:[#allocation20 + $0x250] sm:$0xff]
    %v1448 = vld [vmem:[#allocation20 + $0x258] sm:$0xff]
    %v1449 = vld [vmem:[#allocation20 + $0x260] sm:$0xff]
    %v1450 = vld [vmem:[#allocation20 + $0x268] sm:$0xff]
    %v1451 = vld [vmem:[#allocation20 + $0x270] sm:$0xff]
    %v1452 = vld [vmem:[#allocation20 + $0x278] sm:$0xff]
    %v1453 = vld [vmem:[#allocation20 + $0x280] sm:$0xff]
    %v1454 = vld [vmem:[#allocation20 + $0x288] sm:$0xff]
    %v1455 = vld [vmem:[#allocation20 + $0x290] sm:$0xff]
    %v1456 = vld [vmem:[#allocation20 + $0x298] sm:$0xff]
    %v1457 = vld [vmem:[#allocation20 + $0x2a0] sm:$0xff]
    %v1458 = vld [vmem:[#allocation20 + $0x2a8] sm:$0xff]
    %v1459 = vld [vmem:[#allocation20 + $0x2b0] sm:$0xff]
    %v1460 = vld [vmem:[#allocation20 + $0x2b8] sm:$0xff]
    %v1461 = vld [vmem:[#allocation20 + $0x2c0] sm:$0xff]
    %v1462 = vld [vmem:[#allocation20 + $0x2c8] sm:$0xff]
    %v1463 = vld [vmem:[#allocation20 + $0x2d0] sm:$0xff]
    %v1464 = vld [vmem:[#allocation20 + $0x2d8] sm:$0xff]
    %v1465 = vld [vmem:[#allocation20 + $0x2e0] sm:$0xff]
    %v1466 = vld [vmem:[#allocation20 + $0x2e8] sm:$0xff]
    %v1467 = vld [vmem:[#allocation20 + $0x2f0] sm:$0xff]
    %v1468 = vld [vmem:[#allocation20 + $0x2f8] sm:$0xff]
    %v1469 = vld [vmem:[#allocation20 + $0x300] sm:$0xff]
    %v1470 = vld [vmem:[#allocation20 + $0x308] sm:$0xff]
    %v1471 = vld [vmem:[#allocation20 + $0x310] sm:$0xff]
    %v1472 = vld [vmem:[#allocation20 + $0x318] sm:$0xff]
    %v1473 = vld [vmem:[#allocation20 + $0x320] sm:$0xff]
    %v1474 = vld [vmem:[#allocation20 + $0x328] sm:$0xff]
    %v1475 = vld [vmem:[#allocation20 + $0x330] sm:$0xff]
    %v1476 = vld [vmem:[#allocation20 + $0x338] sm:$0xff]
    %v1477 = vld [vmem:[#allocation20 + $0x340] sm:$0xff]
    %v1478 = vld [vmem:[#allocation20 + $0x348] sm:$0xff]
    %v1479 = vld [vmem:[#allocation20 + $0x350] sm:$0xff]
    %v1480 = vld [vmem:[#allocation20 + $0x358] sm:$0xff]
    %v1481 = vld [vmem:[#allocation20 + $0x360] sm:$0xff]
    %v1482 = vld [vmem:[#allocation20 + $0x368] sm:$0xff]
    %v1483 = vld [vmem:[#allocation20 + $0x370] sm:$0xff]
    %v1484 = vld [vmem:[#allocation20 + $0x378] sm:$0xff]
    %v1485 = vld [vmem:[#allocation20 + $0x380] sm:$0xff]
    %v1486 = vld [vmem:[#allocation20 + $0x388] sm:$0xff]
    %v1487 = vld [vmem:[#allocation20 + $0x390] sm:$0xff]
    %v1488 = vld [vmem:[#allocation20 + $0x398] sm:$0xff]
    %v1489 = vld [vmem:[#allocation20 + $0x3a0] sm:$0xff]
    %v1490 = vld [vmem:[#allocation20 + $0x3a8] sm:$0xff]
    %v1491 = vld [vmem:[#allocation20 + $0x3b0] sm:$0xff]
    %v1492 = vld [vmem:[#allocation20 + $0x3b8] sm:$0xff]
    %v1493 = vld [vmem:[#allocation20 + $0x3c0] sm:$0xff]
    %v1494 = vld [vmem:[#allocation20 + $0x3c8] sm:$0xff]
    %v1495 = vld [vmem:[#allocation20 + $0x3d0] sm:$0xff]
    %v1496 = vld [vmem:[#allocation20 + $0x3d8] sm:$0xff]
    %v1497 = vld [vmem:[#allocation20 + $0x3e0] sm:$0xff]
    %v1498 = vld [vmem:[#allocation20 + $0x3e8] sm:$0xff]
    %v1499 = vld [vmem:[#allocation20 + $0x3f0] sm:$0xff]
    %v1500 = vld [vmem:[#allocation20 + $0x3f8] sm:$0xff]
    %v1501 = vld [vmem:[#allocation20 + $0x400] sm:$0xff]
    %v1502 = vld [vmem:[#allocation20 + $0x408] sm:$0xff]
    %v1503 = vld [vmem:[#allocation20 + $0x410] sm:$0xff]
    %v1504 = vld [vmem:[#allocation20 + $0x418] sm:$0xff]
    %v1505 = vld [vmem:[#allocation20 + $0x420] sm:$0xff]
    %v1506 = vld [vmem:[#allocation20 + $0x428] sm:$0xff]
    %v1507 = vld [vmem:[#allocation20 + $0x430] sm:$0xff]
    %v1508 = vld [vmem:[#allocation20 + $0x438] sm:$0xff]
    %v1509 = vld [vmem:[#allocation20 + $0x440] sm:$0xff]
    %v1510 = vld [vmem:[#allocation20 + $0x448] sm:$0xff]
    %v1511 = vld [vmem:[#allocation20 + $0x450] sm:$0xff]
    %v1512 = vld [vmem:[#allocation20 + $0x458] sm:$0xff]
    %v1513 = vld [vmem:[#allocation20 + $0x460] sm:$0xff]
    %v1514 = vld [vmem:[#allocation20 + $0x468] sm:$0xff]
    %v1515 = vld [vmem:[#allocation20 + $0x470] sm:$0xff]
    %v1516 = vld [vmem:[#allocation20 + $0x478] sm:$0xff]
    %v1517 = vld [vmem:[#allocation20 + $0x480] sm:$0xff]
    %v1518 = vld [vmem:[#allocation20 + $0x488] sm:$0xff]
    %v1519 = vld [vmem:[#allocation20 + $0x490] sm:$0xff]
    %v1520 = vld [vmem:[#allocation20 + $0x498] sm:$0xff]
    %v1521 = vld [vmem:[#allocation20 + $0x4a0] sm:$0xff]
    %v1522 = vld [vmem:[#allocation20 + $0x4a8] sm:$0xff]
    %v1523 = vld [vmem:[#allocation20 + $0x4b0] sm:$0xff]
    %v1524 = vld [vmem:[#allocation20 + $0x4b8] sm:$0xff]
    %v1525 = vld [vmem:[#allocation20 + $0x4c0] sm:$0xff]
    %v1526 = vld [vmem:[#allocation20 + $0x4c8] sm:$0xff]
    %v1527 = vld [vmem:[#allocation20 + $0x4d0] sm:$0xff]
    %v1528 = vld [vmem:[#allocation20 + $0x4d8] sm:$0xff]
    %v1529 = vld [vmem:[#allocation20 + $0x4e0] sm:$0xff]
    %v1530 = vld [vmem:[#allocation20 + $0x4e8] sm:$0xff]
    %v1531 = vld [vmem:[#allocation20 + $0x4f0] sm:$0xff]
    %v1532 = vld [vmem:[#allocation20 + $0x4f8] sm:$0xff]
    %v1533 = vld [vmem:[#allocation20 + $0x500] sm:$0xff]
    %v1534 = vld [vmem:[#allocation20 + $0x508] sm:$0xff]
    %v1535 = vld [vmem:[#allocation20 + $0x510] sm:$0xff]
    %v1536 = vld [vmem:[#allocation20 + $0x518] sm:$0xff]
    %v1537 = vld [vmem:[#allocation20 + $0x520] sm:$0xff]
    %v1538 = vld [vmem:[#allocation20 + $0x528] sm:$0xff]
    %v1539 = vld [vmem:[#allocation20 + $0x530] sm:$0xff]
    %v1540 = vld [vmem:[#allocation20 + $0x538] sm:$0xff]
    %v1541 = vld [vmem:[#allocation20 + $0x540] sm:$0xff]
    %v1542 = vld [vmem:[#allocation20 + $0x548] sm:$0xff]
    %v1543 = vld [vmem:[#allocation20 + $0x550] sm:$0xff]
    %v1544 = vld [vmem:[#allocation20 + $0x558] sm:$0xff]
    %v1545 = vld [vmem:[#allocation20 + $0x560] sm:$0xff]
    %v1546 = vld [vmem:[#allocation20 + $0x568] sm:$0xff]
    %v1547 = vld [vmem:[#allocation20 + $0x570] sm:$0xff]
    %v1548 = vld [vmem:[#allocation20 + $0x578] sm:$0xff]
    %v1549 = vld [vmem:[#allocation20 + $0x580] sm:$0xff]
    %v1550 = vld [vmem:[#allocation20 + $0x588] sm:$0xff]
    %v1551 = vld [vmem:[#allocation20 + $0x590] sm:$0xff]
    %v1552 = vld [vmem:[#allocation20 + $0x598] sm:$0xff]
    %v1553 = vld [vmem:[#allocation20 + $0x5a0] sm:$0xff]
    %v1554 = vld [vmem:[#allocation20 + $0x5a8] sm:$0xff]
    %v1555 = vld [vmem:[#allocation20 + $0x5b0] sm:$0xff]
    %v1556 = vld [vmem:[#allocation20 + $0x5b8] sm:$0xff]
    %v1557 = vld [vmem:[#allocation20 + $0x5c0] sm:$0xff]
    %v1558 = vld [vmem:[#allocation20 + $0x5c8] sm:$0xff]
    %v1559 = vld [vmem:[#allocation20 + $0x5d0] sm:$0xff]
    %v1560 = vld [vmem:[#allocation20 + $0x5d8] sm:$0xff]
    %v1561 = vld [vmem:[#allocation20 + $0x5e0] sm:$0xff]
    %v1562 = vld [vmem:[#allocation20 + $0x5e8] sm:$0xff]
    %v1563 = vld [vmem:[#allocation20 + $0x5f0] sm:$0xff]
    %v1564 = vld [vmem:[#allocation20 + $0x5f8] sm:$0xff]
    %v1565 = vld [vmem:[#allocation20 + $0x600] sm:$0xff]
    %v1566 = vld [vmem:[#allocation20 + $0x608] sm:$0xff]
    %v1567 = vld [vmem:[#allocation20 + $0x610] sm:$0xff]
    %v1568 = vld [vmem:[#allocation20 + $0x618] sm:$0xff]
    %v1569 = vld [vmem:[#allocation20 + $0x620] sm:$0xff]
    %v1570 = vld [vmem:[#allocation20 + $0x628] sm:$0xff]
    %v1571 = vld [vmem:[#allocation20 + $0x630] sm:$0xff]
    %v1572 = vld [vmem:[#allocation20 + $0x638] sm:$0xff]
    %v1573 = vld [vmem:[#allocation20 + $0x640] sm:$0xff]
    %v1574 = vld [vmem:[#allocation20 + $0x648] sm:$0xff]
    %v1575 = vld [vmem:[#allocation20 + $0x650] sm:$0xff]
    %v1576 = vld [vmem:[#allocation20 + $0x658] sm:$0xff]
    %v1577 = vld [vmem:[#allocation20 + $0x660] sm:$0xff]
    %v1578 = vld [vmem:[#allocation20 + $0x668] sm:$0xff]
    %v1579 = vld [vmem:[#allocation20 + $0x670] sm:$0xff]
    %v1580 = vld [vmem:[#allocation20 + $0x678] sm:$0xff]
    %v1581 = vld [vmem:[#allocation20 + $0x680] sm:$0xff]
    %v1582 = vld [vmem:[#allocation20 + $0x688] sm:$0xff]
    %v1583 = vld [vmem:[#allocation20 + $0x690] sm:$0xff]
    %v1584 = vld [vmem:[#allocation20 + $0x698] sm:$0xff]
    %v1585 = vld [vmem:[#allocation20 + $0x6a0] sm:$0xff]
    %v1586 = vld [vmem:[#allocation20 + $0x6a8] sm:$0xff]
    %v1587 = vld [vmem:[#allocation20 + $0x6b0] sm:$0xff]
    %v1588 = vld [vmem:[#allocation20 + $0x6b8] sm:$0xff]
    %v1589 = vld [vmem:[#allocation20 + $0x6c0] sm:$0xff]
    %v1590 = vld [vmem:[#allocation20 + $0x6c8] sm:$0xff]
    %v1591 = vld [vmem:[#allocation20 + $0x6d0] sm:$0xff]
    %v1592 = vld [vmem:[#allocation20 + $0x6d8] sm:$0xff]
    %v1593 = vld [vmem:[#allocation20 + $0x6e0] sm:$0xff]
    %v1594 = vld [vmem:[#allocation20 + $0x6e8] sm:$0xff]
    %v1595 = vld [vmem:[#allocation20 + $0x6f0] sm:$0xff]
    %v1596 = vld [vmem:[#allocation20 + $0x6f8] sm:$0xff]
    %v1597 = vld [vmem:[#allocation20 + $0x700] sm:$0xff]
    %v1598 = vld [vmem:[#allocation20 + $0x708] sm:$0xff]
    %v1599 = vld [vmem:[#allocation20 + $0x710] sm:$0xff]
    %v1600 = vld [vmem:[#allocation20 + $0x718] sm:$0xff]
    %v1601 = vld [vmem:[#allocation20 + $0x720] sm:$0xff]
    %v1602 = vld [vmem:[#allocation20 + $0x728] sm:$0xff]
    %v1603 = vld [vmem:[#allocation20 + $0x730] sm:$0xff]
    %v1604 = vld [vmem:[#allocation20 + $0x738] sm:$0xff]
    %v1605 = vld [vmem:[#allocation20 + $0x740] sm:$0xff]
    %v1606 = vld [vmem:[#allocation20 + $0x748] sm:$0xff]
    %v1607 = vld [vmem:[#allocation20 + $0x750] sm:$0xff]
    %v1608 = vld [vmem:[#allocation20 + $0x758] sm:$0xff]
    %v1609 = vld [vmem:[#allocation20 + $0x760] sm:$0xff]
    %v1610 = vld [vmem:[#allocation20 + $0x768] sm:$0xff]
    %v1611 = vld [vmem:[#allocation20 + $0x770] sm:$0xff]
    %v1612 = vld [vmem:[#allocation20 + $0x778] sm:$0xff]
    %v1613 = vld [vmem:[#allocation20 + $0x780] sm:$0xff]
    %v1614 = vld [vmem:[#allocation20 + $0x788] sm:$0xff]
    %v1615 = vld [vmem:[#allocation20 + $0x790] sm:$0xff]
    %v1616 = vld [vmem:[#allocation20 + $0x798] sm:$0xff]
    %v1617 = vld [vmem:[#allocation20 + $0x7a0] sm:$0xff]
    %v1618 = vld [vmem:[#allocation20 + $0x7a8] sm:$0xff]
    %v1619 = vld [vmem:[#allocation20 + $0x7b0] sm:$0xff]
    %v1620 = vld [vmem:[#allocation20 + $0x7b8] sm:$0xff]
    %v1621 = vld [vmem:[#allocation20 + $0x7c0] sm:$0xff]
    %v1622 = vld [vmem:[#allocation20 + $0x7c8] sm:$0xff]
    %v1623 = vld [vmem:[#allocation20 + $0x7d0] sm:$0xff]
    %v1624 = vld [vmem:[#allocation20 + $0x7d8] sm:$0xff]
    %v1625 = vld [vmem:[#allocation20 + $0x7e0] sm:$0xff]
    %v1626 = vld [vmem:[#allocation20 + $0x7e8] sm:$0xff]
    %v1627 = vld [vmem:[#allocation20 + $0x7f0] sm:$0xff]
    %v1628 = vld [vmem:[#allocation20 + $0x7f8] sm:$0xff]
    %v1629 = vld [vmem:[#allocation21] sm:$0xff]
    %v1630 = vunpack.c.l.bf16 %v1629
    %v1631 = vunpack.c.h.bf16 %v1629
    %v1634 = vlaneseq
    %v1635 = vshrl.u32 %v1634, 7
    %v1636 = vsub.s32 0, %v1635
    %v1637 = vrot.slane %v1630, %v1636
    %v1638 = vlaneseq
    %v1639 = vshrl.u32 %v1638, 7
    %v1640 = vsub.s32 2, %v1639
    %v1641 = vrot.slane %v1630, %v1640
    %v1642 = vlaneseq
    %v1643 = vshrl.u32 %v1642, 7
    %v1644 = vsub.s32 4, %v1643
    %v1645 = vrot.slane %v1630, %v1644
    %v1646 = vlaneseq
    %v1647 = vshrl.u32 %v1646, 7
    %v1648 = vsub.s32 6, %v1647
    %v1649 = vrot.slane %v1630, %v1648
    %v1650 = vlaneseq
    %v1651 = vshrl.u32 %v1650, 7
    %v1652 = vsub.s32 0, %v1651
    %v1653 = vrot.slane %v1631, %v1652
    %v1654 = vlaneseq
    %v1655 = vshrl.u32 %v1654, 7
    %v1656 = vsub.s32 2, %v1655
    %v1657 = vrot.slane %v1631, %v1656
    %v1658 = vlaneseq
    %v1659 = vshrl.u32 %v1658, 7
    %v1660 = vsub.s32 4, %v1659
    %v1661 = vrot.slane %v1631, %v1660
    %v1662 = vlaneseq
    %v1663 = vshrl.u32 %v1662, 7
    %v1664 = vsub.s32 6, %v1663
    %v1665 = vrot.slane %v1631, %v1664
    %v1674 = vlaneseq
    %v1675 = vshrl.u32 %v1674, 7
    %v1676 = vsub.s32 0, %v1675
    %v1677 = vrot.slane %v1637, %v1676
    %v1678 = vlaneseq
    %v1679 = vshrl.u32 %v1678, 7
    %v1680 = vsub.s32 0, %v1679
    %v1681 = vrot.slane %v1641, %v1680
    %v1682 = vlaneseq
    %v1683 = vshrl.u32 %v1682, 7
    %v1684 = vsub.s32 0, %v1683
    %v1685 = vrot.slane %v1645, %v1684
    %v1686 = vlaneseq
    %v1687 = vshrl.u32 %v1686, 7
    %v1688 = vsub.s32 0, %v1687
    %v1689 = vrot.slane %v1649, %v1688
    %v1690 = vlaneseq
    %v1691 = vshrl.u32 %v1690, 7
    %v1692 = vsub.s32 0, %v1691
    %v1693 = vrot.slane %v1653, %v1692
    %v1694 = vlaneseq
    %v1695 = vshrl.u32 %v1694, 7
    %v1696 = vsub.s32 0, %v1695
    %v1697 = vrot.slane %v1657, %v1696
    %v1698 = vlaneseq
    %v1699 = vshrl.u32 %v1698, 7
    %v1700 = vsub.s32 0, %v1699
    %v1701 = vrot.slane %v1661, %v1700
    %v1702 = vlaneseq
    %v1703 = vshrl.u32 %v1702, 7
    %v1704 = vsub.s32 0, %v1703
    %v1705 = vrot.slane %v1665, %v1704
    %v1962 = vunpack.c.l.b16 %v1373
    %v1963 = vunpack.c.h.b16 %v1373
    %v1964 = vunpack.c.l.b16 %v1374
    %v1965 = vunpack.c.h.b16 %v1374
    %v1966 = vunpack.c.l.b16 %v1375
    %v1967 = vunpack.c.h.b16 %v1375
    %v1968 = vunpack.c.l.b16 %v1376
    %v1969 = vunpack.c.h.b16 %v1376
    %v1970 = vunpack.c.l.b16 %v1377
    %v1971 = vunpack.c.h.b16 %v1377
    %v1972 = vunpack.c.l.b16 %v1378
    %v1973 = vunpack.c.h.b16 %v1378
    %v1974 = vunpack.c.l.b16 %v1379
    %v1975 = vunpack.c.h.b16 %v1379
    %v1976 = vunpack.c.l.b16 %v1380
    %v1977 = vunpack.c.h.b16 %v1380
    %v1978 = vunpack.c.l.b16 %v1381
    %v1979 = vunpack.c.h.b16 %v1381
    %v1980 = vunpack.c.l.b16 %v1382
    %v1981 = vunpack.c.h.b16 %v1382
    %v1982 = vunpack.c.l.b16 %v1383
    %v1983 = vunpack.c.h.b16 %v1383
    %v1984 = vunpack.c.l.b16 %v1384
    %v1985 = vunpack.c.h.b16 %v1384
    %v1986 = vunpack.c.l.b16 %v1385
    %v1987 = vunpack.c.h.b16 %v1385
    %v1988 = vunpack.c.l.b16 %v1386
    %v1989 = vunpack.c.h.b16 %v1386
    %v1990 = vunpack.c.l.b16 %v1387
    %v1991 = vunpack.c.h.b16 %v1387
    %v1992 = vunpack.c.l.b16 %v1388
    %v1993 = vunpack.c.h.b16 %v1388
    %v1994 = vunpack.c.l.b16 %v1389
    %v1995 = vunpack.c.h.b16 %v1389
    %v1996 = vunpack.c.l.b16 %v1390
    %v1997 = vunpack.c.h.b16 %v1390
    %v1998 = vunpack.c.l.b16 %v1391
    %v1999 = vunpack.c.h.b16 %v1391
    %v2000 = vunpack.c.l.b16 %v1392
    %v2001 = vunpack.c.h.b16 %v1392
    %v2002 = vunpack.c.l.b16 %v1393
    %v2003 = vunpack.c.h.b16 %v1393
    %v2004 = vunpack.c.l.b16 %v1394
    %v2005 = vunpack.c.h.b16 %v1394
    %v2006 = vunpack.c.l.b16 %v1395
    %v2007 = vunpack.c.h.b16 %v1395
    %v2008 = vunpack.c.l.b16 %v1396
    %v2009 = vunpack.c.h.b16 %v1396
    %v2010 = vunpack.c.l.b16 %v1397
    %v2011 = vunpack.c.h.b16 %v1397
    %v2012 = vunpack.c.l.b16 %v1398
    %v2013 = vunpack.c.h.b16 %v1398
    %v2014 = vunpack.c.l.b16 %v1399
    %v2015 = vunpack.c.h.b16 %v1399
    %v2016 = vunpack.c.l.b16 %v1400
    %v2017 = vunpack.c.h.b16 %v1400
    %v2018 = vunpack.c.l.b16 %v1401
    %v2019 = vunpack.c.h.b16 %v1401
    %v2020 = vunpack.c.l.b16 %v1402
    %v2021 = vunpack.c.h.b16 %v1402
    %v2022 = vunpack.c.l.b16 %v1403
    %v2023 = vunpack.c.h.b16 %v1403
    %v2024 = vunpack.c.l.b16 %v1404
    %v2025 = vunpack.c.h.b16 %v1404
    %v2026 = vunpack.c.l.b16 %v1405
    %v2027 = vunpack.c.h.b16 %v1405
    %v2028 = vunpack.c.l.b16 %v1406
    %v2029 = vunpack.c.h.b16 %v1406
    %v2030 = vunpack.c.l.b16 %v1407
    %v2031 = vunpack.c.h.b16 %v1407
    %v2032 = vunpack.c.l.b16 %v1408
    %v2033 = vunpack.c.h.b16 %v1408
    %v2034 = vunpack.c.l.b16 %v1409
    %v2035 = vunpack.c.h.b16 %v1409
    %v2036 = vunpack.c.l.b16 %v1410
    %v2037 = vunpack.c.h.b16 %v1410
    %v2038 = vunpack.c.l.b16 %v1411
    %v2039 = vunpack.c.h.b16 %v1411
    %v2040 = vunpack.c.l.b16 %v1412
    %v2041 = vunpack.c.h.b16 %v1412
    %v2042 = vunpack.c.l.b16 %v1413
    %v2043 = vunpack.c.h.b16 %v1413
    %v2044 = vunpack.c.l.b16 %v1414
    %v2045 = vunpack.c.h.b16 %v1414
    %v2046 = vunpack.c.l.b16 %v1415
    %v2047 = vunpack.c.h.b16 %v1415
    %v2048 = vunpack.c.l.b16 %v1416
    %v2049 = vunpack.c.h.b16 %v1416
    %v2050 = vunpack.c.l.b16 %v1417
    %v2051 = vunpack.c.h.b16 %v1417
    %v2052 = vunpack.c.l.b16 %v1418
    %v2053 = vunpack.c.h.b16 %v1418
    %v2054 = vunpack.c.l.b16 %v1419
    %v2055 = vunpack.c.h.b16 %v1419
    %v2056 = vunpack.c.l.b16 %v1420
    %v2057 = vunpack.c.h.b16 %v1420
    %v2058 = vunpack.c.l.b16 %v1421
    %v2059 = vunpack.c.h.b16 %v1421
    %v2060 = vunpack.c.l.b16 %v1422
    %v2061 = vunpack.c.h.b16 %v1422
    %v2062 = vunpack.c.l.b16 %v1423
    %v2063 = vunpack.c.h.b16 %v1423
    %v2064 = vunpack.c.l.b16 %v1424
    %v2065 = vunpack.c.h.b16 %v1424
    %v2066 = vunpack.c.l.b16 %v1425
    %v2067 = vunpack.c.h.b16 %v1425
    %v2068 = vunpack.c.l.b16 %v1426
    %v2069 = vunpack.c.h.b16 %v1426
    %v2070 = vunpack.c.l.b16 %v1427
    %v2071 = vunpack.c.h.b16 %v1427
    %v2072 = vunpack.c.l.b16 %v1428
    %v2073 = vunpack.c.h.b16 %v1428
    %v2074 = vunpack.c.l.b16 %v1429
    %v2075 = vunpack.c.h.b16 %v1429
    %v2076 = vunpack.c.l.b16 %v1430
    %v2077 = vunpack.c.h.b16 %v1430
    %v2078 = vunpack.c.l.b16 %v1431
    %v2079 = vunpack.c.h.b16 %v1431
    %v2080 = vunpack.c.l.b16 %v1432
    %v2081 = vunpack.c.h.b16 %v1432
    %v2082 = vunpack.c.l.b16 %v1433
    %v2083 = vunpack.c.h.b16 %v1433
    %v2084 = vunpack.c.l.b16 %v1434
    %v2085 = vunpack.c.h.b16 %v1434
    %v2086 = vunpack.c.l.b16 %v1435
    %v2087 = vunpack.c.h.b16 %v1435
    %v2088 = vunpack.c.l.b16 %v1436
    %v2089 = vunpack.c.h.b16 %v1436
    %v2090 = vunpack.c.l.b16 %v1437
    %v2091 = vunpack.c.h.b16 %v1437
    %v2092 = vunpack.c.l.b16 %v1438
    %v2093 = vunpack.c.h.b16 %v1438
    %v2094 = vunpack.c.l.b16 %v1439
    %v2095 = vunpack.c.h.b16 %v1439
    %v2096 = vunpack.c.l.b16 %v1440
    %v2097 = vunpack.c.h.b16 %v1440
    %v2098 = vunpack.c.l.b16 %v1441
    %v2099 = vunpack.c.h.b16 %v1441
    %v2100 = vunpack.c.l.b16 %v1442
    %v2101 = vunpack.c.h.b16 %v1442
    %v2102 = vunpack.c.l.b16 %v1443
    %v2103 = vunpack.c.h.b16 %v1443
    %v2104 = vunpack.c.l.b16 %v1444
    %v2105 = vunpack.c.h.b16 %v1444
    %v2106 = vunpack.c.l.b16 %v1445
    %v2107 = vunpack.c.h.b16 %v1445
    %v2108 = vunpack.c.l.b16 %v1446
    %v2109 = vunpack.c.h.b16 %v1446
    %v2110 = vunpack.c.l.b16 %v1447
    %v2111 = vunpack.c.h.b16 %v1447
    %v2112 = vunpack.c.l.b16 %v1448
    %v2113 = vunpack.c.h.b16 %v1448
    %v2114 = vunpack.c.l.b16 %v1449
    %v2115 = vunpack.c.h.b16 %v1449
    %v2116 = vunpack.c.l.b16 %v1450
    %v2117 = vunpack.c.h.b16 %v1450
    %v2118 = vunpack.c.l.b16 %v1451
    %v2119 = vunpack.c.h.b16 %v1451
    %v2120 = vunpack.c.l.b16 %v1452
    %v2121 = vunpack.c.h.b16 %v1452
    %v2122 = vunpack.c.l.b16 %v1453
    %v2123 = vunpack.c.h.b16 %v1453
    %v2124 = vunpack.c.l.b16 %v1454
    %v2125 = vunpack.c.h.b16 %v1454
    %v2126 = vunpack.c.l.b16 %v1455
    %v2127 = vunpack.c.h.b16 %v1455
    %v2128 = vunpack.c.l.b16 %v1456
    %v2129 = vunpack.c.h.b16 %v1456
    %v2130 = vunpack.c.l.b16 %v1457
    %v2131 = vunpack.c.h.b16 %v1457
    %v2132 = vunpack.c.l.b16 %v1458
    %v2133 = vunpack.c.h.b16 %v1458
    %v2134 = vunpack.c.l.b16 %v1459
    %v2135 = vunpack.c.h.b16 %v1459
    %v2136 = vunpack.c.l.b16 %v1460
    %v2137 = vunpack.c.h.b16 %v1460
    %v2138 = vunpack.c.l.b16 %v1461
    %v2139 = vunpack.c.h.b16 %v1461
    %v2140 = vunpack.c.l.b16 %v1462
    %v2141 = vunpack.c.h.b16 %v1462
    %v2142 = vunpack.c.l.b16 %v1463
    %v2143 = vunpack.c.h.b16 %v1463
    %v2144 = vunpack.c.l.b16 %v1464
    %v2145 = vunpack.c.h.b16 %v1464
    %v2146 = vunpack.c.l.b16 %v1465
    %v2147 = vunpack.c.h.b16 %v1465
    %v2148 = vunpack.c.l.b16 %v1466
    %v2149 = vunpack.c.h.b16 %v1466
    %v2150 = vunpack.c.l.b16 %v1467
    %v2151 = vunpack.c.h.b16 %v1467
    %v2152 = vunpack.c.l.b16 %v1468
    %v2153 = vunpack.c.h.b16 %v1468
    %v2154 = vunpack.c.l.b16 %v1469
    %v2155 = vunpack.c.h.b16 %v1469
    %v2156 = vunpack.c.l.b16 %v1470
    %v2157 = vunpack.c.h.b16 %v1470
    %v2158 = vunpack.c.l.b16 %v1471
    %v2159 = vunpack.c.h.b16 %v1471
    %v2160 = vunpack.c.l.b16 %v1472
    %v2161 = vunpack.c.h.b16 %v1472
    %v2162 = vunpack.c.l.b16 %v1473
    %v2163 = vunpack.c.h.b16 %v1473
    %v2164 = vunpack.c.l.b16 %v1474
    %v2165 = vunpack.c.h.b16 %v1474
    %v2166 = vunpack.c.l.b16 %v1475
    %v2167 = vunpack.c.h.b16 %v1475
    %v2168 = vunpack.c.l.b16 %v1476
    %v2169 = vunpack.c.h.b16 %v1476
    %v2170 = vunpack.c.l.b16 %v1477
    %v2171 = vunpack.c.h.b16 %v1477
    %v2172 = vunpack.c.l.b16 %v1478
    %v2173 = vunpack.c.h.b16 %v1478
    %v2174 = vunpack.c.l.b16 %v1479
    %v2175 = vunpack.c.h.b16 %v1479
    %v2176 = vunpack.c.l.b16 %v1480
    %v2177 = vunpack.c.h.b16 %v1480
    %v2178 = vunpack.c.l.b16 %v1481
    %v2179 = vunpack.c.h.b16 %v1481
    %v2180 = vunpack.c.l.b16 %v1482
    %v2181 = vunpack.c.h.b16 %v1482
    %v2182 = vunpack.c.l.b16 %v1483
    %v2183 = vunpack.c.h.b16 %v1483
    %v2184 = vunpack.c.l.b16 %v1484
    %v2185 = vunpack.c.h.b16 %v1484
    %v2186 = vunpack.c.l.b16 %v1485
    %v2187 = vunpack.c.h.b16 %v1485
    %v2188 = vunpack.c.l.b16 %v1486
    %v2189 = vunpack.c.h.b16 %v1486
    %v2190 = vunpack.c.l.b16 %v1487
    %v2191 = vunpack.c.h.b16 %v1487
    %v2192 = vunpack.c.l.b16 %v1488
    %v2193 = vunpack.c.h.b16 %v1488
    %v2194 = vunpack.c.l.b16 %v1489
    %v2195 = vunpack.c.h.b16 %v1489
    %v2196 = vunpack.c.l.b16 %v1490
    %v2197 = vunpack.c.h.b16 %v1490
    %v2198 = vunpack.c.l.b16 %v1491
    %v2199 = vunpack.c.h.b16 %v1491
    %v2200 = vunpack.c.l.b16 %v1492
    %v2201 = vunpack.c.h.b16 %v1492
    %v2202 = vunpack.c.l.b16 %v1493
    %v2203 = vunpack.c.h.b16 %v1493
    %v2204 = vunpack.c.l.b16 %v1494
    %v2205 = vunpack.c.h.b16 %v1494
    %v2206 = vunpack.c.l.b16 %v1495
    %v2207 = vunpack.c.h.b16 %v1495
    %v2208 = vunpack.c.l.b16 %v1496
    %v2209 = vunpack.c.h.b16 %v1496
    %v2210 = vunpack.c.l.b16 %v1497
    %v2211 = vunpack.c.h.b16 %v1497
    %v2212 = vunpack.c.l.b16 %v1498
    %v2213 = vunpack.c.h.b16 %v1498
    %v2214 = vunpack.c.l.b16 %v1499
    %v2215 = vunpack.c.h.b16 %v1499
    %v2216 = vunpack.c.l.b16 %v1500
    %v2217 = vunpack.c.h.b16 %v1500
    %v2218 = vunpack.c.l.b16 %v1501
    %v2219 = vunpack.c.h.b16 %v1501
    %v2220 = vunpack.c.l.b16 %v1502
    %v2221 = vunpack.c.h.b16 %v1502
    %v2222 = vunpack.c.l.b16 %v1503
    %v2223 = vunpack.c.h.b16 %v1503
    %v2224 = vunpack.c.l.b16 %v1504
    %v2225 = vunpack.c.h.b16 %v1504
    %v2226 = vunpack.c.l.b16 %v1505
    %v2227 = vunpack.c.h.b16 %v1505
    %v2228 = vunpack.c.l.b16 %v1506
    %v2229 = vunpack.c.h.b16 %v1506
    %v2230 = vunpack.c.l.b16 %v1507
    %v2231 = vunpack.c.h.b16 %v1507
    %v2232 = vunpack.c.l.b16 %v1508
    %v2233 = vunpack.c.h.b16 %v1508
    %v2234 = vunpack.c.l.b16 %v1509
    %v2235 = vunpack.c.h.b16 %v1509
    %v2236 = vunpack.c.l.b16 %v1510
    %v2237 = vunpack.c.h.b16 %v1510
    %v2238 = vunpack.c.l.b16 %v1511
    %v2239 = vunpack.c.h.b16 %v1511
    %v2240 = vunpack.c.l.b16 %v1512
    %v2241 = vunpack.c.h.b16 %v1512
    %v2242 = vunpack.c.l.b16 %v1513
    %v2243 = vunpack.c.h.b16 %v1513
    %v2244 = vunpack.c.l.b16 %v1514
    %v2245 = vunpack.c.h.b16 %v1514
    %v2246 = vunpack.c.l.b16 %v1515
    %v2247 = vunpack.c.h.b16 %v1515
    %v2248 = vunpack.c.l.b16 %v1516
    %v2249 = vunpack.c.h.b16 %v1516
    %v2250 = vunpack.c.l.b16 %v1517
    %v2251 = vunpack.c.h.b16 %v1517
    %v2252 = vunpack.c.l.b16 %v1518
    %v2253 = vunpack.c.h.b16 %v1518
    %v2254 = vunpack.c.l.b16 %v1519
    %v2255 = vunpack.c.h.b16 %v1519
    %v2256 = vunpack.c.l.b16 %v1520
    %v2257 = vunpack.c.h.b16 %v1520
    %v2258 = vunpack.c.l.b16 %v1521
    %v2259 = vunpack.c.h.b16 %v1521
    %v2260 = vunpack.c.l.b16 %v1522
    %v2261 = vunpack.c.h.b16 %v1522
    %v2262 = vunpack.c.l.b16 %v1523
    %v2263 = vunpack.c.h.b16 %v1523
    %v2264 = vunpack.c.l.b16 %v1524
    %v2265 = vunpack.c.h.b16 %v1524
    %v2266 = vunpack.c.l.b16 %v1525
    %v2267 = vunpack.c.h.b16 %v1525
    %v2268 = vunpack.c.l.b16 %v1526
    %v2269 = vunpack.c.h.b16 %v1526
    %v2270 = vunpack.c.l.b16 %v1527
    %v2271 = vunpack.c.h.b16 %v1527
    %v2272 = vunpack.c.l.b16 %v1528
    %v2273 = vunpack.c.h.b16 %v1528
    %v2274 = vunpack.c.l.b16 %v1529
    %v2275 = vunpack.c.h.b16 %v1529
    %v2276 = vunpack.c.l.b16 %v1530
    %v2277 = vunpack.c.h.b16 %v1530
    %v2278 = vunpack.c.l.b16 %v1531
    %v2279 = vunpack.c.h.b16 %v1531
    %v2280 = vunpack.c.l.b16 %v1532
    %v2281 = vunpack.c.h.b16 %v1532
    %v2282 = vunpack.c.l.b16 %v1533
    %v2283 = vunpack.c.h.b16 %v1533
    %v2284 = vunpack.c.l.b16 %v1534
    %v2285 = vunpack.c.h.b16 %v1534
    %v2286 = vunpack.c.l.b16 %v1535
    %v2287 = vunpack.c.h.b16 %v1535
    %v2288 = vunpack.c.l.b16 %v1536
    %v2289 = vunpack.c.h.b16 %v1536
    %v2290 = vunpack.c.l.b16 %v1537
    %v2291 = vunpack.c.h.b16 %v1537
    %v2292 = vunpack.c.l.b16 %v1538
    %v2293 = vunpack.c.h.b16 %v1538
    %v2294 = vunpack.c.l.b16 %v1539
    %v2295 = vunpack.c.h.b16 %v1539
    %v2296 = vunpack.c.l.b16 %v1540
    %v2297 = vunpack.c.h.b16 %v1540
    %v2298 = vunpack.c.l.b16 %v1541
    %v2299 = vunpack.c.h.b16 %v1541
    %v2300 = vunpack.c.l.b16 %v1542
    %v2301 = vunpack.c.h.b16 %v1542
    %v2302 = vunpack.c.l.b16 %v1543
    %v2303 = vunpack.c.h.b16 %v1543
    %v2304 = vunpack.c.l.b16 %v1544
    %v2305 = vunpack.c.h.b16 %v1544
    %v2306 = vunpack.c.l.b16 %v1545
    %v2307 = vunpack.c.h.b16 %v1545
    %v2308 = vunpack.c.l.b16 %v1546
    %v2309 = vunpack.c.h.b16 %v1546
    %v2310 = vunpack.c.l.b16 %v1547
    %v2311 = vunpack.c.h.b16 %v1547
    %v2312 = vunpack.c.l.b16 %v1548
    %v2313 = vunpack.c.h.b16 %v1548
    %v2314 = vunpack.c.l.b16 %v1549
    %v2315 = vunpack.c.h.b16 %v1549
    %v2316 = vunpack.c.l.b16 %v1550
    %v2317 = vunpack.c.h.b16 %v1550
    %v2318 = vunpack.c.l.b16 %v1551
    %v2319 = vunpack.c.h.b16 %v1551
    %v2320 = vunpack.c.l.b16 %v1552
    %v2321 = vunpack.c.h.b16 %v1552
    %v2322 = vunpack.c.l.b16 %v1553
    %v2323 = vunpack.c.h.b16 %v1553
    %v2324 = vunpack.c.l.b16 %v1554
    %v2325 = vunpack.c.h.b16 %v1554
    %v2326 = vunpack.c.l.b16 %v1555
    %v2327 = vunpack.c.h.b16 %v1555
    %v2328 = vunpack.c.l.b16 %v1556
    %v2329 = vunpack.c.h.b16 %v1556
    %v2330 = vunpack.c.l.b16 %v1557
    %v2331 = vunpack.c.h.b16 %v1557
    %v2332 = vunpack.c.l.b16 %v1558
    %v2333 = vunpack.c.h.b16 %v1558
    %v2334 = vunpack.c.l.b16 %v1559
    %v2335 = vunpack.c.h.b16 %v1559
    %v2336 = vunpack.c.l.b16 %v1560
    %v2337 = vunpack.c.h.b16 %v1560
    %v2338 = vunpack.c.l.b16 %v1561
    %v2339 = vunpack.c.h.b16 %v1561
    %v2340 = vunpack.c.l.b16 %v1562
    %v2341 = vunpack.c.h.b16 %v1562
    %v2342 = vunpack.c.l.b16 %v1563
    %v2343 = vunpack.c.h.b16 %v1563
    %v2344 = vunpack.c.l.b16 %v1564
    %v2345 = vunpack.c.h.b16 %v1564
    %v2346 = vunpack.c.l.b16 %v1565
    %v2347 = vunpack.c.h.b16 %v1565
    %v2348 = vunpack.c.l.b16 %v1566
    %v2349 = vunpack.c.h.b16 %v1566
    %v2350 = vunpack.c.l.b16 %v1567
    %v2351 = vunpack.c.h.b16 %v1567
    %v2352 = vunpack.c.l.b16 %v1568
    %v2353 = vunpack.c.h.b16 %v1568
    %v2354 = vunpack.c.l.b16 %v1569
    %v2355 = vunpack.c.h.b16 %v1569
    %v2356 = vunpack.c.l.b16 %v1570
    %v2357 = vunpack.c.h.b16 %v1570
    %v2358 = vunpack.c.l.b16 %v1571
    %v2359 = vunpack.c.h.b16 %v1571
    %v2360 = vunpack.c.l.b16 %v1572
    %v2361 = vunpack.c.h.b16 %v1572
    %v2362 = vunpack.c.l.b16 %v1573
    %v2363 = vunpack.c.h.b16 %v1573
    %v2364 = vunpack.c.l.b16 %v1574
    %v2365 = vunpack.c.h.b16 %v1574
    %v2366 = vunpack.c.l.b16 %v1575
    %v2367 = vunpack.c.h.b16 %v1575
    %v2368 = vunpack.c.l.b16 %v1576
    %v2369 = vunpack.c.h.b16 %v1576
    %v2370 = vunpack.c.l.b16 %v1577
    %v2371 = vunpack.c.h.b16 %v1577
    %v2372 = vunpack.c.l.b16 %v1578
    %v2373 = vunpack.c.h.b16 %v1578
    %v2374 = vunpack.c.l.b16 %v1579
    %v2375 = vunpack.c.h.b16 %v1579
    %v2376 = vunpack.c.l.b16 %v1580
    %v2377 = vunpack.c.h.b16 %v1580
    %v2378 = vunpack.c.l.b16 %v1581
    %v2379 = vunpack.c.h.b16 %v1581
    %v2380 = vunpack.c.l.b16 %v1582
    %v2381 = vunpack.c.h.b16 %v1582
    %v2382 = vunpack.c.l.b16 %v1583
    %v2383 = vunpack.c.h.b16 %v1583
    %v2384 = vunpack.c.l.b16 %v1584
    %v2385 = vunpack.c.h.b16 %v1584
    %v2386 = vunpack.c.l.b16 %v1585
    %v2387 = vunpack.c.h.b16 %v1585
    %v2388 = vunpack.c.l.b16 %v1586
    %v2389 = vunpack.c.h.b16 %v1586
    %v2390 = vunpack.c.l.b16 %v1587
    %v2391 = vunpack.c.h.b16 %v1587
    %v2392 = vunpack.c.l.b16 %v1588
    %v2393 = vunpack.c.h.b16 %v1588
    %v2394 = vunpack.c.l.b16 %v1589
    %v2395 = vunpack.c.h.b16 %v1589
    %v2396 = vunpack.c.l.b16 %v1590
    %v2397 = vunpack.c.h.b16 %v1590
    %v2398 = vunpack.c.l.b16 %v1591
    %v2399 = vunpack.c.h.b16 %v1591
    %v2400 = vunpack.c.l.b16 %v1592
    %v2401 = vunpack.c.h.b16 %v1592
    %v2402 = vunpack.c.l.b16 %v1593
    %v2403 = vunpack.c.h.b16 %v1593
    %v2404 = vunpack.c.l.b16 %v1594
    %v2405 = vunpack.c.h.b16 %v1594
    %v2406 = vunpack.c.l.b16 %v1595
    %v2407 = vunpack.c.h.b16 %v1595
    %v2408 = vunpack.c.l.b16 %v1596
    %v2409 = vunpack.c.h.b16 %v1596
    %v2410 = vunpack.c.l.b16 %v1597
    %v2411 = vunpack.c.h.b16 %v1597
    %v2412 = vunpack.c.l.b16 %v1598
    %v2413 = vunpack.c.h.b16 %v1598
    %v2414 = vunpack.c.l.b16 %v1599
    %v2415 = vunpack.c.h.b16 %v1599
    %v2416 = vunpack.c.l.b16 %v1600
    %v2417 = vunpack.c.h.b16 %v1600
    %v2418 = vunpack.c.l.b16 %v1601
    %v2419 = vunpack.c.h.b16 %v1601
    %v2420 = vunpack.c.l.b16 %v1602
    %v2421 = vunpack.c.h.b16 %v1602
    %v2422 = vunpack.c.l.b16 %v1603
    %v2423 = vunpack.c.h.b16 %v1603
    %v2424 = vunpack.c.l.b16 %v1604
    %v2425 = vunpack.c.h.b16 %v1604
    %v2426 = vunpack.c.l.b16 %v1605
    %v2427 = vunpack.c.h.b16 %v1605
    %v2428 = vunpack.c.l.b16 %v1606
    %v2429 = vunpack.c.h.b16 %v1606
    %v2430 = vunpack.c.l.b16 %v1607
    %v2431 = vunpack.c.h.b16 %v1607
    %v2432 = vunpack.c.l.b16 %v1608
    %v2433 = vunpack.c.h.b16 %v1608
    %v2434 = vunpack.c.l.b16 %v1609
    %v2435 = vunpack.c.h.b16 %v1609
    %v2436 = vunpack.c.l.b16 %v1610
    %v2437 = vunpack.c.h.b16 %v1610
    %v2438 = vunpack.c.l.b16 %v1611
    %v2439 = vunpack.c.h.b16 %v1611
    %v2440 = vunpack.c.l.b16 %v1612
    %v2441 = vunpack.c.h.b16 %v1612
    %v2442 = vunpack.c.l.b16 %v1613
    %v2443 = vunpack.c.h.b16 %v1613
    %v2444 = vunpack.c.l.b16 %v1614
    %v2445 = vunpack.c.h.b16 %v1614
    %v2446 = vunpack.c.l.b16 %v1615
    %v2447 = vunpack.c.h.b16 %v1615
    %v2448 = vunpack.c.l.b16 %v1616
    %v2449 = vunpack.c.h.b16 %v1616
    %v2450 = vunpack.c.l.b16 %v1617
    %v2451 = vunpack.c.h.b16 %v1617
    %v2452 = vunpack.c.l.b16 %v1618
    %v2453 = vunpack.c.h.b16 %v1618
    %v2454 = vunpack.c.l.b16 %v1619
    %v2455 = vunpack.c.h.b16 %v1619
    %v2456 = vunpack.c.l.b16 %v1620
    %v2457 = vunpack.c.h.b16 %v1620
    %v2458 = vunpack.c.l.b16 %v1621
    %v2459 = vunpack.c.h.b16 %v1621
    %v2460 = vunpack.c.l.b16 %v1622
    %v2461 = vunpack.c.h.b16 %v1622
    %v2462 = vunpack.c.l.b16 %v1623
    %v2463 = vunpack.c.h.b16 %v1623
    %v2464 = vunpack.c.l.b16 %v1624
    %v2465 = vunpack.c.h.b16 %v1624
    %v2466 = vunpack.c.l.b16 %v1625
    %v2467 = vunpack.c.h.b16 %v1625
    %v2468 = vunpack.c.l.b16 %v1626
    %v2469 = vunpack.c.h.b16 %v1626
    %v2470 = vunpack.c.l.b16 %v1627
    %v2471 = vunpack.c.h.b16 %v1627
    %v2472 = vunpack.c.l.b16 %v1628
    %v2473 = vunpack.c.h.b16 %v1628
    %v2474 = vpack.c.b16 %v1970, %v1962
    %v2475 = vpack.c.b16 %v1971, %v1963
    %v2476 = vpack.c.b16 %v1972, %v1964
    %v2477 = vpack.c.b16 %v1973, %v1965
    %v2478 = vpack.c.b16 %v1974, %v1966
    %v2479 = vpack.c.b16 %v1975, %v1967
    %v2480 = vpack.c.b16 %v1976, %v1968
    %v2481 = vpack.c.b16 %v1977, %v1969
    %v2482 = vpack.c.b16 %v1986, %v1978
    %v2483 = vpack.c.b16 %v1987, %v1979
    %v2484 = vpack.c.b16 %v1988, %v1980
    %v2485 = vpack.c.b16 %v1989, %v1981
    %v2486 = vpack.c.b16 %v1990, %v1982
    %v2487 = vpack.c.b16 %v1991, %v1983
    %v2488 = vpack.c.b16 %v1992, %v1984
    %v2489 = vpack.c.b16 %v1993, %v1985
    %v2490 = vpack.c.b16 %v2002, %v1994
    %v2491 = vpack.c.b16 %v2003, %v1995
    %v2492 = vpack.c.b16 %v2004, %v1996
    %v2493 = vpack.c.b16 %v2005, %v1997
    %v2494 = vpack.c.b16 %v2006, %v1998
    %v2495 = vpack.c.b16 %v2007, %v1999
    %v2496 = vpack.c.b16 %v2008, %v2000
    %v2497 = vpack.c.b16 %v2009, %v2001
    %v2498 = vpack.c.b16 %v2018, %v2010
    %v2499 = vpack.c.b16 %v2019, %v2011
    %v2500 = vpack.c.b16 %v2020, %v2012
    %v2501 = vpack.c.b16 %v2021, %v2013
    %v2502 = vpack.c.b16 %v2022, %v2014
    %v2503 = vpack.c.b16 %v2023, %v2015
    %v2504 = vpack.c.b16 %v2024, %v2016
    %v2505 = vpack.c.b16 %v2025, %v2017
    %v2506 = vpack.c.b16 %v2034, %v2026
    %v2507 = vpack.c.b16 %v2035, %v2027
    %v2508 = vpack.c.b16 %v2036, %v2028
    %v2509 = vpack.c.b16 %v2037, %v2029
    %v2510 = vpack.c.b16 %v2038, %v2030
    %v2511 = vpack.c.b16 %v2039, %v2031
    %v2512 = vpack.c.b16 %v2040, %v2032
    %v2513 = vpack.c.b16 %v2041, %v2033
    %v2514 = vpack.c.b16 %v2050, %v2042
    %v2515 = vpack.c.b16 %v2051, %v2043
    %v2516 = vpack.c.b16 %v2052, %v2044
    %v2517 = vpack.c.b16 %v2053, %v2045
    %v2518 = vpack.c.b16 %v2054, %v2046
    %v2519 = vpack.c.b16 %v2055, %v2047
    %v2520 = vpack.c.b16 %v2056, %v2048
    %v2521 = vpack.c.b16 %v2057, %v2049
    %v2522 = vpack.c.b16 %v2066, %v2058
    %v2523 = vpack.c.b16 %v2067, %v2059
    %v2524 = vpack.c.b16 %v2068, %v2060
    %v2525 = vpack.c.b16 %v2069, %v2061
    %v2526 = vpack.c.b16 %v2070, %v2062
    %v2527 = vpack.c.b16 %v2071, %v2063
    %v2528 = vpack.c.b16 %v2072, %v2064
    %v2529 = vpack.c.b16 %v2073, %v2065
    %v2530 = vpack.c.b16 %v2082, %v2074
    %v2531 = vpack.c.b16 %v2083, %v2075
    %v2532 = vpack.c.b16 %v2084, %v2076
    %v2533 = vpack.c.b16 %v2085, %v2077
    %v2534 = vpack.c.b16 %v2086, %v2078
    %v2535 = vpack.c.b16 %v2087, %v2079
    %v2536 = vpack.c.b16 %v2088, %v2080
    %v2537 = vpack.c.b16 %v2089, %v2081
    %v2538 = vpack.c.b16 %v2098, %v2090
    %v2539 = vpack.c.b16 %v2099, %v2091
    %v2540 = vpack.c.b16 %v2100, %v2092
    %v2541 = vpack.c.b16 %v2101, %v2093
    %v2542 = vpack.c.b16 %v2102, %v2094
    %v2543 = vpack.c.b16 %v2103, %v2095
    %v2544 = vpack.c.b16 %v2104, %v2096
    %v2545 = vpack.c.b16 %v2105, %v2097
    %v2546 = vpack.c.b16 %v2114, %v2106
    %v2547 = vpack.c.b16 %v2115, %v2107
    %v2548 = vpack.c.b16 %v2116, %v2108
    %v2549 = vpack.c.b16 %v2117, %v2109
    %v2550 = vpack.c.b16 %v2118, %v2110
    %v2551 = vpack.c.b16 %v2119, %v2111
    %v2552 = vpack.c.b16 %v2120, %v2112
    %v2553 = vpack.c.b16 %v2121, %v2113
    %v2554 = vpack.c.b16 %v2130, %v2122
    %v2555 = vpack.c.b16 %v2131, %v2123
    %v2556 = vpack.c.b16 %v2132, %v2124
    %v2557 = vpack.c.b16 %v2133, %v2125
    %v2558 = vpack.c.b16 %v2134, %v2126
    %v2559 = vpack.c.b16 %v2135, %v2127
    %v2560 = vpack.c.b16 %v2136, %v2128
    %v2561 = vpack.c.b16 %v2137, %v2129
    %v2562 = vpack.c.b16 %v2146, %v2138
    %v2563 = vpack.c.b16 %v2147, %v2139
    %v2564 = vpack.c.b16 %v2148, %v2140
    %v2565 = vpack.c.b16 %v2149, %v2141
    %v2566 = vpack.c.b16 %v2150, %v2142
    %v2567 = vpack.c.b16 %v2151, %v2143
    %v2568 = vpack.c.b16 %v2152, %v2144
    %v2569 = vpack.c.b16 %v2153, %v2145
    %v2570 = vpack.c.b16 %v2162, %v2154
    %v2571 = vpack.c.b16 %v2163, %v2155
    %v2572 = vpack.c.b16 %v2164, %v2156
    %v2573 = vpack.c.b16 %v2165, %v2157
    %v2574 = vpack.c.b16 %v2166, %v2158
    %v2575 = vpack.c.b16 %v2167, %v2159
    %v2576 = vpack.c.b16 %v2168, %v2160
    %v2577 = vpack.c.b16 %v2169, %v2161
    %v2578 = vpack.c.b16 %v2178, %v2170
    %v2579 = vpack.c.b16 %v2179, %v2171
    %v2580 = vpack.c.b16 %v2180, %v2172
    %v2581 = vpack.c.b16 %v2181, %v2173
    %v2582 = vpack.c.b16 %v2182, %v2174
    %v2583 = vpack.c.b16 %v2183, %v2175
    %v2584 = vpack.c.b16 %v2184, %v2176
    %v2585 = vpack.c.b16 %v2185, %v2177
    %v2586 = vpack.c.b16 %v2194, %v2186
    %v2587 = vpack.c.b16 %v2195, %v2187
    %v2588 = vpack.c.b16 %v2196, %v2188
    %v2589 = vpack.c.b16 %v2197, %v2189
    %v2590 = vpack.c.b16 %v2198, %v2190
    %v2591 = vpack.c.b16 %v2199, %v2191
    %v2592 = vpack.c.b16 %v2200, %v2192
    %v2593 = vpack.c.b16 %v2201, %v2193
    %v2594 = vpack.c.b16 %v2210, %v2202
    %v2595 = vpack.c.b16 %v2211, %v2203
    %v2596 = vpack.c.b16 %v2212, %v2204
    %v2597 = vpack.c.b16 %v2213, %v2205
    %v2598 = vpack.c.b16 %v2214, %v2206
    %v2599 = vpack.c.b16 %v2215, %v2207
    %v2600 = vpack.c.b16 %v2216, %v2208
    %v2601 = vpack.c.b16 %v2217, %v2209
    %v2602 = vpack.c.b16 %v2226, %v2218
    %v2603 = vpack.c.b16 %v2227, %v2219
    %v2604 = vpack.c.b16 %v2228, %v2220
    %v2605 = vpack.c.b16 %v2229, %v2221
    %v2606 = vpack.c.b16 %v2230, %v2222
    %v2607 = vpack.c.b16 %v2231, %v2223
    %v2608 = vpack.c.b16 %v2232, %v2224
    %v2609 = vpack.c.b16 %v2233, %v2225
    %v2610 = vpack.c.b16 %v2242, %v2234
    %v2611 = vpack.c.b16 %v2243, %v2235
    %v2612 = vpack.c.b16 %v2244, %v2236
    %v2613 = vpack.c.b16 %v2245, %v2237
    %v2614 = vpack.c.b16 %v2246, %v2238
    %v2615 = vpack.c.b16 %v2247, %v2239
    %v2616 = vpack.c.b16 %v2248, %v2240
    %v2617 = vpack.c.b16 %v2249, %v2241
    %v2618 = vpack.c.b16 %v2258, %v2250
    %v2619 = vpack.c.b16 %v2259, %v2251
    %v2620 = vpack.c.b16 %v2260, %v2252
    %v2621 = vpack.c.b16 %v2261, %v2253
    %v2622 = vpack.c.b16 %v2262, %v2254
    %v2623 = vpack.c.b16 %v2263, %v2255
    %v2624 = vpack.c.b16 %v2264, %v2256
    %v2625 = vpack.c.b16 %v2265, %v2257
    %v2626 = vpack.c.b16 %v2274, %v2266
    %v2627 = vpack.c.b16 %v2275, %v2267
    %v2628 = vpack.c.b16 %v2276, %v2268
    %v2629 = vpack.c.b16 %v2277, %v2269
    %v2630 = vpack.c.b16 %v2278, %v2270
    %v2631 = vpack.c.b16 %v2279, %v2271
    %v2632 = vpack.c.b16 %v2280, %v2272
    %v2633 = vpack.c.b16 %v2281, %v2273
    %v2634 = vpack.c.b16 %v2290, %v2282
    %v2635 = vpack.c.b16 %v2291, %v2283
    %v2636 = vpack.c.b16 %v2292, %v2284
    %v2637 = vpack.c.b16 %v2293, %v2285
    %v2638 = vpack.c.b16 %v2294, %v2286
    %v2639 = vpack.c.b16 %v2295, %v2287
    %v2640 = vpack.c.b16 %v2296, %v2288
    %v2641 = vpack.c.b16 %v2297, %v2289
    %v2642 = vpack.c.b16 %v2306, %v2298
    %v2643 = vpack.c.b16 %v2307, %v2299
    %v2644 = vpack.c.b16 %v2308, %v2300
    %v2645 = vpack.c.b16 %v2309, %v2301
    %v2646 = vpack.c.b16 %v2310, %v2302
    %v2647 = vpack.c.b16 %v2311, %v2303
    %v2648 = vpack.c.b16 %v2312, %v2304
    %v2649 = vpack.c.b16 %v2313, %v2305
    %v2650 = vpack.c.b16 %v2322, %v2314
    %v2651 = vpack.c.b16 %v2323, %v2315
    %v2652 = vpack.c.b16 %v2324, %v2316
    %v2653 = vpack.c.b16 %v2325, %v2317
    %v2654 = vpack.c.b16 %v2326, %v2318
    %v2655 = vpack.c.b16 %v2327, %v2319
    %v2656 = vpack.c.b16 %v2328, %v2320
    %v2657 = vpack.c.b16 %v2329, %v2321
    %v2658 = vpack.c.b16 %v2338, %v2330
    %v2659 = vpack.c.b16 %v2339, %v2331
    %v2660 = vpack.c.b16 %v2340, %v2332
    %v2661 = vpack.c.b16 %v2341, %v2333
    %v2662 = vpack.c.b16 %v2342, %v2334
    %v2663 = vpack.c.b16 %v2343, %v2335
    %v2664 = vpack.c.b16 %v2344, %v2336
    %v2665 = vpack.c.b16 %v2345, %v2337
    %v2666 = vpack.c.b16 %v2354, %v2346
    %v2667 = vpack.c.b16 %v2355, %v2347
    %v2668 = vpack.c.b16 %v2356, %v2348
    %v2669 = vpack.c.b16 %v2357, %v2349
    %v2670 = vpack.c.b16 %v2358, %v2350
    %v2671 = vpack.c.b16 %v2359, %v2351
    %v2672 = vpack.c.b16 %v2360, %v2352
    %v2673 = vpack.c.b16 %v2361, %v2353
    %v2674 = vpack.c.b16 %v2370, %v2362
    %v2675 = vpack.c.b16 %v2371, %v2363
    %v2676 = vpack.c.b16 %v2372, %v2364
    %v2677 = vpack.c.b16 %v2373, %v2365
    %v2678 = vpack.c.b16 %v2374, %v2366
    %v2679 = vpack.c.b16 %v2375, %v2367
    %v2680 = vpack.c.b16 %v2376, %v2368
    %v2681 = vpack.c.b16 %v2377, %v2369
    %v2682 = vpack.c.b16 %v2386, %v2378
    %v2683 = vpack.c.b16 %v2387, %v2379
    %v2684 = vpack.c.b16 %v2388, %v2380
    %v2685 = vpack.c.b16 %v2389, %v2381
    %v2686 = vpack.c.b16 %v2390, %v2382
    %v2687 = vpack.c.b16 %v2391, %v2383
    %v2688 = vpack.c.b16 %v2392, %v2384
    %v2689 = vpack.c.b16 %v2393, %v2385
    %v2690 = vpack.c.b16 %v2402, %v2394
    %v2691 = vpack.c.b16 %v2403, %v2395
    %v2692 = vpack.c.b16 %v2404, %v2396
    %v2693 = vpack.c.b16 %v2405, %v2397
    %v2694 = vpack.c.b16 %v2406, %v2398
    %v2695 = vpack.c.b16 %v2407, %v2399
    %v2696 = vpack.c.b16 %v2408, %v2400
    %v2697 = vpack.c.b16 %v2409, %v2401
    %v2698 = vpack.c.b16 %v2418, %v2410
    %v2699 = vpack.c.b16 %v2419, %v2411
    %v2700 = vpack.c.b16 %v2420, %v2412
    %v2701 = vpack.c.b16 %v2421, %v2413
    %v2702 = vpack.c.b16 %v2422, %v2414
    %v2703 = vpack.c.b16 %v2423, %v2415
    %v2704 = vpack.c.b16 %v2424, %v2416
    %v2705 = vpack.c.b16 %v2425, %v2417
    %v2706 = vpack.c.b16 %v2434, %v2426
    %v2707 = vpack.c.b16 %v2435, %v2427
    %v2708 = vpack.c.b16 %v2436, %v2428
    %v2709 = vpack.c.b16 %v2437, %v2429
    %v2710 = vpack.c.b16 %v2438, %v2430
    %v2711 = vpack.c.b16 %v2439, %v2431
    %v2712 = vpack.c.b16 %v2440, %v2432
    %v2713 = vpack.c.b16 %v2441, %v2433
    %v2714 = vpack.c.b16 %v2450, %v2442
    %v2715 = vpack.c.b16 %v2451, %v2443
    %v2716 = vpack.c.b16 %v2452, %v2444
    %v2717 = vpack.c.b16 %v2453, %v2445
    %v2718 = vpack.c.b16 %v2454, %v2446
    %v2719 = vpack.c.b16 %v2455, %v2447
    %v2720 = vpack.c.b16 %v2456, %v2448
    %v2721 = vpack.c.b16 %v2457, %v2449
    %v2722 = vpack.c.b16 %v2466, %v2458
    %v2723 = vpack.c.b16 %v2467, %v2459
    %v2724 = vpack.c.b16 %v2468, %v2460
    %v2725 = vpack.c.b16 %v2469, %v2461
    %v2726 = vpack.c.b16 %v2470, %v2462
    %v2727 = vpack.c.b16 %v2471, %v2463
    %v2728 = vpack.c.b16 %v2472, %v2464
    %v2729 = vpack.c.b16 %v2473, %v2465
    %2986 = vmatprep.subr.bf16.mxu0 %v2475
    %2987 = vmatpush1.bf16.msra.mxu0 %v2474
    %2988 = vmatprep.subr.bf16.mxu0 %v2483
    %2989 = vmatpush1.bf16.msra.mxu0 %v2482
    %2990 = vmatprep.subr.bf16.mxu0 %v2491
    %2991 = vmatpush1.bf16.msra.mxu0 %v2490
    %2992 = vmatprep.subr.bf16.mxu0 %v2499
    %2993 = vmatpush1.bf16.msra.mxu0 %v2498
    %2994 = vmatprep.subr.bf16.mxu0 %v2507
    %2995 = vmatpush1.bf16.msra.mxu0 %v2506
    %2996 = vmatprep.subr.bf16.mxu0 %v2515
    %2997 = vmatpush1.bf16.msra.mxu0 %v2514
    %2998 = vmatprep.subr.bf16.mxu0 %v2523
    %2999 = vmatpush1.bf16.msra.mxu0 %v2522
    %3000 = vmatprep.subr.bf16.mxu0 %v2531
    %3001 = vmatpush1.bf16.msra.mxu0 %v2530
    %3002 = vmatprep.subr.bf16.mxu0 %v2539
    %3003 = vmatpush1.bf16.msra.mxu0 %v2538
    %3004 = vmatprep.subr.bf16.mxu0 %v2547
    %3005 = vmatpush1.bf16.msra.mxu0 %v2546
    %3006 = vmatprep.subr.bf16.mxu0 %v2555
    %3007 = vmatpush1.bf16.msra.mxu0 %v2554
    %3008 = vmatprep.subr.bf16.mxu0 %v2563
    %3009 = vmatpush1.bf16.msra.mxu0 %v2562
    %3010 = vmatprep.subr.bf16.mxu0 %v2571
    %3011 = vmatpush1.bf16.msra.mxu0 %v2570
    %3012 = vmatprep.subr.bf16.mxu0 %v2579
    %3013 = vmatpush1.bf16.msra.mxu0 %v2578
    %3014 = vmatprep.subr.bf16.mxu0 %v2587
    %3015 = vmatpush1.bf16.msra.mxu0 %v2586
    %3016 = vmatprep.subr.bf16.mxu0 %v2595
    %3017 = vmatpush1.bf16.msra.mxu0 %v2594
    %3018 = vmatprep.mubr.bf16.mxu0 %v1370
    %3019 = vmatmul.mubr.bf16.gmra.mrb[0].mxu0 %v1369
    %v3020 = vpop.f32.mrb[0].mxu0
    %v3021 = vadd.f32 %v1677, %v3020
    %v3022 = vpop.f32.mrb[0].mxu0
    %v3023 = vadd.f32 %v1681, %v3022
    %v3024 = vpop.f32.mrb[0].mxu0
    %v3025 = vpop.f32.mrb[0].mxu0
    %3026 = vdwg.mxu0
    %3027 = vmatprep.subr.bf16.mxu0 %v2603
    %3028 = vmatpush1.bf16.msra.mxu0 %v2602
    %3029 = vmatprep.subr.bf16.mxu0 %v2611
    %3030 = vmatpush1.bf16.msra.mxu0 %v2610
    %3031 = vmatprep.subr.bf16.mxu0 %v2619
    %3032 = vmatpush1.bf16.msra.mxu0 %v2618
    %3033 = vmatprep.subr.bf16.mxu0 %v2627
    %3034 = vmatpush1.bf16.msra.mxu0 %v2626
    %3035 = vmatprep.subr.bf16.mxu0 %v2635
    %3036 = vmatpush1.bf16.msra.mxu0 %v2634
    %3037 = vmatprep.subr.bf16.mxu0 %v2643
    %3038 = vmatpush1.bf16.msra.mxu0 %v2642
    %3039 = vmatprep.subr.bf16.mxu0 %v2651
    %3040 = vmatpush1.bf16.msra.mxu0 %v2650
    %3041 = vmatprep.subr.bf16.mxu0 %v2659
    %3042 = vmatpush1.bf16.msra.mxu0 %v2658
    %3043 = vmatprep.subr.bf16.mxu0 %v2667
    %3044 = vmatpush1.bf16.msra.mxu0 %v2666
    %3045 = vmatprep.subr.bf16.mxu0 %v2675
    %3046 = vmatpush1.bf16.msra.mxu0 %v2674
    %3047 = vmatprep.subr.bf16.mxu0 %v2683
    %3048 = vmatpush1.bf16.msra.mxu0 %v2682
    %3049 = vmatprep.subr.bf16.mxu0 %v2691
    %3050 = vmatpush1.bf16.msra.mxu0 %v2690
    %3051 = vmatprep.subr.bf16.mxu0 %v2699
    %3052 = vmatpush1.bf16.msra.mxu0 %v2698
    %3053 = vmatprep.subr.bf16.mxu0 %v2707
    %3054 = vmatpush1.bf16.msra.mxu0 %v2706
    %3055 = vmatprep.subr.bf16.mxu0 %v2715
    %3056 = vmatpush1.bf16.msra.mxu0 %v2714
    %3057 = vmatprep.subr.bf16.mxu0 %v2723
    %3058 = vmatpush1.bf16.msra.mxu0 %v2722
    %3059 = vmatprep.mubr.bf16.mxu0 %v1372
    %3060 = vmatmul.mubr.bf16.gmra.mrb[0].mxu0 %v1371
    %v3061 = vpop.f32.mrb[0].mxu0
    %v3062 = vadd.f32 %v3021, %v3061
    %v3063 = vpop.f32.mrb[0].mxu0
    %v3064 = vadd.f32 %v3023, %v3063
    %v3065 = vpop.f32.mrb[0].mxu0
    %v3066 = vpop.f32.mrb[0].mxu0
    %3067 = vdwg.mxu0
    %3068 = vmatprep.subr.bf16.mxu0 %v2477
    %3069 = vmatpush1.bf16.msra.mxu0 %v2476
    %3070 = vmatprep.subr.bf16.mxu0 %v2485
    %3071 = vmatpush1.bf16.msra.mxu0 %v2484
    %3072 = vmatprep.subr.bf16.mxu0 %v2493
    %3073 = vmatpush1.bf16.msra.mxu0 %v2492
    %3074 = vmatprep.subr.bf16.mxu0 %v2501
    %3075 = vmatpush1.bf16.msra.mxu0 %v2500
    %3076 = vmatprep.subr.bf16.mxu0 %v2509
    %3077 = vmatpush1.bf16.msra.mxu0 %v2508
    %3078 = vmatprep.subr.bf16.mxu0 %v2517
    %3079 = vmatpush1.bf16.msra.mxu0 %v2516
    %3080 = vmatprep.subr.bf16.mxu0 %v2525
    %3081 = vmatpush1.bf16.msra.mxu0 %v2524
    %3082 = vmatprep.subr.bf16.mxu0 %v2533
    %3083 = vmatpush1.bf16.msra.mxu0 %v2532
    %3084 = vmatprep.subr.bf16.mxu0 %v2541
    %3085 = vmatpush1.bf16.msra.mxu0 %v2540
    %3086 = vmatprep.subr.bf16.mxu0 %v2549
    %3087 = vmatpush1.bf16.msra.mxu0 %v2548
    %3088 = vmatprep.subr.bf16.mxu0 %v2557
    %3089 = vmatpush1.bf16.msra.mxu0 %v2556
    %3090 = vmatprep.subr.bf16.mxu0 %v2565
    %3091 = vmatpush1.bf16.msra.mxu0 %v2564
    %3092 = vmatprep.subr.bf16.mxu0 %v2573
    %3093 = vmatpush1.bf16.msra.mxu0 %v2572
    %3094 = vmatprep.subr.bf16.mxu0 %v2581
    %3095 = vmatpush1.bf16.msra.mxu0 %v2580
    %3096 = vmatprep.subr.bf16.mxu0 %v2589
    %3097 = vmatpush1.bf16.msra.mxu0 %v2588
    %3098 = vmatprep.subr.bf16.mxu0 %v2597
    %3099 = vmatpush1.bf16.msra.mxu0 %v2596
    %3100 = vmatprep.mubr.bf16.mxu0 %v1370
    %3101 = vmatmul.mubr.bf16.gmra.mrb[0].mxu0 %v1369
    %v3102 = vpop.f32.mrb[0].mxu0
    %v3103 = vadd.f32 %v1685, %v3102
    %v3104 = vpop.f32.mrb[0].mxu0
    %v3105 = vadd.f32 %v1689, %v3104
    %v3106 = vpop.f32.mrb[0].mxu0
    %v3107 = vpop.f32.mrb[0].mxu0
    %3108 = vdwg.mxu0
    %3109 = vmatprep.subr.bf16.mxu0 %v2605
    %3110 = vmatpush1.bf16.msra.mxu0 %v2604
    %3111 = vmatprep.subr.bf16.mxu0 %v2613
    %3112 = vmatpush1.bf16.msra.mxu0 %v2612
    %3113 = vmatprep.subr.bf16.mxu0 %v2621
    %3114 = vmatpush1.bf16.msra.mxu0 %v2620
    %3115 = vmatprep.subr.bf16.mxu0 %v2629
    %3116 = vmatpush1.bf16.msra.mxu0 %v2628
    %3117 = vmatprep.subr.bf16.mxu0 %v2637
    %3118 = vmatpush1.bf16.msra.mxu0 %v2636
    %3119 = vmatprep.subr.bf16.mxu0 %v2645
    %3120 = vmatpush1.bf16.msra.mxu0 %v2644
    %3121 = vmatprep.subr.bf16.mxu0 %v2653
    %3122 = vmatpush1.bf16.msra.mxu0 %v2652
    %3123 = vmatprep.subr.bf16.mxu0 %v2661
    %3124 = vmatpush1.bf16.msra.mxu0 %v2660
    %3125 = vmatprep.subr.bf16.mxu0 %v2669
    %3126 = vmatpush1.bf16.msra.mxu0 %v2668
    %3127 = vmatprep.subr.bf16.mxu0 %v2677
    %3128 = vmatpush1.bf16.msra.mxu0 %v2676
    %3129 = vmatprep.subr.bf16.mxu0 %v2685
    %3130 = vmatpush1.bf16.msra.mxu0 %v2684
    %3131 = vmatprep.subr.bf16.mxu0 %v2693
    %3132 = vmatpush1.bf16.msra.mxu0 %v2692
    %3133 = vmatprep.subr.bf16.mxu0 %v2701
    %3134 = vmatpush1.bf16.msra.mxu0 %v2700
    %3135 = vmatprep.subr.bf16.mxu0 %v2709
    %3136 = vmatpush1.bf16.msra.mxu0 %v2708
    %3137 = vmatprep.subr.bf16.mxu0 %v2717
    %3138 = vmatpush1.bf16.msra.mxu0 %v2716
    %3139 = vmatprep.subr.bf16.mxu0 %v2725
    %3140 = vmatpush1.bf16.msra.mxu0 %v2724
    %3141 = vmatprep.mubr.bf16.mxu0 %v1372
    %3142 = vmatmul.mubr.bf16.gmra.mrb[0].mxu0 %v1371
    %v3143 = vpop.f32.mrb[0].mxu0
    %v3144 = vadd.f32 %v3103, %v3143
    %v3145 = vpop.f32.mrb[0].mxu0
    %v3146 = vadd.f32 %v3105, %v3145
    %v3147 = vpop.f32.mrb[0].mxu0
    %v3148 = vpop.f32.mrb[0].mxu0
    %3149 = vdwg.mxu0
    %3150 = vmatprep.subr.bf16.mxu0 %v2479
    %3151 = vmatpush1.bf16.msra.mxu0 %v2478
    %3152 = vmatprep.subr.bf16.mxu0 %v2487
    %3153 = vmatpush1.bf16.msra.mxu0 %v2486
    %3154 = vmatprep.subr.bf16.mxu0 %v2495
    %3155 = vmatpush1.bf16.msra.mxu0 %v2494
    %3156 = vmatprep.subr.bf16.mxu0 %v2503
    %3157 = vmatpush1.bf16.msra.mxu0 %v2502
    %3158 = vmatprep.subr.bf16.mxu0 %v2511
    %3159 = vmatpush1.bf16.msra.mxu0 %v2510
    %3160 = vmatprep.subr.bf16.mxu0 %v2519
    %3161 = vmatpush1.bf16.msra.mxu0 %v2518
    %3162 = vmatprep.subr.bf16.mxu0 %v2527
    %3163 = vmatpush1.bf16.msra.mxu0 %v2526
    %3164 = vmatprep.subr.bf16.mxu0 %v2535
    %3165 = vmatpush1.bf16.msra.mxu0 %v2534
    %3166 = vmatprep.subr.bf16.mxu0 %v2543
    %3167 = vmatpush1.bf16.msra.mxu0 %v2542
    %3168 = vmatprep.subr.bf16.mxu0 %v2551
    %3169 = vmatpush1.bf16.msra.mxu0 %v2550
    %3170 = vmatprep.subr.bf16.mxu0 %v2559
    %3171 = vmatpush1.bf16.msra.mxu0 %v2558
    %3172 = vmatprep.subr.bf16.mxu0 %v2567
    %3173 = vmatpush1.bf16.msra.mxu0 %v2566
    %3174 = vmatprep.subr.bf16.mxu0 %v2575
    %3175 = vmatpush1.bf16.msra.mxu0 %v2574
    %3176 = vmatprep.subr.bf16.mxu0 %v2583
    %3177 = vmatpush1.bf16.msra.mxu0 %v2582
    %3178 = vmatprep.subr.bf16.mxu0 %v2591
    %3179 = vmatpush1.bf16.msra.mxu0 %v2590
    %3180 = vmatprep.subr.bf16.mxu0 %v2599
    %3181 = vmatpush1.bf16.msra.mxu0 %v2598
    %3182 = vmatprep.mubr.bf16.mxu0 %v1370
    %3183 = vmatmul.mubr.bf16.gmra.mrb[0].mxu0 %v1369
    %v3184 = vpop.f32.mrb[0].mxu0
    %v3185 = vadd.f32 %v1693, %v3184
    %v3186 = vpop.f32.mrb[0].mxu0
    %v3187 = vadd.f32 %v1697, %v3186
    %v3188 = vpop.f32.mrb[0].mxu0
    %v3189 = vpop.f32.mrb[0].mxu0
    %3190 = vdwg.mxu0
    %3191 = vmatprep.subr.bf16.mxu0 %v2607
    %3192 = vmatpush1.bf16.msra.mxu0 %v2606
    %3193 = vmatprep.subr.bf16.mxu0 %v2615
    %3194 = vmatpush1.bf16.msra.mxu0 %v2614
    %3195 = vmatprep.subr.bf16.mxu0 %v2623
    %3196 = vmatpush1.bf16.msra.mxu0 %v2622
    %3197 = vmatprep.subr.bf16.mxu0 %v2631
    %3198 = vmatpush1.bf16.msra.mxu0 %v2630
    %3199 = vmatprep.subr.bf16.mxu0 %v2639
    %3200 = vmatpush1.bf16.msra.mxu0 %v2638
    %3201 = vmatprep.subr.bf16.mxu0 %v2647
    %3202 = vmatpush1.bf16.msra.mxu0 %v2646
    %3203 = vmatprep.subr.bf16.mxu0 %v2655
    %3204 = vmatpush1.bf16.msra.mxu0 %v2654
    %3205 = vmatprep.subr.bf16.mxu0 %v2663
    %3206 = vmatpush1.bf16.msra.mxu0 %v2662
    %3207 = vmatprep.subr.bf16.mxu0 %v2671
    %3208 = vmatpush1.bf16.msra.mxu0 %v2670
    %3209 = vmatprep.subr.bf16.mxu0 %v2679
    %3210 = vmatpush1.bf16.msra.mxu0 %v2678
    %3211 = vmatprep.subr.bf16.mxu0 %v2687
    %3212 = vmatpush1.bf16.msra.mxu0 %v2686
    %3213 = vmatprep.subr.bf16.mxu0 %v2695
    %3214 = vmatpush1.bf16.msra.mxu0 %v2694
    %3215 = vmatprep.subr.bf16.mxu0 %v2703
    %3216 = vmatpush1.bf16.msra.mxu0 %v2702
    %3217 = vmatprep.subr.bf16.mxu0 %v2711
    %3218 = vmatpush1.bf16.msra.mxu0 %v2710
    %3219 = vmatprep.subr.bf16.mxu0 %v2719
    %3220 = vmatpush1.bf16.msra.mxu0 %v2718
    %3221 = vmatprep.subr.bf16.mxu0 %v2727
    %3222 = vmatpush1.bf16.msra.mxu0 %v2726
    %3223 = vmatprep.mubr.bf16.mxu0 %v1372
    %3224 = vmatmul.mubr.bf16.gmra.mrb[0].mxu0 %v1371
    %v3225 = vpop.f32.mrb[0].mxu0
    %v3226 = vadd.f32 %v3185, %v3225
    %v3227 = vpop.f32.mrb[0].mxu0
    %v3228 = vadd.f32 %v3187, %v3227
    %v3229 = vpop.f32.mrb[0].mxu0
    %v3230 = vpop.f32.mrb[0].mxu0
    %3231 = vdwg.mxu0
    %3232 = vmatprep.subr.bf16.mxu0 %v2481
    %3233 = vmatpush1.bf16.msra.mxu0 %v2480
    %3234 = vmatprep.subr.bf16.mxu0 %v2489
    %3235 = vmatpush1.bf16.msra.mxu0 %v2488
    %3236 = vmatprep.subr.bf16.mxu0 %v2497
    %3237 = vmatpush1.bf16.msra.mxu0 %v2496
    %3238 = vmatprep.subr.bf16.mxu0 %v2505
    %3239 = vmatpush1.bf16.msra.mxu0 %v2504
    %3240 = vmatprep.subr.bf16.mxu0 %v2513
    %3241 = vmatpush1.bf16.msra.mxu0 %v2512
    %3242 = vmatprep.subr.bf16.mxu0 %v2521
    %3243 = vmatpush1.bf16.msra.mxu0 %v2520
    %3244 = vmatprep.subr.bf16.mxu0 %v2529
    %3245 = vmatpush1.bf16.msra.mxu0 %v2528
    %3246 = vmatprep.subr.bf16.mxu0 %v2537
    %3247 = vmatpush1.bf16.msra.mxu0 %v2536
    %3248 = vmatprep.subr.bf16.mxu0 %v2545
    %3249 = vmatpush1.bf16.msra.mxu0 %v2544
    %3250 = vmatprep.subr.bf16.mxu0 %v2553
    %3251 = vmatpush1.bf16.msra.mxu0 %v2552
    %3252 = vmatprep.subr.bf16.mxu0 %v2561
    %3253 = vmatpush1.bf16.msra.mxu0 %v2560
    %3254 = vmatprep.subr.bf16.mxu0 %v2569
    %3255 = vmatpush1.bf16.msra.mxu0 %v2568
    %3256 = vmatprep.subr.bf16.mxu0 %v2577
    %3257 = vmatpush1.bf16.msra.mxu0 %v2576
    %3258 = vmatprep.subr.bf16.mxu0 %v2585
    %3259 = vmatpush1.bf16.msra.mxu0 %v2584
    %3260 = vmatprep.subr.bf16.mxu0 %v2593
    %3261 = vmatpush1.bf16.msra.mxu0 %v2592
    %3262 = vmatprep.subr.bf16.mxu0 %v2601
    %3263 = vmatpush1.bf16.msra.mxu0 %v2600
    %3264 = vmatprep.mubr.bf16.mxu0 %v1370
    %3265 = vmatmul.mubr.bf16.gmra.mrb[0].mxu0 %v1369
    %v3266 = vpop.f32.mrb[0].mxu0
    %v3267 = vadd.f32 %v1701, %v3266
    %v3268 = vpop.f32.mrb[0].mxu0
    %v3269 = vadd.f32 %v1705, %v3268
    %v3270 = vpop.f32.mrb[0].mxu0
    %v3271 = vpop.f32.mrb[0].mxu0
    %3272 = vdwg.mxu0
    %3273 = vmatprep.subr.bf16.mxu0 %v2609
    %3274 = vmatpush1.bf16.msra.mxu0 %v2608
    %3275 = vmatprep.subr.bf16.mxu0 %v2617
    %3276 = vmatpush1.bf16.msra.mxu0 %v2616
    %3277 = vmatprep.subr.bf16.mxu0 %v2625
    %3278 = vmatpush1.bf16.msra.mxu0 %v2624
    %3279 = vmatprep.subr.bf16.mxu0 %v2633
    %3280 = vmatpush1.bf16.msra.mxu0 %v2632
    %3281 = vmatprep.subr.bf16.mxu0 %v2641
    %3282 = vmatpush1.bf16.msra.mxu0 %v2640
    %3283 = vmatprep.subr.bf16.mxu0 %v2649
    %3284 = vmatpush1.bf16.msra.mxu0 %v2648
    %3285 = vmatprep.subr.bf16.mxu0 %v2657
    %3286 = vmatpush1.bf16.msra.mxu0 %v2656
    %3287 = vmatprep.subr.bf16.mxu0 %v2665
    %3288 = vmatpush1.bf16.msra.mxu0 %v2664
    %3289 = vmatprep.subr.bf16.mxu0 %v2673
    %3290 = vmatpush1.bf16.msra.mxu0 %v2672
    %3291 = vmatprep.subr.bf16.mxu0 %v2681
    %3292 = vmatpush1.bf16.msra.mxu0 %v2680
    %3293 = vmatprep.subr.bf16.mxu0 %v2689
    %3294 = vmatpush1.bf16.msra.mxu0 %v2688
    %3295 = vmatprep.subr.bf16.mxu0 %v2697
    %3296 = vmatpush1.bf16.msra.mxu0 %v2696
    %3297 = vmatprep.subr.bf16.mxu0 %v2705
    %3298 = vmatpush1.bf16.msra.mxu0 %v2704
    %3299 = vmatprep.subr.bf16.mxu0 %v2713
    %3300 = vmatpush1.bf16.msra.mxu0 %v2712
    %3301 = vmatprep.subr.bf16.mxu0 %v2721
    %3302 = vmatpush1.bf16.msra.mxu0 %v2720
    %3303 = vmatprep.subr.bf16.mxu0 %v2729
    %3304 = vmatpush1.bf16.msra.mxu0 %v2728
    %3305 = vmatprep.mubr.bf16.mxu0 %v1372
    %3306 = vmatmul.mubr.bf16.gmra.mrb[0].mxu0 %v1371
    %v3307 = vpop.f32.mrb[0].mxu0
    %v3308 = vadd.f32 %v3267, %v3307
    %v3309 = vpop.f32.mrb[0].mxu0
    %v3310 = vadd.f32 %v3269, %v3309
    %v3311 = vpop.f32.mrb[0].mxu0
    %v3312 = vpop.f32.mrb[0].mxu0
    %3313 = vdwg.mxu0
    %v3314 = vrot.slane %v3062, 4
    %v3315 = vadd.f32 %v3062, %v3314
    %v3316 = vrot.slane %v3315, 2
    %v3317 = vadd.f32 %v3315, %v3316
    %v3318 = vrot.slane %v3317, 1
    %v3319 = vadd.f32 %v3317, %v3318
    %v3320 = vrot.slane %v3064, 4
    %v3321 = vadd.f32 %v3064, %v3320
    %v3322 = vrot.slane %v3321, 2
    %v3323 = vadd.f32 %v3321, %v3322
    %v3324 = vrot.slane %v3323, 1
    %v3325 = vadd.f32 %v3323, %v3324
    %v3326 = vrot.slane %v3144, 4
    %v3327 = vadd.f32 %v3144, %v3326
    %v3328 = vrot.slane %v3327, 2
    %v3329 = vadd.f32 %v3327, %v3328
    %v3330 = vrot.slane %v3329, 1
    %v3331 = vadd.f32 %v3329, %v3330
    %v3332 = vrot.slane %v3146, 4
    %v3333 = vadd.f32 %v3146, %v3332
    %v3334 = vrot.slane %v3333, 2
    %v3335 = vadd.f32 %v3333, %v3334
    %v3336 = vrot.slane %v3335, 1
    %v3337 = vadd.f32 %v3335, %v3336
    %v3338 = vrot.slane %v3226, 4
    %v3339 = vadd.f32 %v3226, %v3338
    %v3340 = vrot.slane %v3339, 2
    %v3341 = vadd.f32 %v3339, %v3340
    %v3342 = vrot.slane %v3341, 1
    %v3343 = vadd.f32 %v3341, %v3342
    %v3344 = vrot.slane %v3228, 4
    %v3345 = vadd.f32 %v3228, %v3344
    %v3346 = vrot.slane %v3345, 2
    %v3347 = vadd.f32 %v3345, %v3346
    %v3348 = vrot.slane %v3347, 1
    %v3349 = vadd.f32 %v3347, %v3348
    %v3350 = vrot.slane %v3308, 4
    %v3351 = vadd.f32 %v3308, %v3350
    %v3352 = vrot.slane %v3351, 2
    %v3353 = vadd.f32 %v3351, %v3352
    %v3354 = vrot.slane %v3353, 1
    %v3355 = vadd.f32 %v3353, %v3354
    %v3356 = vrot.slane %v3310, 4
    %v3357 = vadd.f32 %v3310, %v3356
    %v3358 = vrot.slane %v3357, 2
    %v3359 = vadd.f32 %v3357, %v3358
    %v3360 = vrot.slane %v3359, 1
    %v3361 = vadd.f32 %v3359, %v3360
    %v3362 = vmul.f32 %v3319, %v557
    %v3363 = vmul.f32 %v3325, %v557
    %v3364 = vmul.f32 %v3331, %v557
    %v3365 = vmul.f32 %v3337, %v557
    %v3366 = vmul.f32 %v3343, %v557
    %v3367 = vmul.f32 %v3349, %v557
    %v3368 = vmul.f32 %v3355, %v557
    %v3369 = vmul.f32 %v3361, %v557
    %v3370 = vmul.f32 %v3062, %v3062
    %v3371 = vmul.f32 %v3064, %v3064
    %v3372 = vmul.f32 %v3144, %v3144
    %v3373 = vmul.f32 %v3146, %v3146
    %v3374 = vmul.f32 %v3226, %v3226
    %v3375 = vmul.f32 %v3228, %v3228
    %v3376 = vmul.f32 %v3308, %v3308
    %v3377 = vmul.f32 %v3310, %v3310
    %v3378 = vrot.slane %v3370, 4
    %v3379 = vadd.f32 %v3370, %v3378
    %v3380 = vrot.slane %v3379, 2
    %v3381 = vadd.f32 %v3379, %v3380
    %v3382 = vrot.slane %v3381, 1
    %v3383 = vadd.f32 %v3381, %v3382
    %v3384 = vrot.slane %v3371, 4
    %v3385 = vadd.f32 %v3371, %v3384
    %v3386 = vrot.slane %v3385, 2
    %v3387 = vadd.f32 %v3385, %v3386
    %v3388 = vrot.slane %v3387, 1
    %v3389 = vadd.f32 %v3387, %v3388
    %v3390 = vrot.slane %v3372, 4
    %v3391 = vadd.f32 %v3372, %v3390
    %v3392 = vrot.slane %v3391, 2
    %v3393 = vadd.f32 %v3391, %v3392
    %v3394 = vrot.slane %v3393, 1
    %v3395 = vadd.f32 %v3393, %v3394
    %v3396 = vrot.slane %v3373, 4
    %v3397 = vadd.f32 %v3373, %v3396
    %v3398 = vrot.slane %v3397, 2
    %v3399 = vadd.f32 %v3397, %v3398
    %v3400 = vrot.slane %v3399, 1
    %v3401 = vadd.f32 %v3399, %v3400
    %v3402 = vrot.slane %v3374, 4
    %v3403 = vadd.f32 %v3374, %v3402
    %v3404 = vrot.slane %v3403, 2
    %v3405 = vadd.f32 %v3403, %v3404
    %v3406 = vrot.slane %v3405, 1
    %v3407 = vadd.f32 %v3405, %v3406
    %v3408 = vrot.slane %v3375, 4
    %v3409 = vadd.f32 %v3375, %v3408
    %v3410 = vrot.slane %v3409, 2
    %v3411 = vadd.f32 %v3409, %v3410
    %v3412 = vrot.slane %v3411, 1
    %v3413 = vadd.f32 %v3411, %v3412
    %v3414 = vrot.slane %v3376, 4
    %v3415 = vadd.f32 %v3376, %v3414
    %v3416 = vrot.slane %v3415, 2
    %v3417 = vadd.f32 %v3415, %v3416
    %v3418 = vrot.slane %v3417, 1
    %v3419 = vadd.f32 %v3417, %v3418
    %v3420 = vrot.slane %v3377, 4
    %v3421 = vadd.f32 %v3377, %v3420
    %v3422 = vrot.slane %v3421, 2
    %v3423 = vadd.f32 %v3421, %v3422
    %v3424 = vrot.slane %v3423, 1
    %v3425 = vadd.f32 %v3423, %v3424
    %v3426 = vmul.f32 %v3383, %v557
    %v3427 = vmul.f32 %v3389, %v557
    %v3428 = vmul.f32 %v3395, %v557
    %v3429 = vmul.f32 %v3401, %v557
    %v3430 = vmul.f32 %v3407, %v557
    %v3431 = vmul.f32 %v3413, %v557
    %v3432 = vmul.f32 %v3419, %v557
    %v3433 = vmul.f32 %v3425, %v557
    %v3434 = vmul.f32 %v3362, %v3362
    %v3435 = vmul.f32 %v3363, %v3363
    %v3436 = vmul.f32 %v3364, %v3364
    %v3437 = vmul.f32 %v3365, %v3365
    %v3438 = vmul.f32 %v3366, %v3366
    %v3439 = vmul.f32 %v3367, %v3367
    %v3440 = vmul.f32 %v3368, %v3368
    %v3441 = vmul.f32 %v3369, %v3369
    %v3442 = vsub.f32 %v3426, %v3434
    %v3443 = vsub.f32 %v3427, %v3435
    %v3444 = vsub.f32 %v3428, %v3436
    %v3445 = vsub.f32 %v3429, %v3437
    %v3446 = vsub.f32 %v3430, %v3438
    %v3447 = vsub.f32 %v3431, %v3439
    %v3448 = vsub.f32 %v3432, %v3440
    %v3449 = vsub.f32 %v3433, %v3441
    %v3450 = vld [vmem:[#allocation23] sm:$0xff]
    %v3451 = vadd.f32 %v3442, 1e-05
    %v3452 = vadd.f32 %v3443, 1e-05
    %v3453 = vadd.f32 %v3444, 1e-05
    %v3454 = vadd.f32 %v3445, 1e-05
    %v3455 = vadd.f32 %v3446, 1e-05
    %v3456 = vadd.f32 %v3447, 1e-05
    %v3457 = vadd.f32 %v3448, 1e-05
    %v3458 = vadd.f32 %v3449, 1e-05
    %v3459 = vrsqrt.pop %v3451
    %v3460 = vrsqrt.pop %v3452
    %v3461 = vrsqrt.pop %v3453
    %v3462 = vrsqrt.pop %v3454
    %v3463 = vrsqrt.pop %v3455
    %v3464 = vrsqrt.pop %v3456
    %v3465 = vrsqrt.pop %v3457
    %v3466 = vrsqrt.pop %v3458
    %v3475 = vcombine.low %v3459, %v3460
    %v3476 = vcombine.low %v3461, %v3462
    %v3477 = vcombine.low %v3463, %v3464
    %v3478 = vcombine.low %v3465, %v3466
    %v3480 = vunpack.c.l.s4 1966171168
    %v3481 = vunpack.c.0.s8 %v3480
    %v3482 = vlaneseq
    %v3483 = vshrl.u32 %v3482, 7
    %v3484 = vsub.s32 %v3481, %v3483
    %v3485 = vrot.slane %v3475, %v3484
    %v3487 = vunpack.c.l.s4 1966171168
    %v3488 = vunpack.c.0.s8 %v3487
    %v3489 = vlaneseq
    %v3490 = vshrl.u32 %v3489, 7
    %v3491 = vsub.s32 %v3488, %v3490
    %v3492 = vrot.slane %v3476, %v3491
    %v3494 = vunpack.c.l.s4 1966171168
    %v3495 = vunpack.c.0.s8 %v3494
    %v3496 = vlaneseq
    %v3497 = vshrl.u32 %v3496, 7
    %v3498 = vsub.s32 %v3495, %v3497
    %v3499 = vrot.slane %v3477, %v3498
    %v3501 = vunpack.c.l.s4 1966171168
    %v3502 = vunpack.c.0.s8 %v3501
    %v3503 = vlaneseq
    %v3504 = vshrl.u32 %v3503, 7
    %v3505 = vsub.s32 %v3502, %v3504
    %v3506 = vrot.slane %v3478, %v3505
    %v3507 = vcombine.low %v3485, %v3492
    %v3508 = vcombine.low %v3499, %v3506
    %v3510 = vunpack.c.l.s4 1966171168
    %v3511 = vunpack.c.0.s8 %v3510
    %v3512 = vlaneseq
    %v3513 = vshrl.u32 %v3512, 7
    %v3514 = vsub.s32 %v3511, %v3513
    %v3515 = vrot.slane %v3507, %v3514
    %v3517 = vunpack.c.l.s4 1966171168
    %v3518 = vunpack.c.0.s8 %v3517
    %v3519 = vlaneseq
    %v3520 = vshrl.u32 %v3519, 7
    %v3521 = vsub.s32 %v3518, %v3520
    %v3522 = vrot.slane %v3508, %v3521
    %v3523 = vcombine.low %v3515, %v3522
    %v3525 = vmul.f32 %v3450, %v3523
    %v3526 = vld [vmem:[#allocation24] sm:$0xff]
    %v3528 = vlaneseq
    %v3529 = vshrl.u32 %v3528, 7
    %v3530 = vsub.s32 0, %v3529
    %v3531 = vrot.slane %v3525, %v3530
    %v3532 = vlaneseq
    %v3533 = vshrl.u32 %v3532, 7
    %v3534 = vsub.s32 1, %v3533
    %v3535 = vrot.slane %v3525, %v3534
    %v3536 = vlaneseq
    %v3537 = vshrl.u32 %v3536, 7
    %v3538 = vsub.s32 2, %v3537
    %v3539 = vrot.slane %v3525, %v3538
    %v3540 = vlaneseq
    %v3541 = vshrl.u32 %v3540, 7
    %v3542 = vsub.s32 3, %v3541
    %v3543 = vrot.slane %v3525, %v3542
    %v3544 = vlaneseq
    %v3545 = vshrl.u32 %v3544, 7
    %v3546 = vsub.s32 4, %v3545
    %v3547 = vrot.slane %v3525, %v3546
    %v3548 = vlaneseq
    %v3549 = vshrl.u32 %v3548, 7
    %v3550 = vsub.s32 5, %v3549
    %v3551 = vrot.slane %v3525, %v3550
    %v3552 = vlaneseq
    %v3553 = vshrl.u32 %v3552, 7
    %v3554 = vsub.s32 6, %v3553
    %v3555 = vrot.slane %v3525, %v3554
    %v3556 = vlaneseq
    %v3557 = vshrl.u32 %v3556, 7
    %v3558 = vsub.s32 7, %v3557
    %v3559 = vrot.slane %v3525, %v3558
    %v3568 = vmul.f32 %v3362, %v3531
    %v3569 = vmul.f32 %v3363, %v3535
    %v3570 = vmul.f32 %v3364, %v3539
    %v3571 = vmul.f32 %v3365, %v3543
    %v3572 = vmul.f32 %v3366, %v3547
    %v3573 = vmul.f32 %v3367, %v3551
    %v3574 = vmul.f32 %v3368, %v3555
    %v3575 = vmul.f32 %v3369, %v3559
    %v3584 = vcombine.low %v3568, %v3569
    %v3585 = vcombine.low %v3570, %v3571
    %v3586 = vcombine.low %v3572, %v3573
    %v3587 = vcombine.low %v3574, %v3575
    %v3589 = vunpack.c.l.s4 1966171168
    %v3590 = vunpack.c.0.s8 %v3589
    %v3591 = vlaneseq
    %v3592 = vshrl.u32 %v3591, 7
    %v3593 = vsub.s32 %v3590, %v3592
    %v3594 = vrot.slane %v3584, %v3593
    %v3596 = vunpack.c.l.s4 1966171168
    %v3597 = vunpack.c.0.s8 %v3596
    %v3598 = vlaneseq
    %v3599 = vshrl.u32 %v3598, 7
    %v3600 = vsub.s32 %v3597, %v3599
    %v3601 = vrot.slane %v3585, %v3600
    %v3603 = vunpack.c.l.s4 1966171168
    %v3604 = vunpack.c.0.s8 %v3603
    %v3605 = vlaneseq
    %v3606 = vshrl.u32 %v3605, 7
    %v3607 = vsub.s32 %v3604, %v3606
    %v3608 = vrot.slane %v3586, %v3607
    %v3610 = vunpack.c.l.s4 1966171168
    %v3611 = vunpack.c.0.s8 %v3610
    %v3612 = vlaneseq
    %v3613 = vshrl.u32 %v3612, 7
    %v3614 = vsub.s32 %v3611, %v3613
    %v3615 = vrot.slane %v3587, %v3614
    %v3616 = vcombine.low %v3594, %v3601
    %v3617 = vcombine.low %v3608, %v3615
    %v3619 = vunpack.c.l.s4 1966171168
    %v3620 = vunpack.c.0.s8 %v3619
    %v3621 = vlaneseq
    %v3622 = vshrl.u32 %v3621, 7
    %v3623 = vsub.s32 %v3620, %v3622
    %v3624 = vrot.slane %v3616, %v3623
    %v3626 = vunpack.c.l.s4 1966171168
    %v3627 = vunpack.c.0.s8 %v3626
    %v3628 = vlaneseq
    %v3629 = vshrl.u32 %v3628, 7
    %v3630 = vsub.s32 %v3627, %v3629
    %v3631 = vrot.slane %v3617, %v3630
    %v3632 = vcombine.low %v3624, %v3631
    %v3634 = vsub.f32 %v3526, %v3632
    %v3635 = vmul.f32 %v3062, %v3531
    %v3636 = vmul.f32 %v3064, %v3535
    %v3637 = vmul.f32 %v3144, %v3539
    %v3638 = vmul.f32 %v3146, %v3543
    %v3639 = vmul.f32 %v3226, %v3547
    %v3640 = vmul.f32 %v3228, %v3551
    %v3641 = vmul.f32 %v3308, %v3555
    %v3642 = vmul.f32 %v3310, %v3559
    %v3644 = vlaneseq
    %v3645 = vshrl.u32 %v3644, 7
    %v3646 = vsub.s32 0, %v3645
    %v3647 = vrot.slane %v3634, %v3646
    %v3648 = vlaneseq
    %v3649 = vshrl.u32 %v3648, 7
    %v3650 = vsub.s32 1, %v3649
    %v3651 = vrot.slane %v3634, %v3650
    %v3652 = vlaneseq
    %v3653 = vshrl.u32 %v3652, 7
    %v3654 = vsub.s32 2, %v3653
    %v3655 = vrot.slane %v3634, %v3654
    %v3656 = vlaneseq
    %v3657 = vshrl.u32 %v3656, 7
    %v3658 = vsub.s32 3, %v3657
    %v3659 = vrot.slane %v3634, %v3658
    %v3660 = vlaneseq
    %v3661 = vshrl.u32 %v3660, 7
    %v3662 = vsub.s32 4, %v3661
    %v3663 = vrot.slane %v3634, %v3662
    %v3664 = vlaneseq
    %v3665 = vshrl.u32 %v3664, 7
    %v3666 = vsub.s32 5, %v3665
    %v3667 = vrot.slane %v3634, %v3666
    %v3668 = vlaneseq
    %v3669 = vshrl.u32 %v3668, 7
    %v3670 = vsub.s32 6, %v3669
    %v3671 = vrot.slane %v3634, %v3670
    %v3672 = vlaneseq
    %v3673 = vshrl.u32 %v3672, 7
    %v3674 = vsub.s32 7, %v3673
    %v3675 = vrot.slane %v3634, %v3674
    %v3684 = vadd.f32 %v3635, %v3647
    %v3685 = vadd.f32 %v3636, %v3651
    %v3686 = vadd.f32 %v3637, %v3655
    %v3687 = vadd.f32 %v3638, %v3659
    %v3688 = vadd.f32 %v3639, %v3663
    %v3689 = vadd.f32 %v3640, %v3667
    %v3690 = vadd.f32 %v3641, %v3671
    %v3691 = vadd.f32 %v3642, %v3675
    %vm3692 = vcmp.gt.f32.partialorder %v3684, 0.0
    %vm3693 = vcmp.gt.f32.partialorder %v3685, 0.0
    %vm3694 = vcmp.gt.f32.partialorder %v3686, 0.0
    %vm3695 = vcmp.gt.f32.partialorder %v3687, 0.0
    %vm3696 = vcmp.gt.f32.partialorder %v3688, 0.0
    %vm3697 = vcmp.gt.f32.partialorder %v3689, 0.0
    %vm3698 = vcmp.gt.f32.partialorder %v3690, 0.0
    %vm3699 = vcmp.gt.f32.partialorder %v3691, 0.0
    %v3700 = vmul.f32 %v3684, 0.2
    %v3701 = vmul.f32 %v3685, 0.2
    %v3702 = vmul.f32 %v3686, 0.2
    %v3703 = vmul.f32 %v3687, 0.2
    %v3704 = vmul.f32 %v3688, 0.2
    %v3705 = vmul.f32 %v3689, 0.2
    %v3706 = vmul.f32 %v3690, 0.2
    %v3707 = vmul.f32 %v3691, 0.2
    %v3708 = vsel %vm3692, %v3684, %v3700
    %v3709 = vsel %vm3693, %v3685, %v3701
    %v3710 = vsel %vm3694, %v3686, %v3702
    %v3711 = vsel %vm3695, %v3687, %v3703
    %v3712 = vsel %vm3696, %v3688, %v3704
    %v3713 = vsel %vm3697, %v3689, %v3705
    %v3714 = vsel %vm3698, %v3690, %v3706
    %v3715 = vsel %vm3699, %v3691, %v3707
    %s3716 = smul.u32 4, 128
    %s3717 = smul.u32 %s3716, 7
    %s3718 = sshll.u32 %s3717, 4
    %3719 = dma.done [#allocation3], %s3718
    %v3720 = vpack.c.bf16 %v3708, %v3708
    %v3721 = vpack.c.bf16 %v3709, %v3709
    %v3722 = vpack.c.bf16 %v3710, %v3710
    %v3723 = vpack.c.bf16 %v3711, %v3711
    %v3724 = vpack.c.bf16 %v3712, %v3712
    %v3725 = vpack.c.bf16 %v3713, %v3713
    %v3726 = vpack.c.bf16 %v3714, %v3714
    %v3727 = vpack.c.bf16 %v3715, %v3715
    %v3728 = vld [vmem:[#allocation2] sm:$0xff]
    %v3729 = vld [vmem:[#allocation2 + $0x8] sm:$0xff]
    %v3730 = vld [vmem:[#allocation2 + $0x10] sm:$0xff]
    %v3731 = vld [vmem:[#allocation2 + $0x18] sm:$0xff]
    %v3732 = vld [vmem:[#allocation2 + $0x20] sm:$0xff]
    %v3733 = vld [vmem:[#allocation2 + $0x28] sm:$0xff]
    %v3734 = vld [vmem:[#allocation2 + $0x30] sm:$0xff]
    %v3735 = vld [vmem:[#allocation2 + $0x38] sm:$0xff]
    %v3736 = vld [vmem:[#allocation2 + $0x40] sm:$0xff]
    %v3737 = vld [vmem:[#allocation2 + $0x48] sm:$0xff]
    %v3738 = vld [vmem:[#allocation2 + $0x50] sm:$0xff]
    %v3739 = vld [vmem:[#allocation2 + $0x58] sm:$0xff]
    %v3740 = vld [vmem:[#allocation2 + $0x60] sm:$0xff]
    %v3741 = vld [vmem:[#allocation2 + $0x68] sm:$0xff]
    %v3742 = vld [vmem:[#allocation2 + $0x70] sm:$0xff]
    %v3743 = vld [vmem:[#allocation2 + $0x78] sm:$0xff]
    %v3744 = vld [vmem:[#allocation2 + $0x80] sm:$0xff]
    %v3745 = vld [vmem:[#allocation2 + $0x88] sm:$0xff]
    %v3746 = vld [vmem:[#allocation2 + $0x90] sm:$0xff]
    %v3747 = vld [vmem:[#allocation2 + $0x98] sm:$0xff]
    %v3748 = vld [vmem:[#allocation2 + $0xa0] sm:$0xff]
    %v3749 = vld [vmem:[#allocation2 + $0xa8] sm:$0xff]
    %v3750 = vld [vmem:[#allocation2 + $0xb0] sm:$0xff]
    %v3751 = vld [vmem:[#allocation2 + $0xb8] sm:$0xff]
    %v3752 = vld [vmem:[#allocation2 + $0xc0] sm:$0xff]
    %v3753 = vld [vmem:[#allocation2 + $0xc8] sm:$0xff]
    %v3754 = vld [vmem:[#allocation2 + $0xd0] sm:$0xff]
    %v3755 = vld [vmem:[#allocation2 + $0xd8] sm:$0xff]
    %v3756 = vld [vmem:[#allocation2 + $0xe0] sm:$0xff]
    %v3757 = vld [vmem:[#allocation2 + $0xe8] sm:$0xff]
    %v3758 = vld [vmem:[#allocation2 + $0xf0] sm:$0xff]
    %v3759 = vld [vmem:[#allocation2 + $0xf8] sm:$0xff]
    %v3760 = vld [vmem:[#allocation2 + $0x100] sm:$0xff]
    %v3761 = vld [vmem:[#allocation2 + $0x108] sm:$0xff]
    %v3762 = vld [vmem:[#allocation2 + $0x110] sm:$0xff]
    %v3763 = vld [vmem:[#allocation2 + $0x118] sm:$0xff]
    %v3764 = vld [vmem:[#allocation2 + $0x120] sm:$0xff]
    %v3765 = vld [vmem:[#allocation2 + $0x128] sm:$0xff]
    %v3766 = vld [vmem:[#allocation2 + $0x130] sm:$0xff]
    %v3767 = vld [vmem:[#allocation2 + $0x138] sm:$0xff]
    %v3768 = vld [vmem:[#allocation2 + $0x140] sm:$0xff]
    %v3769 = vld [vmem:[#allocation2 + $0x148] sm:$0xff]
    %v3770 = vld [vmem:[#allocation2 + $0x150] sm:$0xff]
    %v3771 = vld [vmem:[#allocation2 + $0x158] sm:$0xff]
    %v3772 = vld [vmem:[#allocation2 + $0x160] sm:$0xff]
    %v3773 = vld [vmem:[#allocation2 + $0x168] sm:$0xff]
    %v3774 = vld [vmem:[#allocation2 + $0x170] sm:$0xff]
    %v3775 = vld [vmem:[#allocation2 + $0x178] sm:$0xff]
    %v3776 = vld [vmem:[#allocation2 + $0x180] sm:$0xff]
    %v3777 = vld [vmem:[#allocation2 + $0x188] sm:$0xff]
    %v3778 = vld [vmem:[#allocation2 + $0x190] sm:$0xff]
    %v3779 = vld [vmem:[#allocation2 + $0x198] sm:$0xff]
    %v3780 = vld [vmem:[#allocation2 + $0x1a0] sm:$0xff]
    %v3781 = vld [vmem:[#allocation2 + $0x1a8] sm:$0xff]
    %v3782 = vld [vmem:[#allocation2 + $0x1b0] sm:$0xff]
    %v3783 = vld [vmem:[#allocation2 + $0x1b8] sm:$0xff]
    %v3784 = vld [vmem:[#allocation2 + $0x1c0] sm:$0xff]
    %v3785 = vld [vmem:[#allocation2 + $0x1c8] sm:$0xff]
    %v3786 = vld [vmem:[#allocation2 + $0x1d0] sm:$0xff]
    %v3787 = vld [vmem:[#allocation2 + $0x1d8] sm:$0xff]
    %v3788 = vld [vmem:[#allocation2 + $0x1e0] sm:$0xff]
    %v3789 = vld [vmem:[#allocation2 + $0x1e8] sm:$0xff]
    %v3790 = vld [vmem:[#allocation2 + $0x1f0] sm:$0xff]
    %v3791 = vld [vmem:[#allocation2 + $0x1f8] sm:$0xff]
    %v3792 = vld [vmem:[#allocation2 + $0x200] sm:$0xff]
    %v3793 = vld [vmem:[#allocation2 + $0x208] sm:$0xff]
    %v3794 = vld [vmem:[#allocation2 + $0x210] sm:$0xff]
    %v3795 = vld [vmem:[#allocation2 + $0x218] sm:$0xff]
    %v3796 = vld [vmem:[#allocation2 + $0x220] sm:$0xff]
    %v3797 = vld [vmem:[#allocation2 + $0x228] sm:$0xff]
    %v3798 = vld [vmem:[#allocation2 + $0x230] sm:$0xff]
    %v3799 = vld [vmem:[#allocation2 + $0x238] sm:$0xff]
    %v3800 = vld [vmem:[#allocation2 + $0x240] sm:$0xff]
    %v3801 = vld [vmem:[#allocation2 + $0x248] sm:$0xff]
    %v3802 = vld [vmem:[#allocation2 + $0x250] sm:$0xff]
    %v3803 = vld [vmem:[#allocation2 + $0x258] sm:$0xff]
    %v3804 = vld [vmem:[#allocation2 + $0x260] sm:$0xff]
    %v3805 = vld [vmem:[#allocation2 + $0x268] sm:$0xff]
    %v3806 = vld [vmem:[#allocation2 + $0x270] sm:$0xff]
    %v3807 = vld [vmem:[#allocation2 + $0x278] sm:$0xff]
    %v3808 = vld [vmem:[#allocation2 + $0x280] sm:$0xff]
    %v3809 = vld [vmem:[#allocation2 + $0x288] sm:$0xff]
    %v3810 = vld [vmem:[#allocation2 + $0x290] sm:$0xff]
    %v3811 = vld [vmem:[#allocation2 + $0x298] sm:$0xff]
    %v3812 = vld [vmem:[#allocation2 + $0x2a0] sm:$0xff]
    %v3813 = vld [vmem:[#allocation2 + $0x2a8] sm:$0xff]
    %v3814 = vld [vmem:[#allocation2 + $0x2b0] sm:$0xff]
    %v3815 = vld [vmem:[#allocation2 + $0x2b8] sm:$0xff]
    %v3816 = vld [vmem:[#allocation2 + $0x2c0] sm:$0xff]
    %v3817 = vld [vmem:[#allocation2 + $0x2c8] sm:$0xff]
    %v3818 = vld [vmem:[#allocation2 + $0x2d0] sm:$0xff]
    %v3819 = vld [vmem:[#allocation2 + $0x2d8] sm:$0xff]
    %v3820 = vld [vmem:[#allocation2 + $0x2e0] sm:$0xff]
    %v3821 = vld [vmem:[#allocation2 + $0x2e8] sm:$0xff]
    %v3822 = vld [vmem:[#allocation2 + $0x2f0] sm:$0xff]
    %v3823 = vld [vmem:[#allocation2 + $0x2f8] sm:$0xff]
    %v3824 = vld [vmem:[#allocation2 + $0x300] sm:$0xff]
    %v3825 = vld [vmem:[#allocation2 + $0x308] sm:$0xff]
    %v3826 = vld [vmem:[#allocation2 + $0x310] sm:$0xff]
    %v3827 = vld [vmem:[#allocation2 + $0x318] sm:$0xff]
    %v3828 = vld [vmem:[#allocation2 + $0x320] sm:$0xff]
    %v3829 = vld [vmem:[#allocation2 + $0x328] sm:$0xff]
    %v3830 = vld [vmem:[#allocation2 + $0x330] sm:$0xff]
    %v3831 = vld [vmem:[#allocation2 + $0x338] sm:$0xff]
    %v3832 = vld [vmem:[#allocation2 + $0x340] sm:$0xff]
    %v3833 = vld [vmem:[#allocation2 + $0x348] sm:$0xff]
    %v3834 = vld [vmem:[#allocation2 + $0x350] sm:$0xff]
    %v3835 = vld [vmem:[#allocation2 + $0x358] sm:$0xff]
    %v3836 = vld [vmem:[#allocation2 + $0x360] sm:$0xff]
    %v3837 = vld [vmem:[#allocation2 + $0x368] sm:$0xff]
    %v3838 = vld [vmem:[#allocation2 + $0x370] sm:$0xff]
    %v3839 = vld [vmem:[#allocation2 + $0x378] sm:$0xff]
    %v3840 = vld [vmem:[#allocation2 + $0x380] sm:$0xff]
    %v3841 = vld [vmem:[#allocation2 + $0x388] sm:$0xff]
    %v3842 = vld [vmem:[#allocation2 + $0x390] sm:$0xff]
    %v3843 = vld [vmem:[#allocation2 + $0x398] sm:$0xff]
    %v3844 = vld [vmem:[#allocation2 + $0x3a0] sm:$0xff]
    %v3845 = vld [vmem:[#allocation2 + $0x3a8] sm:$0xff]
    %v3846 = vld [vmem:[#allocation2 + $0x3b0] sm:$0xff]
    %v3847 = vld [vmem:[#allocation2 + $0x3b8] sm:$0xff]
    %v3848 = vld [vmem:[#allocation2 + $0x3c0] sm:$0xff]
    %v3849 = vld [vmem:[#allocation2 + $0x3c8] sm:$0xff]
    %v3850 = vld [vmem:[#allocation2 + $0x3d0] sm:$0xff]
    %v3851 = vld [vmem:[#allocation2 + $0x3d8] sm:$0xff]
    %v3852 = vld [vmem:[#allocation2 + $0x3e0] sm:$0xff]
    %v3853 = vld [vmem:[#allocation2 + $0x3e8] sm:$0xff]
    %v3854 = vld [vmem:[#allocation2 + $0x3f0] sm:$0xff]
    %v3855 = vld [vmem:[#allocation2 + $0x3f8] sm:$0xff]
    %v3856 = vld [vmem:[#allocation2 + $0x400] sm:$0xff]
    %v3857 = vld [vmem:[#allocation2 + $0x408] sm:$0xff]
    %v3858 = vld [vmem:[#allocation2 + $0x410] sm:$0xff]
    %v3859 = vld [vmem:[#allocation2 + $0x418] sm:$0xff]
    %v3860 = vld [vmem:[#allocation2 + $0x420] sm:$0xff]
    %v3861 = vld [vmem:[#allocation2 + $0x428] sm:$0xff]
    %v3862 = vld [vmem:[#allocation2 + $0x430] sm:$0xff]
    %v3863 = vld [vmem:[#allocation2 + $0x438] sm:$0xff]
    %v3864 = vld [vmem:[#allocation2 + $0x440] sm:$0xff]
    %v3865 = vld [vmem:[#allocation2 + $0x448] sm:$0xff]
    %v3866 = vld [vmem:[#allocation2 + $0x450] sm:$0xff]
    %v3867 = vld [vmem:[#allocation2 + $0x458] sm:$0xff]
    %v3868 = vld [vmem:[#allocation2 + $0x460] sm:$0xff]
    %v3869 = vld [vmem:[#allocation2 + $0x468] sm:$0xff]
    %v3870 = vld [vmem:[#allocation2 + $0x470] sm:$0xff]
    %v3871 = vld [vmem:[#allocation2 + $0x478] sm:$0xff]
    %v3872 = vld [vmem:[#allocation2 + $0x480] sm:$0xff]
    %v3873 = vld [vmem:[#allocation2 + $0x488] sm:$0xff]
    %v3874 = vld [vmem:[#allocation2 + $0x490] sm:$0xff]
    %v3875 = vld [vmem:[#allocation2 + $0x498] sm:$0xff]
    %v3876 = vld [vmem:[#allocation2 + $0x4a0] sm:$0xff]
    %v3877 = vld [vmem:[#allocation2 + $0x4a8] sm:$0xff]
    %v3878 = vld [vmem:[#allocation2 + $0x4b0] sm:$0xff]
    %v3879 = vld [vmem:[#allocation2 + $0x4b8] sm:$0xff]
    %v3880 = vld [vmem:[#allocation2 + $0x4c0] sm:$0xff]
    %v3881 = vld [vmem:[#allocation2 + $0x4c8] sm:$0xff]
    %v3882 = vld [vmem:[#allocation2 + $0x4d0] sm:$0xff]
    %v3883 = vld [vmem:[#allocation2 + $0x4d8] sm:$0xff]
    %v3884 = vld [vmem:[#allocation2 + $0x4e0] sm:$0xff]
    %v3885 = vld [vmem:[#allocation2 + $0x4e8] sm:$0xff]
    %v3886 = vld [vmem:[#allocation2 + $0x4f0] sm:$0xff]
    %v3887 = vld [vmem:[#allocation2 + $0x4f8] sm:$0xff]
    %v3888 = vld [vmem:[#allocation2 + $0x500] sm:$0xff]
    %v3889 = vld [vmem:[#allocation2 + $0x508] sm:$0xff]
    %v3890 = vld [vmem:[#allocation2 + $0x510] sm:$0xff]
    %v3891 = vld [vmem:[#allocation2 + $0x518] sm:$0xff]
    %v3892 = vld [vmem:[#allocation2 + $0x520] sm:$0xff]
    %v3893 = vld [vmem:[#allocation2 + $0x528] sm:$0xff]
    %v3894 = vld [vmem:[#allocation2 + $0x530] sm:$0xff]
    %v3895 = vld [vmem:[#allocation2 + $0x538] sm:$0xff]
    %v3896 = vld [vmem:[#allocation2 + $0x540] sm:$0xff]
    %v3897 = vld [vmem:[#allocation2 + $0x548] sm:$0xff]
    %v3898 = vld [vmem:[#allocation2 + $0x550] sm:$0xff]
    %v3899 = vld [vmem:[#allocation2 + $0x558] sm:$0xff]
    %v3900 = vld [vmem:[#allocation2 + $0x560] sm:$0xff]
    %v3901 = vld [vmem:[#allocation2 + $0x568] sm:$0xff]
    %v3902 = vld [vmem:[#allocation2 + $0x570] sm:$0xff]
    %v3903 = vld [vmem:[#allocation2 + $0x578] sm:$0xff]
    %v3904 = vld [vmem:[#allocation2 + $0x580] sm:$0xff]
    %v3905 = vld [vmem:[#allocation2 + $0x588] sm:$0xff]
    %v3906 = vld [vmem:[#allocation2 + $0x590] sm:$0xff]
    %v3907 = vld [vmem:[#allocation2 + $0x598] sm:$0xff]
    %v3908 = vld [vmem:[#allocation2 + $0x5a0] sm:$0xff]
    %v3909 = vld [vmem:[#allocation2 + $0x5a8] sm:$0xff]
    %v3910 = vld [vmem:[#allocation2 + $0x5b0] sm:$0xff]
    %v3911 = vld [vmem:[#allocation2 + $0x5b8] sm:$0xff]
    %v3912 = vld [vmem:[#allocation2 + $0x5c0] sm:$0xff]
    %v3913 = vld [vmem:[#allocation2 + $0x5c8] sm:$0xff]
    %v3914 = vld [vmem:[#allocation2 + $0x5d0] sm:$0xff]
    %v3915 = vld [vmem:[#allocation2 + $0x5d8] sm:$0xff]
    %v3916 = vld [vmem:[#allocation2 + $0x5e0] sm:$0xff]
    %v3917 = vld [vmem:[#allocation2 + $0x5e8] sm:$0xff]
    %v3918 = vld [vmem:[#allocation2 + $0x5f0] sm:$0xff]
    %v3919 = vld [vmem:[#allocation2 + $0x5f8] sm:$0xff]
    %v3920 = vld [vmem:[#allocation2 + $0x600] sm:$0xff]
    %v3921 = vld [vmem:[#allocation2 + $0x608] sm:$0xff]
    %v3922 = vld [vmem:[#allocation2 + $0x610] sm:$0xff]
    %v3923 = vld [vmem:[#allocation2 + $0x618] sm:$0xff]
    %v3924 = vld [vmem:[#allocation2 + $0x620] sm:$0xff]
    %v3925 = vld [vmem:[#allocation2 + $0x628] sm:$0xff]
    %v3926 = vld [vmem:[#allocation2 + $0x630] sm:$0xff]
    %v3927 = vld [vmem:[#allocation2 + $0x638] sm:$0xff]
    %v3928 = vld [vmem:[#allocation2 + $0x640] sm:$0xff]
    %v3929 = vld [vmem:[#allocation2 + $0x648] sm:$0xff]
    %v3930 = vld [vmem:[#allocation2 + $0x650] sm:$0xff]
    %v3931 = vld [vmem:[#allocation2 + $0x658] sm:$0xff]
    %v3932 = vld [vmem:[#allocation2 + $0x660] sm:$0xff]
    %v3933 = vld [vmem:[#allocation2 + $0x668] sm:$0xff]
    %v3934 = vld [vmem:[#allocation2 + $0x670] sm:$0xff]
    %v3935 = vld [vmem:[#allocation2 + $0x678] sm:$0xff]
    %v3936 = vld [vmem:[#allocation2 + $0x680] sm:$0xff]
    %v3937 = vld [vmem:[#allocation2 + $0x688] sm:$0xff]
    %v3938 = vld [vmem:[#allocation2 + $0x690] sm:$0xff]
    %v3939 = vld [vmem:[#allocation2 + $0x698] sm:$0xff]
    %v3940 = vld [vmem:[#allocation2 + $0x6a0] sm:$0xff]
    %v3941 = vld [vmem:[#allocation2 + $0x6a8] sm:$0xff]
    %v3942 = vld [vmem:[#allocation2 + $0x6b0] sm:$0xff]
    %v3943 = vld [vmem:[#allocation2 + $0x6b8] sm:$0xff]
    %v3944 = vld [vmem:[#allocation2 + $0x6c0] sm:$0xff]
    %v3945 = vld [vmem:[#allocation2 + $0x6c8] sm:$0xff]
    %v3946 = vld [vmem:[#allocation2 + $0x6d0] sm:$0xff]
    %v3947 = vld [vmem:[#allocation2 + $0x6d8] sm:$0xff]
    %v3948 = vld [vmem:[#allocation2 + $0x6e0] sm:$0xff]
    %v3949 = vld [vmem:[#allocation2 + $0x6e8] sm:$0xff]
    %v3950 = vld [vmem:[#allocation2 + $0x6f0] sm:$0xff]
    %v3951 = vld [vmem:[#allocation2 + $0x6f8] sm:$0xff]
    %v3952 = vld [vmem:[#allocation2 + $0x700] sm:$0xff]
    %v3953 = vld [vmem:[#allocation2 + $0x708] sm:$0xff]
    %v3954 = vld [vmem:[#allocation2 + $0x710] sm:$0xff]
    %v3955 = vld [vmem:[#allocation2 + $0x718] sm:$0xff]
    %v3956 = vld [vmem:[#allocation2 + $0x720] sm:$0xff]
    %v3957 = vld [vmem:[#allocation2 + $0x728] sm:$0xff]
    %v3958 = vld [vmem:[#allocation2 + $0x730] sm:$0xff]
    %v3959 = vld [vmem:[#allocation2 + $0x738] sm:$0xff]
    %v3960 = vld [vmem:[#allocation2 + $0x740] sm:$0xff]
    %v3961 = vld [vmem:[#allocation2 + $0x748] sm:$0xff]
    %v3962 = vld [vmem:[#allocation2 + $0x750] sm:$0xff]
    %v3963 = vld [vmem:[#allocation2 + $0x758] sm:$0xff]
    %v3964 = vld [vmem:[#allocation2 + $0x760] sm:$0xff]
    %v3965 = vld [vmem:[#allocation2 + $0x768] sm:$0xff]
    %v3966 = vld [vmem:[#allocation2 + $0x770] sm:$0xff]
    %v3967 = vld [vmem:[#allocation2 + $0x778] sm:$0xff]
    %v3968 = vld [vmem:[#allocation2 + $0x780] sm:$0xff]
    %v3969 = vld [vmem:[#allocation2 + $0x788] sm:$0xff]
    %v3970 = vld [vmem:[#allocation2 + $0x790] sm:$0xff]
    %v3971 = vld [vmem:[#allocation2 + $0x798] sm:$0xff]
    %v3972 = vld [vmem:[#allocation2 + $0x7a0] sm:$0xff]
    %v3973 = vld [vmem:[#allocation2 + $0x7a8] sm:$0xff]
    %v3974 = vld [vmem:[#allocation2 + $0x7b0] sm:$0xff]
    %v3975 = vld [vmem:[#allocation2 + $0x7b8] sm:$0xff]
    %v3976 = vld [vmem:[#allocation2 + $0x7c0] sm:$0xff]
    %v3977 = vld [vmem:[#allocation2 + $0x7c8] sm:$0xff]
    %v3978 = vld [vmem:[#allocation2 + $0x7d0] sm:$0xff]
    %v3979 = vld [vmem:[#allocation2 + $0x7d8] sm:$0xff]
    %v3980 = vld [vmem:[#allocation2 + $0x7e0] sm:$0xff]
    %v3981 = vld [vmem:[#allocation2 + $0x7e8] sm:$0xff]
    %v3982 = vld [vmem:[#allocation2 + $0x7f0] sm:$0xff]
    %v3983 = vld [vmem:[#allocation2 + $0x7f8] sm:$0xff]
    %v3984 = vld [vmem:[#allocation2 + $0x800] sm:$0xff]
    %v3985 = vld [vmem:[#allocation2 + $0x808] sm:$0xff]
    %v3986 = vld [vmem:[#allocation2 + $0x810] sm:$0xff]
    %v3987 = vld [vmem:[#allocation2 + $0x818] sm:$0xff]
    %v3988 = vld [vmem:[#allocation2 + $0x820] sm:$0xff]
    %v3989 = vld [vmem:[#allocation2 + $0x828] sm:$0xff]
    %v3990 = vld [vmem:[#allocation2 + $0x830] sm:$0xff]
    %v3991 = vld [vmem:[#allocation2 + $0x838] sm:$0xff]
    %v3992 = vld [vmem:[#allocation2 + $0x840] sm:$0xff]
    %v3993 = vld [vmem:[#allocation2 + $0x848] sm:$0xff]
    %v3994 = vld [vmem:[#allocation2 + $0x850] sm:$0xff]
    %v3995 = vld [vmem:[#allocation2 + $0x858] sm:$0xff]
    %v3996 = vld [vmem:[#allocation2 + $0x860] sm:$0xff]
    %v3997 = vld [vmem:[#allocation2 + $0x868] sm:$0xff]
    %v3998 = vld [vmem:[#allocation2 + $0x870] sm:$0xff]
    %v3999 = vld [vmem:[#allocation2 + $0x878] sm:$0xff]
    %v4000 = vld [vmem:[#allocation2 + $0x880] sm:$0xff]
    %v4001 = vld [vmem:[#allocation2 + $0x888] sm:$0xff]
    %v4002 = vld [vmem:[#allocation2 + $0x890] sm:$0xff]
    %v4003 = vld [vmem:[#allocation2 + $0x898] sm:$0xff]
    %v4004 = vld [vmem:[#allocation2 + $0x8a0] sm:$0xff]
    %v4005 = vld [vmem:[#allocation2 + $0x8a8] sm:$0xff]
    %v4006 = vld [vmem:[#allocation2 + $0x8b0] sm:$0xff]
    %v4007 = vld [vmem:[#allocation2 + $0x8b8] sm:$0xff]
    %v4008 = vld [vmem:[#allocation2 + $0x8c0] sm:$0xff]
    %v4009 = vld [vmem:[#allocation2 + $0x8c8] sm:$0xff]
    %v4010 = vld [vmem:[#allocation2 + $0x8d0] sm:$0xff]
    %v4011 = vld [vmem:[#allocation2 + $0x8d8] sm:$0xff]
    %v4012 = vld [vmem:[#allocation2 + $0x8e0] sm:$0xff]
    %v4013 = vld [vmem:[#allocation2 + $0x8e8] sm:$0xff]
    %v4014 = vld [vmem:[#allocation2 + $0x8f0] sm:$0xff]
    %v4015 = vld [vmem:[#allocation2 + $0x8f8] sm:$0xff]
    %v4016 = vld [vmem:[#allocation2 + $0x900] sm:$0xff]
    %v4017 = vld [vmem:[#allocation2 + $0x908] sm:$0xff]
    %v4018 = vld [vmem:[#allocation2 + $0x910] sm:$0xff]
    %v4019 = vld [vmem:[#allocation2 + $0x918] sm:$0xff]
    %v4020 = vld [vmem:[#allocation2 + $0x920] sm:$0xff]
    %v4021 = vld [vmem:[#allocation2 + $0x928] sm:$0xff]
    %v4022 = vld [vmem:[#allocation2 + $0x930] sm:$0xff]
    %v4023 = vld [vmem:[#allocation2 + $0x938] sm:$0xff]
    %v4024 = vld [vmem:[#allocation2 + $0x940] sm:$0xff]
    %v4025 = vld [vmem:[#allocation2 + $0x948] sm:$0xff]
    %v4026 = vld [vmem:[#allocation2 + $0x950] sm:$0xff]
    %v4027 = vld [vmem:[#allocation2 + $0x958] sm:$0xff]
    %v4028 = vld [vmem:[#allocation2 + $0x960] sm:$0xff]
    %v4029 = vld [vmem:[#allocation2 + $0x968] sm:$0xff]
    %v4030 = vld [vmem:[#allocation2 + $0x970] sm:$0xff]
    %v4031 = vld [vmem:[#allocation2 + $0x978] sm:$0xff]
    %v4032 = vld [vmem:[#allocation2 + $0x980] sm:$0xff]
    %v4033 = vld [vmem:[#allocation2 + $0x988] sm:$0xff]
    %v4034 = vld [vmem:[#allocation2 + $0x990] sm:$0xff]
    %v4035 = vld [vmem:[#allocation2 + $0x998] sm:$0xff]
    %v4036 = vld [vmem:[#allocation2 + $0x9a0] sm:$0xff]
    %v4037 = vld [vmem:[#allocation2 + $0x9a8] sm:$0xff]
    %v4038 = vld [vmem:[#allocation2 + $0x9b0] sm:$0xff]
    %v4039 = vld [vmem:[#allocation2 + $0x9b8] sm:$0xff]
    %v4040 = vld [vmem:[#allocation2 + $0x9c0] sm:$0xff]
    %v4041 = vld [vmem:[#allocation2 + $0x9c8] sm:$0xff]
    %v4042 = vld [vmem:[#allocation2 + $0x9d0] sm:$0xff]
    %v4043 = vld [vmem:[#allocation2 + $0x9d8] sm:$0xff]
    %v4044 = vld [vmem:[#allocation2 + $0x9e0] sm:$0xff]
    %v4045 = vld [vmem:[#allocation2 + $0x9e8] sm:$0xff]
    %v4046 = vld [vmem:[#allocation2 + $0x9f0] sm:$0xff]
    %v4047 = vld [vmem:[#allocation2 + $0x9f8] sm:$0xff]
    %v4048 = vld [vmem:[#allocation2 + $0xa00] sm:$0xff]
    %v4049 = vld [vmem:[#allocation2 + $0xa08] sm:$0xff]
    %v4050 = vld [vmem:[#allocation2 + $0xa10] sm:$0xff]
    %v4051 = vld [vmem:[#allocation2 + $0xa18] sm:$0xff]
    %v4052 = vld [vmem:[#allocation2 + $0xa20] sm:$0xff]
    %v4053 = vld [vmem:[#allocation2 + $0xa28] sm:$0xff]
    %v4054 = vld [vmem:[#allocation2 + $0xa30] sm:$0xff]
    %v4055 = vld [vmem:[#allocation2 + $0xa38] sm:$0xff]
    %v4056 = vld [vmem:[#allocation2 + $0xa40] sm:$0xff]
    %v4057 = vld [vmem:[#allocation2 + $0xa48] sm:$0xff]
    %v4058 = vld [vmem:[#allocation2 + $0xa50] sm:$0xff]
    %v4059 = vld [vmem:[#allocation2 + $0xa58] sm:$0xff]
    %v4060 = vld [vmem:[#allocation2 + $0xa60] sm:$0xff]
    %v4061 = vld [vmem:[#allocation2 + $0xa68] sm:$0xff]
    %v4062 = vld [vmem:[#allocation2 + $0xa70] sm:$0xff]
    %v4063 = vld [vmem:[#allocation2 + $0xa78] sm:$0xff]
    %v4064 = vld [vmem:[#allocation2 + $0xa80] sm:$0xff]
    %v4065 = vld [vmem:[#allocation2 + $0xa88] sm:$0xff]
    %v4066 = vld [vmem:[#allocation2 + $0xa90] sm:$0xff]
    %v4067 = vld [vmem:[#allocation2 + $0xa98] sm:$0xff]
    %v4068 = vld [vmem:[#allocation2 + $0xaa0] sm:$0xff]
    %v4069 = vld [vmem:[#allocation2 + $0xaa8] sm:$0xff]
    %v4070 = vld [vmem:[#allocation2 + $0xab0] sm:$0xff]
    %v4071 = vld [vmem:[#allocation2 + $0xab8] sm:$0xff]
    %v4072 = vld [vmem:[#allocation2 + $0xac0] sm:$0xff]
    %v4073 = vld [vmem:[#allocation2 + $0xac8] sm:$0xff]
    %v4074 = vld [vmem:[#allocation2 + $0xad0] sm:$0xff]
    %v4075 = vld [vmem:[#allocation2 + $0xad8] sm:$0xff]
    %v4076 = vld [vmem:[#allocation2 + $0xae0] sm:$0xff]
    %v4077 = vld [vmem:[#allocation2 + $0xae8] sm:$0xff]
    %v4078 = vld [vmem:[#allocation2 + $0xaf0] sm:$0xff]
    %v4079 = vld [vmem:[#allocation2 + $0xaf8] sm:$0xff]
    %v4080 = vld [vmem:[#allocation2 + $0xb00] sm:$0xff]
    %v4081 = vld [vmem:[#allocation2 + $0xb08] sm:$0xff]
    %v4082 = vld [vmem:[#allocation2 + $0xb10] sm:$0xff]
    %v4083 = vld [vmem:[#allocation2 + $0xb18] sm:$0xff]
    %v4084 = vld [vmem:[#allocation2 + $0xb20] sm:$0xff]
    %v4085 = vld [vmem:[#allocation2 + $0xb28] sm:$0xff]
    %v4086 = vld [vmem:[#allocation2 + $0xb30] sm:$0xff]
    %v4087 = vld [vmem:[#allocation2 + $0xb38] sm:$0xff]
    %v4088 = vld [vmem:[#allocation2 + $0xb40] sm:$0xff]
    %v4089 = vld [vmem:[#allocation2 + $0xb48] sm:$0xff]
    %v4090 = vld [vmem:[#allocation2 + $0xb50] sm:$0xff]
    %v4091 = vld [vmem:[#allocation2 + $0xb58] sm:$0xff]
    %v4092 = vld [vmem:[#allocation2 + $0xb60] sm:$0xff]
    %v4093 = vld [vmem:[#allocation2 + $0xb68] sm:$0xff]
    %v4094 = vld [vmem:[#allocation2 + $0xb70] sm:$0xff]
    %v4095 = vld [vmem:[#allocation2 + $0xb78] sm:$0xff]
    %v4096 = vld [vmem:[#allocation2 + $0xb80] sm:$0xff]
    %v4097 = vld [vmem:[#allocation2 + $0xb88] sm:$0xff]
    %v4098 = vld [vmem:[#allocation2 + $0xb90] sm:$0xff]
    %v4099 = vld [vmem:[#allocation2 + $0xb98] sm:$0xff]
    %v4100 = vld [vmem:[#allocation2 + $0xba0] sm:$0xff]
    %v4101 = vld [vmem:[#allocation2 + $0xba8] sm:$0xff]
    %v4102 = vld [vmem:[#allocation2 + $0xbb0] sm:$0xff]
    %v4103 = vld [vmem:[#allocation2 + $0xbb8] sm:$0xff]
    %v4104 = vld [vmem:[#allocation2 + $0xbc0] sm:$0xff]
    %v4105 = vld [vmem:[#allocation2 + $0xbc8] sm:$0xff]
    %v4106 = vld [vmem:[#allocation2 + $0xbd0] sm:$0xff]
    %v4107 = vld [vmem:[#allocation2 + $0xbd8] sm:$0xff]
    %v4108 = vld [vmem:[#allocation2 + $0xbe0] sm:$0xff]
    %v4109 = vld [vmem:[#allocation2 + $0xbe8] sm:$0xff]
    %v4110 = vld [vmem:[#allocation2 + $0xbf0] sm:$0xff]
    %v4111 = vld [vmem:[#allocation2 + $0xbf8] sm:$0xff]
    %v4112 = vld [vmem:[#allocation2 + $0xc00] sm:$0xff]
    %v4113 = vld [vmem:[#allocation2 + $0xc08] sm:$0xff]
    %v4114 = vld [vmem:[#allocation2 + $0xc10] sm:$0xff]
    %v4115 = vld [vmem:[#allocation2 + $0xc18] sm:$0xff]
    %v4116 = vld [vmem:[#allocation2 + $0xc20] sm:$0xff]
    %v4117 = vld [vmem:[#allocation2 + $0xc28] sm:$0xff]
    %v4118 = vld [vmem:[#allocation2 + $0xc30] sm:$0xff]
    %v4119 = vld [vmem:[#allocation2 + $0xc38] sm:$0xff]
    %v4120 = vld [vmem:[#allocation2 + $0xc40] sm:$0xff]
    %v4121 = vld [vmem:[#allocation2 + $0xc48] sm:$0xff]
    %v4122 = vld [vmem:[#allocation2 + $0xc50] sm:$0xff]
    %v4123 = vld [vmem:[#allocation2 + $0xc58] sm:$0xff]
    %v4124 = vld [vmem:[#allocation2 + $0xc60] sm:$0xff]
    %v4125 = vld [vmem:[#allocation2 + $0xc68] sm:$0xff]
    %v4126 = vld [vmem:[#allocation2 + $0xc70] sm:$0xff]
    %v4127 = vld [vmem:[#allocation2 + $0xc78] sm:$0xff]
    %v4128 = vld [vmem:[#allocation2 + $0xc80] sm:$0xff]
    %v4129 = vld [vmem:[#allocation2 + $0xc88] sm:$0xff]
    %v4130 = vld [vmem:[#allocation2 + $0xc90] sm:$0xff]
    %v4131 = vld [vmem:[#allocation2 + $0xc98] sm:$0xff]
    %v4132 = vld [vmem:[#allocation2 + $0xca0] sm:$0xff]
    %v4133 = vld [vmem:[#allocation2 + $0xca8] sm:$0xff]
    %v4134 = vld [vmem:[#allocation2 + $0xcb0] sm:$0xff]
    %v4135 = vld [vmem:[#allocation2 + $0xcb8] sm:$0xff]
    %v4136 = vld [vmem:[#allocation2 + $0xcc0] sm:$0xff]
    %v4137 = vld [vmem:[#allocation2 + $0xcc8] sm:$0xff]
    %v4138 = vld [vmem:[#allocation2 + $0xcd0] sm:$0xff]
    %v4139 = vld [vmem:[#allocation2 + $0xcd8] sm:$0xff]
    %v4140 = vld [vmem:[#allocation2 + $0xce0] sm:$0xff]
    %v4141 = vld [vmem:[#allocation2 + $0xce8] sm:$0xff]
    %v4142 = vld [vmem:[#allocation2 + $0xcf0] sm:$0xff]
    %v4143 = vld [vmem:[#allocation2 + $0xcf8] sm:$0xff]
    %v4144 = vld [vmem:[#allocation2 + $0xd00] sm:$0xff]
    %v4145 = vld [vmem:[#allocation2 + $0xd08] sm:$0xff]
    %v4146 = vld [vmem:[#allocation2 + $0xd10] sm:$0xff]
    %v4147 = vld [vmem:[#allocation2 + $0xd18] sm:$0xff]
    %v4148 = vld [vmem:[#allocation2 + $0xd20] sm:$0xff]
    %v4149 = vld [vmem:[#allocation2 + $0xd28] sm:$0xff]
    %v4150 = vld [vmem:[#allocation2 + $0xd30] sm:$0xff]
    %v4151 = vld [vmem:[#allocation2 + $0xd38] sm:$0xff]
    %v4152 = vld [vmem:[#allocation2 + $0xd40] sm:$0xff]
    %v4153 = vld [vmem:[#allocation2 + $0xd48] sm:$0xff]
    %v4154 = vld [vmem:[#allocation2 + $0xd50] sm:$0xff]
    %v4155 = vld [vmem:[#allocation2 + $0xd58] sm:$0xff]
    %v4156 = vld [vmem:[#allocation2 + $0xd60] sm:$0xff]
    %v4157 = vld [vmem:[#allocation2 + $0xd68] sm:$0xff]
    %v4158 = vld [vmem:[#allocation2 + $0xd70] sm:$0xff]
    %v4159 = vld [vmem:[#allocation2 + $0xd78] sm:$0xff]
    %v4160 = vld [vmem:[#allocation2 + $0xd80] sm:$0xff]
    %v4161 = vld [vmem:[#allocation2 + $0xd88] sm:$0xff]
    %v4162 = vld [vmem:[#allocation2 + $0xd90] sm:$0xff]
    %v4163 = vld [vmem:[#allocation2 + $0xd98] sm:$0xff]
    %v4164 = vld [vmem:[#allocation2 + $0xda0] sm:$0xff]
    %v4165 = vld [vmem:[#allocation2 + $0xda8] sm:$0xff]
    %v4166 = vld [vmem:[#allocation2 + $0xdb0] sm:$0xff]
    %v4167 = vld [vmem:[#allocation2 + $0xdb8] sm:$0xff]
    %v4168 = vld [vmem:[#allocation2 + $0xdc0] sm:$0xff]
    %v4169 = vld [vmem:[#allocation2 + $0xdc8] sm:$0xff]
    %v4170 = vld [vmem:[#allocation2 + $0xdd0] sm:$0xff]
    %v4171 = vld [vmem:[#allocation2 + $0xdd8] sm:$0xff]
    %v4172 = vld [vmem:[#allocation2 + $0xde0] sm:$0xff]
    %v4173 = vld [vmem:[#allocation2 + $0xde8] sm:$0xff]
    %v4174 = vld [vmem:[#allocation2 + $0xdf0] sm:$0xff]
    %v4175 = vld [vmem:[#allocation2 + $0xdf8] sm:$0xff]
    %v4176 = vld [vmem:[#allocation26] sm:$0x7f]
    %v4177 = vunpack.c.l.bf16 %v4176
    %v4178 = vunpack.c.h.bf16 %v4176
    %v4181 = vlaneseq
    %v4182 = vshrl.u32 %v4181, 7
    %v4183 = vsub.s32 0, %v4182
    %v4184 = vrot.slane %v4177, %v4183
    %v4185 = vlaneseq
    %v4186 = vshrl.u32 %v4185, 7
    %v4187 = vsub.s32 2, %v4186
    %v4188 = vrot.slane %v4177, %v4187
    %v4189 = vlaneseq
    %v4190 = vshrl.u32 %v4189, 7
    %v4191 = vsub.s32 4, %v4190
    %v4192 = vrot.slane %v4177, %v4191
    %v4193 = vlaneseq
    %v4194 = vshrl.u32 %v4193, 7
    %v4195 = vsub.s32 6, %v4194
    %v4196 = vrot.slane %v4177, %v4195
    %v4197 = vlaneseq
    %v4198 = vshrl.u32 %v4197, 7
    %v4199 = vsub.s32 0, %v4198
    %v4200 = vrot.slane %v4178, %v4199
    %v4201 = vlaneseq
    %v4202 = vshrl.u32 %v4201, 7
    %v4203 = vsub.s32 2, %v4202
    %v4204 = vrot.slane %v4178, %v4203
    %v4205 = vlaneseq
    %v4206 = vshrl.u32 %v4205, 7
    %v4207 = vsub.s32 4, %v4206
    %v4208 = vrot.slane %v4178, %v4207
    %v4216 = vlaneseq
    %v4217 = vshrl.u32 %v4216, 7
    %v4218 = vsub.s32 0, %v4217
    %v4219 = vrot.slane %v4184, %v4218
    %v4220 = vlaneseq
    %v4221 = vshrl.u32 %v4220, 7
    %v4222 = vsub.s32 0, %v4221
    %v4223 = vrot.slane %v4188, %v4222
    %v4224 = vlaneseq
    %v4225 = vshrl.u32 %v4224, 7
    %v4226 = vsub.s32 0, %v4225
    %v4227 = vrot.slane %v4192, %v4226
    %v4228 = vlaneseq
    %v4229 = vshrl.u32 %v4228, 7
    %v4230 = vsub.s32 0, %v4229
    %v4231 = vrot.slane %v4196, %v4230
    %v4232 = vlaneseq
    %v4233 = vshrl.u32 %v4232, 7
    %v4234 = vsub.s32 0, %v4233
    %v4235 = vrot.slane %v4200, %v4234
    %v4236 = vlaneseq
    %v4237 = vshrl.u32 %v4236, 7
    %v4238 = vsub.s32 0, %v4237
    %v4239 = vrot.slane %v4204, %v4238
    %v4240 = vlaneseq
    %v4241 = vshrl.u32 %v4240, 7
    %v4242 = vsub.s32 0, %v4241
    %v4243 = vrot.slane %v4208, %v4242
    %4244 = vmatprep.subr.bf16.mxu0 %v3729
    %4245 = vmatpush1.bf16.msra.mxu0 %v3728
    %4246 = vmatprep.subr.bf16.mxu0 %v3736
    %4247 = vmatpush1.bf16.msra.mxu0 %v3735
    %4248 = vmatprep.subr.bf16.mxu0 %v3743
    %4249 = vmatpush1.bf16.msra.mxu0 %v3742
    %4250 = vmatprep.subr.bf16.mxu0 %v3750
    %4251 = vmatpush1.bf16.msra.mxu0 %v3749
    %4252 = vmatprep.subr.bf16.mxu0 %v3757
    %4253 = vmatpush1.bf16.msra.mxu0 %v3756
    %4254 = vmatprep.subr.bf16.mxu0 %v3764
    %4255 = vmatpush1.bf16.msra.mxu0 %v3763
    %4256 = vmatprep.subr.bf16.mxu0 %v3771
    %4257 = vmatpush1.bf16.msra.mxu0 %v3770
    %4258 = vmatprep.subr.bf16.mxu0 %v3778
    %4259 = vmatpush1.bf16.msra.mxu0 %v3777
    %4260 = vmatprep.subr.bf16.mxu0 %v3785
    %4261 = vmatpush1.bf16.msra.mxu0 %v3784
    %4262 = vmatprep.subr.bf16.mxu0 %v3792
    %4263 = vmatpush1.bf16.msra.mxu0 %v3791
    %4264 = vmatprep.subr.bf16.mxu0 %v3799
    %4265 = vmatpush1.bf16.msra.mxu0 %v3798
    %4266 = vmatprep.subr.bf16.mxu0 %v3806
    %4267 = vmatpush1.bf16.msra.mxu0 %v3805
    %4268 = vmatprep.subr.bf16.mxu0 %v3813
    %4269 = vmatpush1.bf16.msra.mxu0 %v3812
    %4270 = vmatprep.subr.bf16.mxu0 %v3820
    %4271 = vmatpush1.bf16.msra.mxu0 %v3819
    %4272 = vmatprep.subr.bf16.mxu0 %v3827
    %4273 = vmatpush1.bf16.msra.mxu0 %v3826
    %4274 = vmatprep.subr.bf16.mxu0 %v3834
    %4275 = vmatpush1.bf16.msra.mxu0 %v3833
    %4276 = vmatprep.mubr.bf16.mxu0 %v3721
    %4277 = vmatmul.mubr.bf16.gmra.mrb[0].mxu0 %v3720
    %v4278 = vpop.f32.mrb[0].mxu0
    %v4279 = vadd.f32 %v4219, %v4278
    %v4280 = vpop.f32.mrb[0].mxu0
    %v4281 = vadd.f32 %v4223, %v4280
    %v4282 = vpop.f32.mrb[0].mxu0
    %v4283 = vpop.f32.mrb[0].mxu0
    %4284 = vdwg.mxu0
    %4285 = vmatprep.subr.bf16.mxu0 %v3841
    %4286 = vmatpush1.bf16.msra.mxu0 %v3840
    %4287 = vmatprep.subr.bf16.mxu0 %v3848
    %4288 = vmatpush1.bf16.msra.mxu0 %v3847
    %4289 = vmatprep.subr.bf16.mxu0 %v3855
    %4290 = vmatpush1.bf16.msra.mxu0 %v3854
    %4291 = vmatprep.subr.bf16.mxu0 %v3862
    %4292 = vmatpush1.bf16.msra.mxu0 %v3861
    %4293 = vmatprep.subr.bf16.mxu0 %v3869
    %4294 = vmatpush1.bf16.msra.mxu0 %v3868
    %4295 = vmatprep.subr.bf16.mxu0 %v3876
    %4296 = vmatpush1.bf16.msra.mxu0 %v3875
    %4297 = vmatprep.subr.bf16.mxu0 %v3883
    %4298 = vmatpush1.bf16.msra.mxu0 %v3882
    %4299 = vmatprep.subr.bf16.mxu0 %v3890
    %4300 = vmatpush1.bf16.msra.mxu0 %v3889
    %4301 = vmatprep.subr.bf16.mxu0 %v3897
    %4302 = vmatpush1.bf16.msra.mxu0 %v3896
    %4303 = vmatprep.subr.bf16.mxu0 %v3904
    %4304 = vmatpush1.bf16.msra.mxu0 %v3903
    %4305 = vmatprep.subr.bf16.mxu0 %v3911
    %4306 = vmatpush1.bf16.msra.mxu0 %v3910
    %4307 = vmatprep.subr.bf16.mxu0 %v3918
    %4308 = vmatpush1.bf16.msra.mxu0 %v3917
    %4309 = vmatprep.subr.bf16.mxu0 %v3925
    %4310 = vmatpush1.bf16.msra.mxu0 %v3924
    %4311 = vmatprep.subr.bf16.mxu0 %v3932
    %4312 = vmatpush1.bf16.msra.mxu0 %v3931
    %4313 = vmatprep.subr.bf16.mxu0 %v3939
    %4314 = vmatpush1.bf16.msra.mxu0 %v3938
    %4315 = vmatprep.subr.bf16.mxu0 %v3946
    %4316 = vmatpush1.bf16.msra.mxu0 %v3945
    %4317 = vmatprep.mubr.bf16.mxu0 %v3723
    %4318 = vmatmul.mubr.bf16.gmra.mrb[0].mxu0 %v3722
    %v4319 = vpop.f32.mrb[0].mxu0
    %v4320 = vadd.f32 %v4279, %v4319
    %v4321 = vpop.f32.mrb[0].mxu0
    %v4322 = vadd.f32 %v4281, %v4321
    %v4323 = vpop.f32.mrb[0].mxu0
    %v4324 = vpop.f32.mrb[0].mxu0
    %4325 = vdwg.mxu0
    %4326 = vmatprep.subr.bf16.mxu0 %v3953
    %4327 = vmatpush1.bf16.msra.mxu0 %v3952
    %4328 = vmatprep.subr.bf16.mxu0 %v3960
    %4329 = vmatpush1.bf16.msra.mxu0 %v3959
    %4330 = vmatprep.subr.bf16.mxu0 %v3967
    %4331 = vmatpush1.bf16.msra.mxu0 %v3966
    %4332 = vmatprep.subr.bf16.mxu0 %v3974
    %4333 = vmatpush1.bf16.msra.mxu0 %v3973
    %4334 = vmatprep.subr.bf16.mxu0 %v3981
    %4335 = vmatpush1.bf16.msra.mxu0 %v3980
    %4336 = vmatprep.subr.bf16.mxu0 %v3988
    %4337 = vmatpush1.bf16.msra.mxu0 %v3987
    %4338 = vmatprep.subr.bf16.mxu0 %v3995
    %4339 = vmatpush1.bf16.msra.mxu0 %v3994
    %4340 = vmatprep.subr.bf16.mxu0 %v4002
    %4341 = vmatpush1.bf16.msra.mxu0 %v4001
    %4342 = vmatprep.subr.bf16.mxu0 %v4009
    %4343 = vmatpush1.bf16.msra.mxu0 %v4008
    %4344 = vmatprep.subr.bf16.mxu0 %v4016
    %4345 = vmatpush1.bf16.msra.mxu0 %v4015
    %4346 = vmatprep.subr.bf16.mxu0 %v4023
    %4347 = vmatpush1.bf16.msra.mxu0 %v4022
    %4348 = vmatprep.subr.bf16.mxu0 %v4030
    %4349 = vmatpush1.bf16.msra.mxu0 %v4029
    %4350 = vmatprep.subr.bf16.mxu0 %v4037
    %4351 = vmatpush1.bf16.msra.mxu0 %v4036
    %4352 = vmatprep.subr.bf16.mxu0 %v4044
    %4353 = vmatpush1.bf16.msra.mxu0 %v4043
    %4354 = vmatprep.subr.bf16.mxu0 %v4051
    %4355 = vmatpush1.bf16.msra.mxu0 %v4050
    %4356 = vmatprep.subr.bf16.mxu0 %v4058
    %4357 = vmatpush1.bf16.msra.mxu0 %v4057
    %4358 = vmatprep.mubr.bf16.mxu0 %v3725
    %4359 = vmatmul.mubr.bf16.gmra.mrb[0].mxu0 %v3724
    %v4360 = vpop.f32.mrb[0].mxu0
    %v4361 = vadd.f32 %v4320, %v4360
    %v4362 = vpop.f32.mrb[0].mxu0
    %v4363 = vadd.f32 %v4322, %v4362
    %v4364 = vpop.f32.mrb[0].mxu0
    %v4365 = vpop.f32.mrb[0].mxu0
    %4366 = vdwg.mxu0
    %4367 = vmatprep.subr.bf16.mxu0 %v4065
    %4368 = vmatpush1.bf16.msra.mxu0 %v4064
    %4369 = vmatprep.subr.bf16.mxu0 %v4072
    %4370 = vmatpush1.bf16.msra.mxu0 %v4071
    %4371 = vmatprep.subr.bf16.mxu0 %v4079
    %4372 = vmatpush1.bf16.msra.mxu0 %v4078
    %4373 = vmatprep.subr.bf16.mxu0 %v4086
    %4374 = vmatpush1.bf16.msra.mxu0 %v4085
    %4375 = vmatprep.subr.bf16.mxu0 %v4093
    %4376 = vmatpush1.bf16.msra.mxu0 %v4092
    %4377 = vmatprep.subr.bf16.mxu0 %v4100
    %4378 = vmatpush1.bf16.msra.mxu0 %v4099
    %4379 = vmatprep.subr.bf16.mxu0 %v4107
    %4380 = vmatpush1.bf16.msra.mxu0 %v4106
    %4381 = vmatprep.subr.bf16.mxu0 %v4114
    %4382 = vmatpush1.bf16.msra.mxu0 %v4113
    %4383 = vmatprep.subr.bf16.mxu0 %v4121
    %4384 = vmatpush1.bf16.msra.mxu0 %v4120
    %4385 = vmatprep.subr.bf16.mxu0 %v4128
    %4386 = vmatpush1.bf16.msra.mxu0 %v4127
    %4387 = vmatprep.subr.bf16.mxu0 %v4135
    %4388 = vmatpush1.bf16.msra.mxu0 %v4134
    %4389 = vmatprep.subr.bf16.mxu0 %v4142
    %4390 = vmatpush1.bf16.msra.mxu0 %v4141
    %4391 = vmatprep.subr.bf16.mxu0 %v4149
    %4392 = vmatpush1.bf16.msra.mxu0 %v4148
    %4393 = vmatprep.subr.bf16.mxu0 %v4156
    %4394 = vmatpush1.bf16.msra.mxu0 %v4155
    %4395 = vmatprep.subr.bf16.mxu0 %v4163
    %4396 = vmatpush1.bf16.msra.mxu0 %v4162
    %4397 = vmatprep.subr.bf16.mxu0 %v4170
    %4398 = vmatpush1.bf16.msra.mxu0 %v4169
    %4399 = vmatprep.mubr.bf16.mxu0 %v3727
    %4400 = vmatmul.mubr.bf16.gmra.mrb[0].mxu0 %v3726
    %v4401 = vpop.f32.mrb[0].mxu0
    %v4402 = vadd.f32 %v4361, %v4401
    %v4403 = vpop.f32.mrb[0].mxu0
    %v4404 = vadd.f32 %v4363, %v4403
    %v4405 = vpop.f32.mrb[0].mxu0
    %v4406 = vpop.f32.mrb[0].mxu0
    %4407 = vdwg.mxu0
    %4408 = vmatprep.subr.bf16.mxu0 %v3731
    %4409 = vmatpush1.bf16.msra.mxu0 %v3730
    %4410 = vmatprep.subr.bf16.mxu0 %v3738
    %4411 = vmatpush1.bf16.msra.mxu0 %v3737
    %4412 = vmatprep.subr.bf16.mxu0 %v3745
    %4413 = vmatpush1.bf16.msra.mxu0 %v3744
    %4414 = vmatprep.subr.bf16.mxu0 %v3752
    %4415 = vmatpush1.bf16.msra.mxu0 %v3751
    %4416 = vmatprep.subr.bf16.mxu0 %v3759
    %4417 = vmatpush1.bf16.msra.mxu0 %v3758
    %4418 = vmatprep.subr.bf16.mxu0 %v3766
    %4419 = vmatpush1.bf16.msra.mxu0 %v3765
    %4420 = vmatprep.subr.bf16.mxu0 %v3773
    %4421 = vmatpush1.bf16.msra.mxu0 %v3772
    %4422 = vmatprep.subr.bf16.mxu0 %v3780
    %4423 = vmatpush1.bf16.msra.mxu0 %v3779
    %4424 = vmatprep.subr.bf16.mxu0 %v3787
    %4425 = vmatpush1.bf16.msra.mxu0 %v3786
    %4426 = vmatprep.subr.bf16.mxu0 %v3794
    %4427 = vmatpush1.bf16.msra.mxu0 %v3793
    %4428 = vmatprep.subr.bf16.mxu0 %v3801
    %4429 = vmatpush1.bf16.msra.mxu0 %v3800
    %4430 = vmatprep.subr.bf16.mxu0 %v3808
    %4431 = vmatpush1.bf16.msra.mxu0 %v3807
    %4432 = vmatprep.subr.bf16.mxu0 %v3815
    %4433 = vmatpush1.bf16.msra.mxu0 %v3814
    %4434 = vmatprep.subr.bf16.mxu0 %v3822
    %4435 = vmatpush1.bf16.msra.mxu0 %v3821
    %4436 = vmatprep.subr.bf16.mxu0 %v3829
    %4437 = vmatpush1.bf16.msra.mxu0 %v3828
    %4438 = vmatprep.subr.bf16.mxu0 %v3836
    %4439 = vmatpush1.bf16.msra.mxu0 %v3835
    %4440 = vmatprep.mubr.bf16.mxu0 %v3721
    %4441 = vmatmul.mubr.bf16.gmra.mrb[0].mxu0 %v3720
    %v4442 = vpop.f32.mrb[0].mxu0
    %v4443 = vadd.f32 %v4227, %v4442
    %v4444 = vpop.f32.mrb[0].mxu0
    %v4445 = vadd.f32 %v4231, %v4444
    %v4446 = vpop.f32.mrb[0].mxu0
    %v4447 = vpop.f32.mrb[0].mxu0
    %4448 = vdwg.mxu0
    %4449 = vmatprep.subr.bf16.mxu0 %v3843
    %4450 = vmatpush1.bf16.msra.mxu0 %v3842
    %4451 = vmatprep.subr.bf16.mxu0 %v3850
    %4452 = vmatpush1.bf16.msra.mxu0 %v3849
    %4453 = vmatprep.subr.bf16.mxu0 %v3857
    %4454 = vmatpush1.bf16.msra.mxu0 %v3856
    %4455 = vmatprep.subr.bf16.mxu0 %v3864
    %4456 = vmatpush1.bf16.msra.mxu0 %v3863
    %4457 = vmatprep.subr.bf16.mxu0 %v3871
    %4458 = vmatpush1.bf16.msra.mxu0 %v3870
    %4459 = vmatprep.subr.bf16.mxu0 %v3878
    %4460 = vmatpush1.bf16.msra.mxu0 %v3877
    %4461 = vmatprep.subr.bf16.mxu0 %v3885
    %4462 = vmatpush1.bf16.msra.mxu0 %v3884
    %4463 = vmatprep.subr.bf16.mxu0 %v3892
    %4464 = vmatpush1.bf16.msra.mxu0 %v3891
    %4465 = vmatprep.subr.bf16.mxu0 %v3899
    %4466 = vmatpush1.bf16.msra.mxu0 %v3898
    %4467 = vmatprep.subr.bf16.mxu0 %v3906
    %4468 = vmatpush1.bf16.msra.mxu0 %v3905
    %4469 = vmatprep.subr.bf16.mxu0 %v3913
    %4470 = vmatpush1.bf16.msra.mxu0 %v3912
    %4471 = vmatprep.subr.bf16.mxu0 %v3920
    %4472 = vmatpush1.bf16.msra.mxu0 %v3919
    %4473 = vmatprep.subr.bf16.mxu0 %v3927
    %4474 = vmatpush1.bf16.msra.mxu0 %v3926
    %4475 = vmatprep.subr.bf16.mxu0 %v3934
    %4476 = vmatpush1.bf16.msra.mxu0 %v3933
    %4477 = vmatprep.subr.bf16.mxu0 %v3941
    %4478 = vmatpush1.bf16.msra.mxu0 %v3940
    %4479 = vmatprep.subr.bf16.mxu0 %v3948
    %4480 = vmatpush1.bf16.msra.mxu0 %v3947
    %4481 = vmatprep.mubr.bf16.mxu0 %v3723
    %4482 = vmatmul.mubr.bf16.gmra.mrb[0].mxu0 %v3722
    %v4483 = vpop.f32.mrb[0].mxu0
    %v4484 = vadd.f32 %v4443, %v4483
    %v4485 = vpop.f32.mrb[0].mxu0
    %v4486 = vadd.f32 %v4445, %v4485
    %v4487 = vpop.f32.mrb[0].mxu0
    %v4488 = vpop.f32.mrb[0].mxu0
    %4489 = vdwg.mxu0
    %4490 = vmatprep.subr.bf16.mxu0 %v3955
    %4491 = vmatpush1.bf16.msra.mxu0 %v3954
    %4492 = vmatprep.subr.bf16.mxu0 %v3962
    %4493 = vmatpush1.bf16.msra.mxu0 %v3961
    %4494 = vmatprep.subr.bf16.mxu0 %v3969
    %4495 = vmatpush1.bf16.msra.mxu0 %v3968
    %4496 = vmatprep.subr.bf16.mxu0 %v3976
    %4497 = vmatpush1.bf16.msra.mxu0 %v3975
    %4498 = vmatprep.subr.bf16.mxu0 %v3983
    %4499 = vmatpush1.bf16.msra.mxu0 %v3982
    %4500 = vmatprep.subr.bf16.mxu0 %v3990
    %4501 = vmatpush1.bf16.msra.mxu0 %v3989
    %4502 = vmatprep.subr.bf16.mxu0 %v3997
    %4503 = vmatpush1.bf16.msra.mxu0 %v3996
    %4504 = vmatprep.subr.bf16.mxu0 %v4004
    %4505 = vmatpush1.bf16.msra.mxu0 %v4003
    %4506 = vmatprep.subr.bf16.mxu0 %v4011
    %4507 = vmatpush1.bf16.msra.mxu0 %v4010
    %4508 = vmatprep.subr.bf16.mxu0 %v4018
    %4509 = vmatpush1.bf16.msra.mxu0 %v4017
    %4510 = vmatprep.subr.bf16.mxu0 %v4025
    %4511 = vmatpush1.bf16.msra.mxu0 %v4024
    %4512 = vmatprep.subr.bf16.mxu0 %v4032
    %4513 = vmatpush1.bf16.msra.mxu0 %v4031
    %4514 = vmatprep.subr.bf16.mxu0 %v4039
    %4515 = vmatpush1.bf16.msra.mxu0 %v4038
    %4516 = vmatprep.subr.bf16.mxu0 %v4046
    %4517 = vmatpush1.bf16.msra.mxu0 %v4045
    %4518 = vmatprep.subr.bf16.mxu0 %v4053
    %4519 = vmatpush1.bf16.msra.mxu0 %v4052
    %4520 = vmatprep.subr.bf16.mxu0 %v4060
    %4521 = vmatpush1.bf16.msra.mxu0 %v4059
    %4522 = vmatprep.mubr.bf16.mxu0 %v3725
    %4523 = vmatmul.mubr.bf16.gmra.mrb[0].mxu0 %v3724
    %v4524 = vpop.f32.mrb[0].mxu0
    %v4525 = vadd.f32 %v4484, %v4524
    %v4526 = vpop.f32.mrb[0].mxu0
    %v4527 = vadd.f32 %v4486, %v4526
    %v4528 = vpop.f32.mrb[0].mxu0
    %v4529 = vpop.f32.mrb[0].mxu0
    %4530 = vdwg.mxu0
    %4531 = vmatprep.subr.bf16.mxu0 %v4067
    %4532 = vmatpush1.bf16.msra.mxu0 %v4066
    %4533 = vmatprep.subr.bf16.mxu0 %v4074
    %4534 = vmatpush1.bf16.msra.mxu0 %v4073
    %4535 = vmatprep.subr.bf16.mxu0 %v4081
    %4536 = vmatpush1.bf16.msra.mxu0 %v4080
    %4537 = vmatprep.subr.bf16.mxu0 %v4088
    %4538 = vmatpush1.bf16.msra.mxu0 %v4087
    %4539 = vmatprep.subr.bf16.mxu0 %v4095
    %4540 = vmatpush1.bf16.msra.mxu0 %v4094
    %4541 = vmatprep.subr.bf16.mxu0 %v4102
    %4542 = vmatpush1.bf16.msra.mxu0 %v4101
    %4543 = vmatprep.subr.bf16.mxu0 %v4109
    %4544 = vmatpush1.bf16.msra.mxu0 %v4108
    %4545 = vmatprep.subr.bf16.mxu0 %v4116
    %4546 = vmatpush1.bf16.msra.mxu0 %v4115
    %4547 = vmatprep.subr.bf16.mxu0 %v4123
    %4548 = vmatpush1.bf16.msra.mxu0 %v4122
    %4549 = vmatprep.subr.bf16.mxu0 %v4130
    %4550 = vmatpush1.bf16.msra.mxu0 %v4129
    %4551 = vmatprep.subr.bf16.mxu0 %v4137
    %4552 = vmatpush1.bf16.msra.mxu0 %v4136
    %4553 = vmatprep.subr.bf16.mxu0 %v4144
    %4554 = vmatpush1.bf16.msra.mxu0 %v4143
    %4555 = vmatprep.subr.bf16.mxu0 %v4151
    %4556 = vmatpush1.bf16.msra.mxu0 %v4150
    %4557 = vmatprep.subr.bf16.mxu0 %v4158
    %4558 = vmatpush1.bf16.msra.mxu0 %v4157
    %4559 = vmatprep.subr.bf16.mxu0 %v4165
    %4560 = vmatpush1.bf16.msra.mxu0 %v4164
    %4561 = vmatprep.subr.bf16.mxu0 %v4172
    %4562 = vmatpush1.bf16.msra.mxu0 %v4171
    %4563 = vmatprep.mubr.bf16.mxu0 %v3727
    %4564 = vmatmul.mubr.bf16.gmra.mrb[0].mxu0 %v3726
    %v4565 = vpop.f32.mrb[0].mxu0
    %v4566 = vadd.f32 %v4525, %v4565
    %v4567 = vpop.f32.mrb[0].mxu0
    %v4568 = vadd.f32 %v4527, %v4567
    %v4569 = vpop.f32.mrb[0].mxu0
    %v4570 = vpop.f32.mrb[0].mxu0
    %4571 = vdwg.mxu0
    %4572 = vmatprep.subr.bf16.mxu0 %v3733
    %4573 = vmatpush1.bf16.msra.mxu0 %v3732
    %4574 = vmatprep.subr.bf16.mxu0 %v3740
    %4575 = vmatpush1.bf16.msra.mxu0 %v3739
    %4576 = vmatprep.subr.bf16.mxu0 %v3747
    %4577 = vmatpush1.bf16.msra.mxu0 %v3746
    %4578 = vmatprep.subr.bf16.mxu0 %v3754
    %4579 = vmatpush1.bf16.msra.mxu0 %v3753
    %4580 = vmatprep.subr.bf16.mxu0 %v3761
    %4581 = vmatpush1.bf16.msra.mxu0 %v3760
    %4582 = vmatprep.subr.bf16.mxu0 %v3768
    %4583 = vmatpush1.bf16.msra.mxu0 %v3767
    %4584 = vmatprep.subr.bf16.mxu0 %v3775
    %4585 = vmatpush1.bf16.msra.mxu0 %v3774
    %4586 = vmatprep.subr.bf16.mxu0 %v3782
    %4587 = vmatpush1.bf16.msra.mxu0 %v3781
    %4588 = vmatprep.subr.bf16.mxu0 %v3789
    %4589 = vmatpush1.bf16.msra.mxu0 %v3788
    %4590 = vmatprep.subr.bf16.mxu0 %v3796
    %4591 = vmatpush1.bf16.msra.mxu0 %v3795
    %4592 = vmatprep.subr.bf16.mxu0 %v3803
    %4593 = vmatpush1.bf16.msra.mxu0 %v3802
    %4594 = vmatprep.subr.bf16.mxu0 %v3810
    %4595 = vmatpush1.bf16.msra.mxu0 %v3809
    %4596 = vmatprep.subr.bf16.mxu0 %v3817
    %4597 = vmatpush1.bf16.msra.mxu0 %v3816
    %4598 = vmatprep.subr.bf16.mxu0 %v3824
    %4599 = vmatpush1.bf16.msra.mxu0 %v3823
    %4600 = vmatprep.subr.bf16.mxu0 %v3831
    %4601 = vmatpush1.bf16.msra.mxu0 %v3830
    %4602 = vmatprep.subr.bf16.mxu0 %v3838
    %4603 = vmatpush1.bf16.msra.mxu0 %v3837
    %4604 = vmatprep.mubr.bf16.mxu0 %v3721
    %4605 = vmatmul.mubr.bf16.gmra.mrb[0].mxu0 %v3720
    %v4606 = vpop.f32.mrb[0].mxu0
    %v4607 = vadd.f32 %v4235, %v4606
    %v4608 = vpop.f32.mrb[0].mxu0
    %v4609 = vadd.f32 %v4239, %v4608
    %v4610 = vpop.f32.mrb[0].mxu0
    %v4611 = vpop.f32.mrb[0].mxu0
    %4612 = vdwg.mxu0
    %4613 = vmatprep.subr.bf16.mxu0 %v3845
    %4614 = vmatpush1.bf16.msra.mxu0 %v3844
    %4615 = vmatprep.subr.bf16.mxu0 %v3852
    %4616 = vmatpush1.bf16.msra.mxu0 %v3851
    %4617 = vmatprep.subr.bf16.mxu0 %v3859
    %4618 = vmatpush1.bf16.msra.mxu0 %v3858
    %4619 = vmatprep.subr.bf16.mxu0 %v3866
    %4620 = vmatpush1.bf16.msra.mxu0 %v3865
    %4621 = vmatprep.subr.bf16.mxu0 %v3873
    %4622 = vmatpush1.bf16.msra.mxu0 %v3872
    %4623 = vmatprep.subr.bf16.mxu0 %v3880
    %4624 = vmatpush1.bf16.msra.mxu0 %v3879
    %4625 = vmatprep.subr.bf16.mxu0 %v3887
    %4626 = vmatpush1.bf16.msra.mxu0 %v3886
    %4627 = vmatprep.subr.bf16.mxu0 %v3894
    %4628 = vmatpush1.bf16.msra.mxu0 %v3893
    %4629 = vmatprep.subr.bf16.mxu0 %v3901
    %4630 = vmatpush1.bf16.msra.mxu0 %v3900
    %4631 = vmatprep.subr.bf16.mxu0 %v3908
    %4632 = vmatpush1.bf16.msra.mxu0 %v3907
    %4633 = vmatprep.subr.bf16.mxu0 %v3915
    %4634 = vmatpush1.bf16.msra.mxu0 %v3914
    %4635 = vmatprep.subr.bf16.mxu0 %v3922
    %4636 = vmatpush1.bf16.msra.mxu0 %v3921
    %4637 = vmatprep.subr.bf16.mxu0 %v3929
    %4638 = vmatpush1.bf16.msra.mxu0 %v3928
    %4639 = vmatprep.subr.bf16.mxu0 %v3936
    %4640 = vmatpush1.bf16.msra.mxu0 %v3935
    %4641 = vmatprep.subr.bf16.mxu0 %v3943
    %4642 = vmatpush1.bf16.msra.mxu0 %v3942
    %4643 = vmatprep.subr.bf16.mxu0 %v3950
    %4644 = vmatpush1.bf16.msra.mxu0 %v3949
    %4645 = vmatprep.mubr.bf16.mxu0 %v3723
    %4646 = vmatmul.mubr.bf16.gmra.mrb[0].mxu0 %v3722
    %v4647 = vpop.f32.mrb[0].mxu0
    %v4648 = vadd.f32 %v4607, %v4647
    %v4649 = vpop.f32.mrb[0].mxu0
    %v4650 = vadd.f32 %v4609, %v4649
    %v4651 = vpop.f32.mrb[0].mxu0
    %v4652 = vpop.f32.mrb[0].mxu0
    %4653 = vdwg.mxu0
    %4654 = vmatprep.subr.bf16.mxu0 %v3957
    %4655 = vmatpush1.bf16.msra.mxu0 %v3956
    %4656 = vmatprep.subr.bf16.mxu0 %v3964
    %4657 = vmatpush1.bf16.msra.mxu0 %v3963
    %4658 = vmatprep.subr.bf16.mxu0 %v3971
    %4659 = vmatpush1.bf16.msra.mxu0 %v3970
    %4660 = vmatprep.subr.bf16.mxu0 %v3978
    %4661 = vmatpush1.bf16.msra.mxu0 %v3977
    %4662 = vmatprep.subr.bf16.mxu0 %v3985
    %4663 = vmatpush1.bf16.msra.mxu0 %v3984
    %4664 = vmatprep.subr.bf16.mxu0 %v3992
    %4665 = vmatpush1.bf16.msra.mxu0 %v3991
    %4666 = vmatprep.subr.bf16.mxu0 %v3999
    %4667 = vmatpush1.bf16.msra.mxu0 %v3998
    %4668 = vmatprep.subr.bf16.mxu0 %v4006
    %4669 = vmatpush1.bf16.msra.mxu0 %v4005
    %4670 = vmatprep.subr.bf16.mxu0 %v4013
    %4671 = vmatpush1.bf16.msra.mxu0 %v4012
    %4672 = vmatprep.subr.bf16.mxu0 %v4020
    %4673 = vmatpush1.bf16.msra.mxu0 %v4019
    %4674 = vmatprep.subr.bf16.mxu0 %v4027
    %4675 = vmatpush1.bf16.msra.mxu0 %v4026
    %4676 = vmatprep.subr.bf16.mxu0 %v4034
    %4677 = vmatpush1.bf16.msra.mxu0 %v4033
    %4678 = vmatprep.subr.bf16.mxu0 %v4041
    %4679 = vmatpush1.bf16.msra.mxu0 %v4040
    %4680 = vmatprep.subr.bf16.mxu0 %v4048
    %4681 = vmatpush1.bf16.msra.mxu0 %v4047
    %4682 = vmatprep.subr.bf16.mxu0 %v4055
    %4683 = vmatpush1.bf16.msra.mxu0 %v4054
    %4684 = vmatprep.subr.bf16.mxu0 %v4062
    %4685 = vmatpush1.bf16.msra.mxu0 %v4061
    %4686 = vmatprep.mubr.bf16.mxu0 %v3725
    %4687 = vmatmul.mubr.bf16.gmra.mrb[0].mxu0 %v3724
    %v4688 = vpop.f32.mrb[0].mxu0
    %v4689 = vadd.f32 %v4648, %v4688
    %v4690 = vpop.f32.mrb[0].mxu0
    %v4691 = vadd.f32 %v4650, %v4690
    %v4692 = vpop.f32.mrb[0].mxu0
    %v4693 = vpop.f32.mrb[0].mxu0
    %4694 = vdwg.mxu0
    %4695 = vmatprep.subr.bf16.mxu0 %v4069
    %4696 = vmatpush1.bf16.msra.mxu0 %v4068
    %4697 = vmatprep.subr.bf16.mxu0 %v4076
    %4698 = vmatpush1.bf16.msra.mxu0 %v4075
    %4699 = vmatprep.subr.bf16.mxu0 %v4083
    %4700 = vmatpush1.bf16.msra.mxu0 %v4082
    %4701 = vmatprep.subr.bf16.mxu0 %v4090
    %4702 = vmatpush1.bf16.msra.mxu0 %v4089
    %4703 = vmatprep.subr.bf16.mxu0 %v4097
    %4704 = vmatpush1.bf16.msra.mxu0 %v4096
    %4705 = vmatprep.subr.bf16.mxu0 %v4104
    %4706 = vmatpush1.bf16.msra.mxu0 %v4103
    %4707 = vmatprep.subr.bf16.mxu0 %v4111
    %4708 = vmatpush1.bf16.msra.mxu0 %v4110
    %4709 = vmatprep.subr.bf16.mxu0 %v4118
    %4710 = vmatpush1.bf16.msra.mxu0 %v4117
    %4711 = vmatprep.subr.bf16.mxu0 %v4125
    %4712 = vmatpush1.bf16.msra.mxu0 %v4124
    %4713 = vmatprep.subr.bf16.mxu0 %v4132
    %4714 = vmatpush1.bf16.msra.mxu0 %v4131
    %4715 = vmatprep.subr.bf16.mxu0 %v4139
    %4716 = vmatpush1.bf16.msra.mxu0 %v4138
    %4717 = vmatprep.subr.bf16.mxu0 %v4146
    %4718 = vmatpush1.bf16.msra.mxu0 %v4145
    %4719 = vmatprep.subr.bf16.mxu0 %v4153
    %4720 = vmatpush1.bf16.msra.mxu0 %v4152
    %4721 = vmatprep.subr.bf16.mxu0 %v4160
    %4722 = vmatpush1.bf16.msra.mxu0 %v4159
    %4723 = vmatprep.subr.bf16.mxu0 %v4167
    %4724 = vmatpush1.bf16.msra.mxu0 %v4166
    %4725 = vmatprep.subr.bf16.mxu0 %v4174
    %4726 = vmatpush1.bf16.msra.mxu0 %v4173
    %4727 = vmatprep.mubr.bf16.mxu0 %v3727
    %4728 = vmatmul.mubr.bf16.gmra.mrb[0].mxu0 %v3726
    %v4729 = vpop.f32.mrb[0].mxu0
    %v4730 = vadd.f32 %v4689, %v4729
    %v4731 = vpop.f32.mrb[0].mxu0
    %v4732 = vadd.f32 %v4691, %v4731
    %v4733 = vpop.f32.mrb[0].mxu0
    %v4734 = vpop.f32.mrb[0].mxu0
    %4735 = vdwg.mxu0
    %4736 = vmatprep.subr.bf16.mxu0 0
    %4737 = vmatpush1.bf16.msra.mxu0 %v3734
    %4738 = vmatprep.subr.bf16.mxu0 0
    %4739 = vmatpush1.bf16.msra.mxu0 %v3741
    %4740 = vmatprep.subr.bf16.mxu0 0
    %4741 = vmatpush1.bf16.msra.mxu0 %v3748
    %4742 = vmatprep.subr.bf16.mxu0 0
    %4743 = vmatpush1.bf16.msra.mxu0 %v3755
    %4744 = vmatprep.subr.bf16.mxu0 0
    %4745 = vmatpush1.bf16.msra.mxu0 %v3762
    %4746 = vmatprep.subr.bf16.mxu0 0
    %4747 = vmatpush1.bf16.msra.mxu0 %v3769
    %4748 = vmatprep.subr.bf16.mxu0 0
    %4749 = vmatpush1.bf16.msra.mxu0 %v3776
    %4750 = vmatprep.subr.bf16.mxu0 0
    %4751 = vmatpush1.bf16.msra.mxu0 %v3783
    %4752 = vmatprep.subr.bf16.mxu0 0
    %4753 = vmatpush1.bf16.msra.mxu0 %v3790
    %4754 = vmatprep.subr.bf16.mxu0 0
    %4755 = vmatpush1.bf16.msra.mxu0 %v3797
    %4756 = vmatprep.subr.bf16.mxu0 0
    %4757 = vmatpush1.bf16.msra.mxu0 %v3804
    %4758 = vmatprep.subr.bf16.mxu0 0
    %4759 = vmatpush1.bf16.msra.mxu0 %v3811
    %4760 = vmatprep.subr.bf16.mxu0 0
    %4761 = vmatpush1.bf16.msra.mxu0 %v3818
    %4762 = vmatprep.subr.bf16.mxu0 0
    %4763 = vmatpush1.bf16.msra.mxu0 %v3825
    %4764 = vmatprep.subr.bf16.mxu0 0
    %4765 = vmatpush1.bf16.msra.mxu0 %v3832
    %4766 = vmatprep.subr.bf16.mxu0 0
    %4767 = vmatpush1.bf16.msra.mxu0 %v3839
    %4768 = vmatprep.mubr.bf16.mxu0 %v3721
    %4769 = vmatmul.mubr.bf16.gmra.mrb[0].mxu0 %v3720
    %v4770 = vpop.f32.mrb[0].mxu0
    %v4771 = vadd.f32 %v4243, %v4770
    %v4772 = vpop.f32.mrb[0].mxu0
    %v4773 = vpop.f32.mrb[0].mxu0
    %v4774 = vpop.f32.mrb[0].mxu0
    %4775 = vdwg.mxu0
    %4776 = vmatprep.subr.bf16.mxu0 0
    %4777 = vmatpush1.bf16.msra.mxu0 %v3846
    %4778 = vmatprep.subr.bf16.mxu0 0
    %4779 = vmatpush1.bf16.msra.mxu0 %v3853
    %4780 = vmatprep.subr.bf16.mxu0 0
    %4781 = vmatpush1.bf16.msra.mxu0 %v3860
    %4782 = vmatprep.subr.bf16.mxu0 0
    %4783 = vmatpush1.bf16.msra.mxu0 %v3867
    %4784 = vmatprep.subr.bf16.mxu0 0
    %4785 = vmatpush1.bf16.msra.mxu0 %v3874
    %4786 = vmatprep.subr.bf16.mxu0 0
    %4787 = vmatpush1.bf16.msra.mxu0 %v3881
    %4788 = vmatprep.subr.bf16.mxu0 0
    %4789 = vmatpush1.bf16.msra.mxu0 %v3888
    %4790 = vmatprep.subr.bf16.mxu0 0
    %4791 = vmatpush1.bf16.msra.mxu0 %v3895
    %4792 = vmatprep.subr.bf16.mxu0 0
    %4793 = vmatpush1.bf16.msra.mxu0 %v3902
    %4794 = vmatprep.subr.bf16.mxu0 0
    %4795 = vmatpush1.bf16.msra.mxu0 %v3909
    %4796 = vmatprep.subr.bf16.mxu0 0
    %4797 = vmatpush1.bf16.msra.mxu0 %v3916
    %4798 = vmatprep.subr.bf16.mxu0 0
    %4799 = vmatpush1.bf16.msra.mxu0 %v3923
    %4800 = vmatprep.subr.bf16.mxu0 0
    %4801 = vmatpush1.bf16.msra.mxu0 %v3930
    %4802 = vmatprep.subr.bf16.mxu0 0
    %4803 = vmatpush1.bf16.msra.mxu0 %v3937
    %4804 = vmatprep.subr.bf16.mxu0 0
    %4805 = vmatpush1.bf16.msra.mxu0 %v3944
    %4806 = vmatprep.subr.bf16.mxu0 0
    %4807 = vmatpush1.bf16.msra.mxu0 %v3951
    %4808 = vmatprep.mubr.bf16.mxu0 %v3723
    %4809 = vmatmul.mubr.bf16.gmra.mrb[0].mxu0 %v3722
    %v4810 = vpop.f32.mrb[0].mxu0
    %v4811 = vadd.f32 %v4771, %v4810
    %v4812 = vpop.f32.mrb[0].mxu0
    %v4813 = vpop.f32.mrb[0].mxu0
    %v4814 = vpop.f32.mrb[0].mxu0
    %4815 = vdwg.mxu0
    %4816 = vmatprep.subr.bf16.mxu0 0
    %4817 = vmatpush1.bf16.msra.mxu0 %v3958
    %4818 = vmatprep.subr.bf16.mxu0 0
    %4819 = vmatpush1.bf16.msra.mxu0 %v3965
    %4820 = vmatprep.subr.bf16.mxu0 0
    %4821 = vmatpush1.bf16.msra.mxu0 %v3972
    %4822 = vmatprep.subr.bf16.mxu0 0
    %4823 = vmatpush1.bf16.msra.mxu0 %v3979
    %4824 = vmatprep.subr.bf16.mxu0 0
    %4825 = vmatpush1.bf16.msra.mxu0 %v3986
    %4826 = vmatprep.subr.bf16.mxu0 0
    %4827 = vmatpush1.bf16.msra.mxu0 %v3993
    %4828 = vmatprep.subr.bf16.mxu0 0
    %4829 = vmatpush1.bf16.msra.mxu0 %v4000
    %4830 = vmatprep.subr.bf16.mxu0 0
    %4831 = vmatpush1.bf16.msra.mxu0 %v4007
    %4832 = vmatprep.subr.bf16.mxu0 0
    %4833 = vmatpush1.bf16.msra.mxu0 %v4014
    %4834 = vmatprep.subr.bf16.mxu0 0
    %4835 = vmatpush1.bf16.msra.mxu0 %v4021
    %4836 = vmatprep.subr.bf16.mxu0 0
    %4837 = vmatpush1.bf16.msra.mxu0 %v4028
    %4838 = vmatprep.subr.bf16.mxu0 0
    %4839 = vmatpush1.bf16.msra.mxu0 %v4035
    %4840 = vmatprep.subr.bf16.mxu0 0
    %4841 = vmatpush1.bf16.msra.mxu0 %v4042
    %4842 = vmatprep.subr.bf16.mxu0 0
    %4843 = vmatpush1.bf16.msra.mxu0 %v4049
    %4844 = vmatprep.subr.bf16.mxu0 0
    %4845 = vmatpush1.bf16.msra.mxu0 %v4056
    %4846 = vmatprep.subr.bf16.mxu0 0
    %4847 = vmatpush1.bf16.msra.mxu0 %v4063
    %4848 = vmatprep.mubr.bf16.mxu0 %v3725
    %4849 = vmatmul.mubr.bf16.gmra.mrb[0].mxu0 %v3724
    %v4850 = vpop.f32.mrb[0].mxu0
    %v4851 = vadd.f32 %v4811, %v4850
    %v4852 = vpop.f32.mrb[0].mxu0
    %v4853 = vpop.f32.mrb[0].mxu0
    %v4854 = vpop.f32.mrb[0].mxu0
    %4855 = vdwg.mxu0
    %4856 = vmatprep.subr.bf16.mxu0 0
    %4857 = vmatpush1.bf16.msra.mxu0 %v4070
    %4858 = vmatprep.subr.bf16.mxu0 0
    %4859 = vmatpush1.bf16.msra.mxu0 %v4077
    %4860 = vmatprep.subr.bf16.mxu0 0
    %4861 = vmatpush1.bf16.msra.mxu0 %v4084
    %4862 = vmatprep.subr.bf16.mxu0 0
    %4863 = vmatpush1.bf16.msra.mxu0 %v4091
    %4864 = vmatprep.subr.bf16.mxu0 0
    %4865 = vmatpush1.bf16.msra.mxu0 %v4098
    %4866 = vmatprep.subr.bf16.mxu0 0
    %4867 = vmatpush1.bf16.msra.mxu0 %v4105
    %4868 = vmatprep.subr.bf16.mxu0 0
    %4869 = vmatpush1.bf16.msra.mxu0 %v4112
    %4870 = vmatprep.subr.bf16.mxu0 0
    %4871 = vmatpush1.bf16.msra.mxu0 %v4119
    %4872 = vmatprep.subr.bf16.mxu0 0
    %4873 = vmatpush1.bf16.msra.mxu0 %v4126
    %4874 = vmatprep.subr.bf16.mxu0 0
    %4875 = vmatpush1.bf16.msra.mxu0 %v4133
    %4876 = vmatprep.subr.bf16.mxu0 0
    %4877 = vmatpush1.bf16.msra.mxu0 %v4140
    %4878 = vmatprep.subr.bf16.mxu0 0
    %4879 = vmatpush1.bf16.msra.mxu0 %v4147
    %4880 = vmatprep.subr.bf16.mxu0 0
    %4881 = vmatpush1.bf16.msra.mxu0 %v4154
    %4882 = vmatprep.subr.bf16.mxu0 0
    %4883 = vmatpush1.bf16.msra.mxu0 %v4161
    %4884 = vmatprep.subr.bf16.mxu0 0
    %4885 = vmatpush1.bf16.msra.mxu0 %v4168
    %4886 = vmatprep.subr.bf16.mxu0 0
    %4887 = vmatpush1.bf16.msra.mxu0 %v4175
    %4888 = vmatprep.mubr.bf16.mxu0 %v3727
    %4889 = vmatmul.mubr.bf16.gmra.mrb[0].mxu0 %v3726
    %v4890 = vpop.f32.mrb[0].mxu0
    %v4891 = vadd.f32 %v4851, %v4890
    %v4892 = vpop.f32.mrb[0].mxu0
    %v4893 = vpop.f32.mrb[0].mxu0
    %v4894 = vpop.f32.mrb[0].mxu0
    %4895 = vdwg.mxu0
    %v4896 = vtanh.pop %v4402
    %v4897 = vtanh.pop %v4404
    %v4898 = vtanh.pop %v4566
    %v4899 = vtanh.pop %v4568
    %v4900 = vtanh.pop %v4730
    %v4901 = vtanh.pop %v4732
    %v4902 = vtanh.pop %v4891
    %4903 = vst [vmem:[%s17] sm:$0xff] %v4896
    %4904 = vst [vmem:[%s17 + $0x8] sm:$0xff] %v4897
    %4905 = vst [vmem:[%s17 + $0x10] sm:$0xff] %v4898
    %4906 = vst [vmem:[%s17 + $0x18] sm:$0xff] %v4899
    %4907 = vst [vmem:[%s17 + $0x20] sm:$0xff] %v4900
    %4908 = vst [vmem:[%s17 + $0x28] sm:$0xff] %v4901
    %4909 = vst [vmem:[%s17 + $0x30] sm:$0xff] %v4902
    // Predicated region
    $region126: #{generator_forward.1} parent=1 // pred_check
      _
    $region127: #{generator_forward.1} parent=1 // pred_check_branch
      %4911 = sbr.rel (0) target = $region129
    $region128: #{generator_forward.1} parent=1 // pred_region
      _
    $region129: #{generator_forward.1} parent=1 // pred_fallthru
      _
    // Predicated region
    $region130: #{generator_forward.1} parent=1 // pred_check
      _
    $region131: #{generator_forward.1} parent=1 // pred_check_branch
      %4913 = sbr.rel (0) target = $region133
    $region132: #{generator_forward.1} parent=1 // pred_region
      _
    $region133: #{generator_forward.1} parent=1 // pred_fallthru
      _
    %4914 = vsyncpa [#allocation5], 1
    %4915 = vsyncpa [#allocation7], 1
    %4916 = vsyncpa [#allocation10], 1
    %4917 = vsyncpa [#allocation13], 1
    %4918 = vsyncpa [#allocation16], 1
    %4919 = vsyncpa [#allocation19], 1
    %4920 = vsyncpa [#allocation22], 1
    %4921 = vsyncpa [#allocation25], 1
  %4922 = vsyncmov [#allocation3]
  %s4923 = vpop.sfrf %4922
  %p4924 = scmp.eq.s32.totalorder %s4923, 0
  %p4925 = pneg %p4924
  %4927 = shalt.err (%p4925)

</llo_original>
